<compile_context>
chip_gen: v7x
topology: tpu7x:2x2x1
jax: 0.10.0
libtpu: 0.0.40
codegen_flags: <defaults>
</compile_context>

<pallas_src>
import functools

import jax
import jax.numpy as jnp
from jax import lax
from jax.experimental import pallas as pl
from jax.experimental.pallas import tpu as pltpu
import numpy as np

LANE = 128
BN_EPS = 1e-5


def _round_up(v, m):
    return ((v + m - 1) // m) * m


# -----------------------------------------------------------------------------
# Fused ASPP kernel: one grid step handles TH output rows of one batch element.
# -----------------------------------------------------------------------------
def _aspp_kernel(x_ref, gap_ref, dww_ref, w1_ref, wpw_ref, w5_ref, wcat_ref,
                 bbr_ref, bcat_ref, o_ref, *, W, PM, TH, dils):
    Cp = x_ref.shape[3]           # padded input channels  (lanes, mult of 8)
    OCp = o_ref.shape[2]          # padded output channels (128 lanes)
    Mt = TH * W
    row0 = pl.multiple_of(pl.program_id(1) * TH, TH)   # first output row

    def mm(a, b):                 # MXU matmul; operands in weight dtype, f32 acc
        return jnp.dot(a.astype(b.dtype), b, preferred_element_type=jnp.float32)

    def pw_relu(inp, w, b):       # fused 1x1 conv (+folded BN) + bias + ReLU
        return jnp.maximum(mm(inp, w) + b, 0.0)

    # branch1: plain 1x1 conv on this tile's centre rows.
    xc = x_ref[0, pl.ds(PM + row0, TH), PM:PM + W, :].reshape(Mt, Cp)
    y = pw_relu(xc, w1_ref[:, :], bbr_ref[0:1, :])
    cat = mm(y, wcat_ref[0, :, :])               # (Mt, OCp) cat accumulator

    # branches 2..4: dilated 3x3 depthwise (VPU) fused with 1x1 pointwise (MXU),
    # each folded into the cat accumulator immediately.
    for j, d in enumerate(dils):
        acc = None
        for b in range(3):
            w0 = PM + (b - 1) * d
            # One misaligned W-slice per (branch, column); the three row taps
            # are leading-dim (untiled) slices of this value -> cheap.
            xw = x_ref[0, pl.ds(PM + row0 - d, TH + 2 * d), w0:w0 + W, :]
            for a in range(3):
                t = 3 * a + b
                tap = dww_ref[j, t:t + 1, :].reshape(1, 1, Cp)
                term = tap * xw[a * d:a * d + TH]
                acc = term if acc is None else acc + term
        y = pw_relu(acc.reshape(Mt, Cp),
                    wpw_ref[j, :, :], bbr_ref[j + 1:j + 2, :])
        cat = cat + mm(y, wcat_ref[j + 1, :, :])

    # branch5: 1x1 conv + (folded) BN + ReLU on the per-image global average;
    # its contribution to the cat conv is a spatially-constant row.
    gap8 = jnp.broadcast_to(gap_ref[0], (8, Cp))       # keep matmul M >= 8
    y5 = pw_relu(gap8, w5_ref[:, :], bbr_ref[4:5, :])
    const = bcat_ref[:, :] + mm(y5, wcat_ref[4, :, :])[0:1, :]

    o_ref[0] = jnp.maximum(cat + const, 0.0)


# -----------------------------------------------------------------------------
# Host-side folding / padding + pallas_call wrapper.
# -----------------------------------------------------------------------------
def _fold_bn(w, b, bn):
    """Fold inference-mode BatchNorm into a (OC, IC) conv: returns (w', b')."""
    g, beta, mean, var = bn
    s = g / jnp.sqrt(var + BN_EPS)
    return w * s[:, None], b * s + (beta - mean * s)


def _pad2(w, rows, cols):
    return jnp.pad(w, ((0, rows - w.shape[0]), (0, cols - w.shape[1])))


def _pad1(v, n):
    return jnp.pad(v, (0, n - v.shape[0]))


def aspp_forward(x, params, *, rate, mxu_dtype=jnp.float32):
    """x: (N, in_c, H, W) float32 NCHW.  Returns (N, out_c, H, W) float32."""
    N, C, H, W = x.shape
    dils = (6 * rate, 12 * rate, 18 * rate)
    PM = max(dils)                        # halo = max dilation (no 8-rounding)
    Hp = H + 2 * PM
    Wp = _round_up(W + 2 * PM, 8)         # keep sublane dim 8-aligned (trailing pad)
    Cin_p = _round_up(C, 8)               # input lanes: small multiple of 8 only
    out_c = params['cat_w'].shape[0]
    OCp = _round_up(out_c, LANE)          # lane-dense branch activations / output
    TH = 8 if H % 8 == 0 else H           # output rows per grid step
    R = H // TH
    M = H * W
    f32 = jnp.float32

    # ---- fold biases / BN into the 1x1 convs and pad to lane width ----------
    w1f, b1f = _fold_bn(params['b1_w'].astype(f32),
                        params['b1_b'].astype(f32), params['b1_bn'])
    W1 = _pad2(w1f.T, Cin_p, OCp)

    dwW, Wpw, bbr = [], [], [_pad1(b1f, OCp)]
    for j in range(3):
        dw_w = params['dw_w'][j].reshape(C, 9).astype(f32)        # (C, 3*3)
        dw_b = params['dw_b'][j].astype(f32)
        pw_w = params['pw_w'][j].astype(f32)                      # (out_c, C)
        pw_b = params['pw_b'][j].astype(f32) + pw_w @ dw_b        # fold dw bias
        pw_wf, pw_bf = _fold_bn(pw_w, pw_b, params['dwbr_bn'][j])
        dwW.append(_pad2(dw_w.T, 9, Cin_p))                       # (9, Cin_p)
        Wpw.append(_pad2(pw_wf.T, Cin_p, OCp))
        bbr.append(_pad1(pw_bf, OCp))

    w5f, b5f = _fold_bn(params['b5_w'].astype(f32),
                        params['b5_b'].astype(f32), params['b5_bn'])
    W5 = _pad2(w5f.T, Cin_p, OCp)
    bbr.append(_pad1(b5f, OCp))

    wcf, bcf = _fold_bn(params['cat_w'].astype(f32),
                        params['cat_b'].astype(f32), params['cat_bn'])
    Wcat = jnp.stack([_pad2(wcf[:, j * out_c:(j + 1) * out_c].T, OCp, OCp)
                      for j in range(5)])                         # (5, OCp, OCp)
    dwW = jnp.stack(dwW)                                          # (3, 9, Cin_p) f32
    Wpw = jnp.stack(Wpw)                                          # (3, Cin_p, OCp)
    Bbr = jnp.stack(bbr)                                          # (5, OCp) f32
    Bcat = _pad1(bcf, OCp)[None, :]                               # (1, OCp) f32

    # MXU (1x1 / pointwise / cat) weights in the requested MXU dtype;
    # depthwise taps and biases stay f32 (VPU / f32 accumulation paths).
    W1, Wpw, W5, Wcat = (w.astype(mxu_dtype) for w in (W1, Wpw, W5, Wcat))

    # ---- input: NCHW -> NHWC + spatial halo + (small) lane pad in ONE copy --
    xf = x.astype(f32)
    x_prep = jnp.pad(jnp.transpose(xf, (0, 2, 3, 1)),
                     ((0, 0), (PM, PM), (PM, Wp - W - PM), (0, Cin_p - C)))
    # Global average pool (branch5's reduction) as a tiny host-side reduce.
    gap = jnp.pad(jnp.mean(xf, axis=(2, 3)),
                  ((0, 0), (0, Cin_p - C)))[:, None, :]           # (N, 1, Cin_p)

    kernel = functools.partial(_aspp_kernel, W=W, PM=PM, TH=TH, dils=dils)

    out = pl.pallas_call(
        kernel,
        out_shape=jax.ShapeDtypeStruct((N, M, OCp), f32),
        grid=(N, R),
        in_specs=[
            # x stays VMEM-resident per batch element (constant index over r).
            pl.BlockSpec((1, Hp, Wp, Cin_p), lambda n, r: (n, 0, 0, 0)),
            pl.BlockSpec((1, 1, Cin_p), lambda n, r: (n, 0, 0)),
            # Weights / biases: constant index maps -> resident in VMEM.
            pl.BlockSpec((3, 9, Cin_p), lambda n, r: (0, 0, 0)),
            pl.BlockSpec((Cin_p, OCp), lambda n, r: (0, 0)),
            pl.BlockSpec((3, Cin_p, OCp), lambda n, r: (0, 0, 0)),
            pl.BlockSpec((Cin_p, OCp), lambda n, r: (0, 0)),
            pl.BlockSpec((5, OCp, OCp), lambda n, r: (0, 0, 0)),
            pl.BlockSpec((5, OCp), lambda n, r: (0, 0)),
            pl.BlockSpec((1, OCp), lambda n, r: (0, 0)),
        ],
        out_specs=pl.BlockSpec((1, TH * W, OCp), lambda n, r: (n, r, 0)),
        compiler_params=pltpu.CompilerParams(
            dimension_semantics=("parallel", "parallel"),   # megacore: batch x rows
            # Plenty for these shapes; raise toward 64-100 MiB on v5e/v6e for
            # large feature maps per the perf review.
            vmem_limit_bytes=32 * 1024 * 1024),
    )(x_prep, gap, dwW, W1, Wpw, W5, Wcat, Bbr, Bcat)

    # (N, H*W, OCp) -> (N, out_c, H, W)
    return jnp.transpose(out.reshape(N, H, W, OCp)[..., :out_c], (0, 3, 1, 2))


# -----------------------------------------------------------------------------
# Pure-JAX reference (for correctness check)
# -----------------------------------------------------------------------------
def _bn_ref(y, bn):
    g, beta, mean, var = bn
    inv = g / jnp.sqrt(var + BN_EPS)
    return ((y - mean[None, :, None, None]) * inv[None, :, None, None]
            + beta[None, :, None, None])


def _conv1x1_ref(y, w, b):
    z = lax.conv_general_dilated(
        y, w[:, :, None, None], (1, 1), [(0, 0), (0, 0)],
        dimension_numbers=("NCHW", "OIHW", "NCHW"),
        precision=lax.Precision.HIGHEST)
    return z + b[None, :, None, None]


def _deepwise_ref(y, dw_w, dw_b, pw_w, pw_b, d):
    C = y.shape[1]
    pad = (3 // 2) * d
    z = lax.conv_general_dilated(
        y, dw_w, (1, 1), [(pad, pad), (pad, pad)], rhs_dilation=(d, d),
        dimension_numbers=("NCHW", "OIHW", "NCHW"), feature_group_count=C,
        precision=lax.Precision.HIGHEST)
    z = z + dw_b[None, :, None, None]
    return _conv1x1_ref(z, pw_w, pw_b)


def aspp_reference(x, params, *, rate):
    relu = lambda t: jnp.maximum(t, 0.0)
    dils = (6 * rate, 12 * rate, 18 * rate)
    N, C, H, W = x.shape
    branches = [relu(_bn_ref(_conv1x1_ref(x, params['b1_w'], params['b1_b']),
                             params['b1_bn']))]
    for j, d in enumerate(dils):
        y = _deepwise_ref(x, params['dw_w'][j], params['dw_b'][j],
                          params['pw_w'][j], params['pw_b'][j], d)
        branches.append(relu(_bn_ref(y, params['dwbr_bn'][j])))
    gap = jnp.mean(x, axis=(2, 3), keepdims=True)
    y5 = relu(_bn_ref(_conv1x1_ref(gap, params['b5_w'], params['b5_b']),
                      params['b5_bn']))
    # F.interpolate(1x1 -> HxW, bilinear, align_corners=True) == broadcast
    branches.append(jnp.broadcast_to(y5, (N, y5.shape[1], H, W)))
    cat = jnp.concatenate(branches, axis=1)
    return relu(_bn_ref(_conv1x1_ref(cat, params['cat_w'], params['cat_b']),
                        params['cat_bn']))


if __name__ == "__main__":
    # ASPP(in_c=4, out_c=8, rate=1) on a (2, 4, 16, 16) input.
    N, in_c, H, W = 2, 4, 16, 16
    out_c, rate = 8, 1

    keys = iter(jax.random.split(jax.random.PRNGKey(0), 64))
    nk = lambda: next(keys)
    nrm = lambda shape, std=1.0: std * jax.random.normal(nk(), shape, jnp.float32)

    def make_bn(c):   # inference-mode BatchNorm params: gamma, beta, mean, var
        return (1.0 + 0.1 * nrm((c,)), 0.1 * nrm((c,)),
                0.1 * nrm((c,)), 1.0 + 0.2 * jnp.abs(nrm((c,))))

    std1 = float(np.sqrt(2.0 / out_c))      # kaiming-style init scales
    stdd = float(np.sqrt(2.0 / 9.0))

    params = {
        'b1_w': nrm((out_c, in_c), std1), 'b1_b': 0.1 * nrm((out_c,)),
        'b1_bn': make_bn(out_c),
        'dw_w': [nrm((in_c, 1, 3, 3), stdd) for _ in range(3)],
        'dw_b': [0.1 * nrm((in_c,)) for _ in range(3)],
        'pw_w': [nrm((out_c, in_c), std1) for _ in range(3)],
        'pw_b': [0.1 * nrm((out_c,)) for _ in range(3)],
        'dwbr_bn': [make_bn(out_c) for _ in range(3)],
        'b5_w': nrm((out_c, in_c), std1), 'b5_b': 0.1 * nrm((out_c,)),
        'b5_bn': make_bn(out_c),
        'cat_w': nrm((out_c, 5 * out_c), std1), 'cat_b': 0.1 * nrm((out_c,)),
        'cat_bn': make_bn(out_c),
    }
    x = nrm((N, in_c, H, W))

    ref = aspp_reference(x, params, rate=rate)

    # f32 MXU path: tight check against the HIGHEST-precision reference.
    out = jax.block_until_ready(
        jax.jit(functools.partial(aspp_forward, rate=rate))(x, params))
    np.testing.assert_allclose(np.asarray(out), np.asarray(ref),
                               rtol=1e-4, atol=1e-4)

    # bf16 MXU-operand path (per perf review); f32 accumulation, loose check.
    out_bf16 = jax.block_until_ready(
        jax.jit(functools.partial(aspp_forward, rate=rate,
                                  mxu_dtype=jnp.bfloat16))(x, params))
    np.testing.assert_allclose(np.asarray(out_bf16), np.asarray(ref),
                               rtol=1e-1, atol=1e-1)

    print("KERNEL_OK")
</pallas_src>

<mosaic_0001>
module attributes {stable_mosaic.version = 11 : i64} {
  func.func @_aspp_kernel(%arg0: i32, %arg1: i32, %arg2: memref<1x52x56x8xf32, #tpu.memory_space<vmem>>, %arg3: memref<1x1x8xf32, #tpu.memory_space<vmem>>, %arg4: memref<3x9x8xf32, #tpu.memory_space<vmem>>, %arg5: memref<8x128xf32, #tpu.memory_space<vmem>>, %arg6: memref<3x8x128xf32, #tpu.memory_space<vmem>>, %arg7: memref<8x128xf32, #tpu.memory_space<vmem>>, %arg8: memref<5x128x128xf32, #tpu.memory_space<vmem>>, %arg9: memref<5x128xf32, #tpu.memory_space<vmem>>, %arg10: memref<1x128xf32, #tpu.memory_space<vmem>>, %arg11: memref<1x128x128xf32, #tpu.memory_space<vmem>>) attributes {dimension_semantics = [#tpu.dimension_semantics<parallel>, #tpu.dimension_semantics<parallel>], iteration_bounds = array<i64: 2, 2>, scalar_prefetch = 0 : i64, scratch_operands = 0 : i64, tpu.core_type = #tpu.core_type<tc>, window_params = [{transform_indices = @transform_0, window_bounds = array<i64: 1, 52, 56, 8>}, {transform_indices = @transform_1, window_bounds = array<i64: 1, 1, 8>}, {pipeline_mode = #tpu.pipeline_mode<synchronous>, transform_indices = @transform_2, window_bounds = array<i64: 3, 9, 8>}, {pipeline_mode = #tpu.pipeline_mode<synchronous>, transform_indices = @transform_3, window_bounds = array<i64: 8, 128>}, {pipeline_mode = #tpu.pipeline_mode<synchronous>, transform_indices = @transform_4, window_bounds = array<i64: 3, 8, 128>}, {pipeline_mode = #tpu.pipeline_mode<synchronous>, transform_indices = @transform_5, window_bounds = array<i64: 8, 128>}, {pipeline_mode = #tpu.pipeline_mode<synchronous>, transform_indices = @transform_6, window_bounds = array<i64: 5, 128, 128>}, {pipeline_mode = #tpu.pipeline_mode<synchronous>, transform_indices = @transform_7, window_bounds = array<i64: 5, 128>}, {pipeline_mode = #tpu.pipeline_mode<synchronous>, transform_indices = @transform_8, window_bounds = array<i64: 1, 128>}, {transform_indices = @transform_9, window_bounds = array<i64: 1, 128, 128>}]} {
    %c8_i32 = arith.constant 8 : i32
    %0 = arith.muli %arg1, %c8_i32 : i32
    %1 = tpu.assume_multiple %0, 8 : i32
    %c18_i32 = arith.constant 18 : i32
    %2 = arith.addi %c18_i32, %1 : i32
    %c0 = arith.constant 0 : index
    %3 = arith.index_cast %2 : i32 to index
    %c18 = arith.constant 18 : index
    %c0_0 = arith.constant 0 : index
    %4 = vector.load %arg2[%c0, %3, %c18, %c0_0] : memref<1x52x56x8xf32, #tpu.memory_space<vmem>>, vector<1x8x16x8xf32>
    %5 = vector.shape_cast %4 : vector<1x8x16x8xf32> to vector<8x16x8xf32>
    %6 = vector.shape_cast %5 : vector<8x16x8xf32> to vector<128x8xf32>
    %c0_1 = arith.constant 0 : index
    %c0_2 = arith.constant 0 : index
    %7 = vector.load %arg5[%c0_1, %c0_2] : memref<8x128xf32, #tpu.memory_space<vmem>>, vector<8x128xf32>
    %c0_3 = arith.constant 0 : index
    %c0_4 = arith.constant 0 : index
    %8 = vector.load %arg9[%c0_3, %c0_4] : memref<5x128xf32, #tpu.memory_space<vmem>>, vector<1x128xf32>
    %cst = arith.constant dense<0.000000e+00> : vector<128x128xf32>
    %9 = tpu.matmul %6, %7, %cst {dimension_numbers = #tpu.dot_dimension_numbers<[1], [0], [0], [1], [0, 0, 1, 1], [], []>} : vector<128x8xf32>, vector<8x128xf32>, vector<128x128xf32> -> vector<128x128xf32>
    %10 = vector.broadcast %8 : vector<1x128xf32> to vector<128x128xf32>
    %11 = arith.addf %9, %10 : vector<128x128xf32>
    %cst_5 = arith.constant 0.000000e+00 : f32
    %12 = vector.broadcast %cst_5 : f32 to vector<128x128xf32>
    %13 = arith.maximumf %11, %12 : vector<128x128xf32>
    %c0_6 = arith.constant 0 : index
    %c0_7 = arith.constant 0 : index
    %c0_8 = arith.constant 0 : index
    %14 = vector.load %arg8[%c0_6, %c0_7, %c0_8] : memref<5x128x128xf32, #tpu.memory_space<vmem>>, vector<1x128x128xf32>
    %15 = vector.shape_cast %14 : vector<1x128x128xf32> to vector<128x128xf32>
    %cst_9 = arith.constant dense<0.000000e+00> : vector<128x128xf32>
    %16 = tpu.matmul %13, %15, %cst_9 {dimension_numbers = #tpu.dot_dimension_numbers<[1], [0], [0], [1], [0, 0, 1, 1], [], []>} : vector<128x128xf32>, vector<128x128xf32>, vector<128x128xf32> -> vector<128x128xf32>
    %c18_i32_10 = arith.constant 18 : i32
    %17 = arith.addi %c18_i32_10, %1 : i32
    %c6_i32 = arith.constant 6 : i32
    %18 = arith.subi %17, %c6_i32 : i32
    %c0_11 = arith.constant 0 : index
    %19 = arith.index_cast %18 : i32 to index
    %c12 = arith.constant 12 : index
    %c0_12 = arith.constant 0 : index
    %20 = vector.load %arg2[%c0_11, %19, %c12, %c0_12] : memref<1x52x56x8xf32, #tpu.memory_space<vmem>>, vector<1x20x16x8xf32>
    %21 = vector.shape_cast %20 : vector<1x20x16x8xf32> to vector<20x16x8xf32>
    %c0_13 = arith.constant 0 : index
    %c0_14 = arith.constant 0 : index
    %c0_15 = arith.constant 0 : index
    %22 = vector.load %arg4[%c0_13, %c0_14, %c0_15] : memref<3x9x8xf32, #tpu.memory_space<vmem>>, vector<1x1x8xf32>
    %23 = vector.shape_cast %22 : vector<1x1x8xf32> to vector<1x8xf32>
    %24 = vector.shape_cast %23 : vector<1x8xf32> to vector<1x1x8xf32>
    %25 = vector.extract_strided_slice %21 {offsets = [0, 0, 0], sizes = [8, 16, 8], strides = [1, 1, 1]} : vector<20x16x8xf32> to vector<8x16x8xf32>
    %26 = vector.broadcast %24 : vector<1x1x8xf32> to vector<8x16x8xf32>
    %27 = arith.mulf %26, %25 : vector<8x16x8xf32>
    %c0_16 = arith.constant 0 : index
    %c3 = arith.constant 3 : index
    %c0_17 = arith.constant 0 : index
    %28 = vector.load %arg4[%c0_16, %c3, %c0_17] : memref<3x9x8xf32, #tpu.memory_space<vmem>>, vector<1x1x8xf32>
    %29 = vector.shape_cast %28 : vector<1x1x8xf32> to vector<1x8xf32>
    %30 = vector.shape_cast %29 : vector<1x8xf32> to vector<1x1x8xf32>
    %31 = vector.extract_strided_slice %21 {offsets = [6, 0, 0], sizes = [8, 16, 8], strides = [1, 1, 1]} : vector<20x16x8xf32> to vector<8x16x8xf32>
    %32 = vector.broadcast %30 : vector<1x1x8xf32> to vector<8x16x8xf32>
    %33 = arith.mulf %32, %31 : vector<8x16x8xf32>
    %34 = arith.addf %27, %33 : vector<8x16x8xf32>
    %c0_18 = arith.constant 0 : index
    %c6 = arith.constant 6 : index
    %c0_19 = arith.constant 0 : index
    %35 = vector.load %arg4[%c0_18, %c6, %c0_19] : memref<3x9x8xf32, #tpu.memory_space<vmem>>, vector<1x1x8xf32>
    %36 = vector.shape_cast %35 : vector<1x1x8xf32> to vector<1x8xf32>
    %37 = vector.shape_cast %36 : vector<1x8xf32> to vector<1x1x8xf32>
    %38 = vector.extract_strided_slice %21 {offsets = [12, 0, 0], sizes = [8, 16, 8], strides = [1, 1, 1]} : vector<20x16x8xf32> to vector<8x16x8xf32>
    %39 = vector.broadcast %37 : vector<1x1x8xf32> to vector<8x16x8xf32>
    %40 = arith.mulf %39, %38 : vector<8x16x8xf32>
    %41 = arith.addf %34, %40 : vector<8x16x8xf32>
    %c18_i32_20 = arith.constant 18 : i32
    %42 = arith.addi %c18_i32_20, %1 : i32
    %c6_i32_21 = arith.constant 6 : i32
    %43 = arith.subi %42, %c6_i32_21 : i32
    %c0_22 = arith.constant 0 : index
    %44 = arith.index_cast %43 : i32 to index
    %c18_23 = arith.constant 18 : index
    %c0_24 = arith.constant 0 : index
    %45 = vector.load %arg2[%c0_22, %44, %c18_23, %c0_24] : memref<1x52x56x8xf32, #tpu.memory_space<vmem>>, vector<1x20x16x8xf32>
    %46 = vector.shape_cast %45 : vector<1x20x16x8xf32> to vector<20x16x8xf32>
    %c0_25 = arith.constant 0 : index
    %c1 = arith.constant 1 : index
    %c0_26 = arith.constant 0 : index
    %47 = vector.load %arg4[%c0_25, %c1, %c0_26] : memref<3x9x8xf32, #tpu.memory_space<vmem>>, vector<1x1x8xf32>
    %48 = vector.shape_cast %47 : vector<1x1x8xf32> to vector<1x8xf32>
    %49 = vector.shape_cast %48 : vector<1x8xf32> to vector<1x1x8xf32>
    %50 = vector.extract_strided_slice %46 {offsets = [0, 0, 0], sizes = [8, 16, 8], strides = [1, 1, 1]} : vector<20x16x8xf32> to vector<8x16x8xf32>
    %51 = vector.broadcast %49 : vector<1x1x8xf32> to vector<8x16x8xf32>
    %52 = arith.mulf %51, %50 : vector<8x16x8xf32>
    %53 = arith.addf %41, %52 : vector<8x16x8xf32>
    %c0_27 = arith.constant 0 : index
    %c4 = arith.constant 4 : index
    %c0_28 = arith.constant 0 : index
    %54 = vector.load %arg4[%c0_27, %c4, %c0_28] : memref<3x9x8xf32, #tpu.memory_space<vmem>>, vector<1x1x8xf32>
    %55 = vector.shape_cast %54 : vector<1x1x8xf32> to vector<1x8xf32>
    %56 = vector.shape_cast %55 : vector<1x8xf32> to vector<1x1x8xf32>
    %57 = vector.extract_strided_slice %46 {offsets = [6, 0, 0], sizes = [8, 16, 8], strides = [1, 1, 1]} : vector<20x16x8xf32> to vector<8x16x8xf32>
    %58 = vector.broadcast %56 : vector<1x1x8xf32> to vector<8x16x8xf32>
    %59 = arith.mulf %58, %57 : vector<8x16x8xf32>
    %60 = arith.addf %53, %59 : vector<8x16x8xf32>
    %c0_29 = arith.constant 0 : index
    %c7 = arith.constant 7 : index
    %c0_30 = arith.constant 0 : index
    %61 = vector.load %arg4[%c0_29, %c7, %c0_30] : memref<3x9x8xf32, #tpu.memory_space<vmem>>, vector<1x1x8xf32>
    %62 = vector.shape_cast %61 : vector<1x1x8xf32> to vector<1x8xf32>
    %63 = vector.shape_cast %62 : vector<1x8xf32> to vector<1x1x8xf32>
    %64 = vector.extract_strided_slice %46 {offsets = [12, 0, 0], sizes = [8, 16, 8], strides = [1, 1, 1]} : vector<20x16x8xf32> to vector<8x16x8xf32>
    %65 = vector.broadcast %63 : vector<1x1x8xf32> to vector<8x16x8xf32>
    %66 = arith.mulf %65, %64 : vector<8x16x8xf32>
    %67 = arith.addf %60, %66 : vector<8x16x8xf32>
    %c18_i32_31 = arith.constant 18 : i32
    %68 = arith.addi %c18_i32_31, %1 : i32
    %c6_i32_32 = arith.constant 6 : i32
    %69 = arith.subi %68, %c6_i32_32 : i32
    %c0_33 = arith.constant 0 : index
    %70 = arith.index_cast %69 : i32 to index
    %c24 = arith.constant 24 : index
    %c0_34 = arith.constant 0 : index
    %71 = vector.load %arg2[%c0_33, %70, %c24, %c0_34] : memref<1x52x56x8xf32, #tpu.memory_space<vmem>>, vector<1x20x16x8xf32>
    %72 = vector.shape_cast %71 : vector<1x20x16x8xf32> to vector<20x16x8xf32>
    %c0_35 = arith.constant 0 : index
    %c2 = arith.constant 2 : index
    %c0_36 = arith.constant 0 : index
    %73 = vector.load %arg4[%c0_35, %c2, %c0_36] : memref<3x9x8xf32, #tpu.memory_space<vmem>>, vector<1x1x8xf32>
    %74 = vector.shape_cast %73 : vector<1x1x8xf32> to vector<1x8xf32>
    %75 = vector.shape_cast %74 : vector<1x8xf32> to vector<1x1x8xf32>
    %76 = vector.extract_strided_slice %72 {offsets = [0, 0, 0], sizes = [8, 16, 8], strides = [1, 1, 1]} : vector<20x16x8xf32> to vector<8x16x8xf32>
    %77 = vector.broadcast %75 : vector<1x1x8xf32> to vector<8x16x8xf32>
    %78 = arith.mulf %77, %76 : vector<8x16x8xf32>
    %79 = arith.addf %67, %78 : vector<8x16x8xf32>
    %c0_37 = arith.constant 0 : index
    %c5 = arith.constant 5 : index
    %c0_38 = arith.constant 0 : index
    %80 = vector.load %arg4[%c0_37, %c5, %c0_38] : memref<3x9x8xf32, #tpu.memory_space<vmem>>, vector<1x1x8xf32>
    %81 = vector.shape_cast %80 : vector<1x1x8xf32> to vector<1x8xf32>
    %82 = vector.shape_cast %81 : vector<1x8xf32> to vector<1x1x8xf32>
    %83 = vector.extract_strided_slice %72 {offsets = [6, 0, 0], sizes = [8, 16, 8], strides = [1, 1, 1]} : vector<20x16x8xf32> to vector<8x16x8xf32>
    %84 = vector.broadcast %82 : vector<1x1x8xf32> to vector<8x16x8xf32>
    %85 = arith.mulf %84, %83 : vector<8x16x8xf32>
    %86 = arith.addf %79, %85 : vector<8x16x8xf32>
    %c0_39 = arith.constant 0 : index
    %c8 = arith.constant 8 : index
    %c0_40 = arith.constant 0 : index
    %87 = vector.load %arg4[%c0_39, %c8, %c0_40] : memref<3x9x8xf32, #tpu.memory_space<vmem>>, vector<1x1x8xf32>
    %88 = vector.shape_cast %87 : vector<1x1x8xf32> to vector<1x8xf32>
    %89 = vector.shape_cast %88 : vector<1x8xf32> to vector<1x1x8xf32>
    %90 = vector.extract_strided_slice %72 {offsets = [12, 0, 0], sizes = [8, 16, 8], strides = [1, 1, 1]} : vector<20x16x8xf32> to vector<8x16x8xf32>
    %91 = vector.broadcast %89 : vector<1x1x8xf32> to vector<8x16x8xf32>
    %92 = arith.mulf %91, %90 : vector<8x16x8xf32>
    %93 = arith.addf %86, %92 : vector<8x16x8xf32>
    %94 = vector.shape_cast %93 : vector<8x16x8xf32> to vector<128x8xf32>
    %c0_41 = arith.constant 0 : index
    %c0_42 = arith.constant 0 : index
    %c0_43 = arith.constant 0 : index
    %95 = vector.load %arg6[%c0_41, %c0_42, %c0_43] : memref<3x8x128xf32, #tpu.memory_space<vmem>>, vector<1x8x128xf32>
    %96 = vector.shape_cast %95 : vector<1x8x128xf32> to vector<8x128xf32>
    %c1_44 = arith.constant 1 : index
    %c0_45 = arith.constant 0 : index
    %97 = vector.load %arg9[%c1_44, %c0_45] : memref<5x128xf32, #tpu.memory_space<vmem>>, vector<1x128xf32>
    %cst_46 = arith.constant dense<0.000000e+00> : vector<128x128xf32>
    %98 = tpu.matmul %94, %96, %cst_46 {dimension_numbers = #tpu.dot_dimension_numbers<[1], [0], [0], [1], [0, 0, 1, 1], [], []>} : vector<128x8xf32>, vector<8x128xf32>, vector<128x128xf32> -> vector<128x128xf32>
    %99 = vector.broadcast %97 : vector<1x128xf32> to vector<128x128xf32>
    %100 = arith.addf %98, %99 : vector<128x128xf32>
    %cst_47 = arith.constant 0.000000e+00 : f32
    %101 = vector.broadcast %cst_47 : f32 to vector<128x128xf32>
    %102 = arith.maximumf %100, %101 : vector<128x128xf32>
    %c1_48 = arith.constant 1 : index
    %c0_49 = arith.constant 0 : index
    %c0_50 = arith.constant 0 : index
    %103 = vector.load %arg8[%c1_48, %c0_49, %c0_50] : memref<5x128x128xf32, #tpu.memory_space<vmem>>, vector<1x128x128xf32>
    %104 = vector.shape_cast %103 : vector<1x128x128xf32> to vector<128x128xf32>
    %cst_51 = arith.constant dense<0.000000e+00> : vector<128x128xf32>
    %105 = tpu.matmul %102, %104, %cst_51 {dimension_numbers = #tpu.dot_dimension_numbers<[1], [0], [0], [1], [0, 0, 1, 1], [], []>} : vector<128x128xf32>, vector<128x128xf32>, vector<128x128xf32> -> vector<128x128xf32>
    %106 = arith.addf %16, %105 : vector<128x128xf32>
    %c18_i32_52 = arith.constant 18 : i32
    %107 = arith.addi %c18_i32_52, %1 : i32
    %c12_i32 = arith.constant 12 : i32
    %108 = arith.subi %107, %c12_i32 : i32
    %c0_53 = arith.constant 0 : index
    %109 = arith.index_cast %108 : i32 to index
    %c6_54 = arith.constant 6 : index
    %c0_55 = arith.constant 0 : index
    %110 = vector.load %arg2[%c0_53, %109, %c6_54, %c0_55] : memref<1x52x56x8xf32, #tpu.memory_space<vmem>>, vector<1x32x16x8xf32>
    %111 = vector.shape_cast %110 : vector<1x32x16x8xf32> to vector<32x16x8xf32>
    %c1_56 = arith.constant 1 : index
    %c0_57 = arith.constant 0 : index
    %c0_58 = arith.constant 0 : index
    %112 = vector.load %arg4[%c1_56, %c0_57, %c0_58] : memref<3x9x8xf32, #tpu.memory_space<vmem>>, vector<1x1x8xf32>
    %113 = vector.shape_cast %112 : vector<1x1x8xf32> to vector<1x8xf32>
    %114 = vector.shape_cast %113 : vector<1x8xf32> to vector<1x1x8xf32>
    %115 = vector.extract_strided_slice %111 {offsets = [0, 0, 0], sizes = [8, 16, 8], strides = [1, 1, 1]} : vector<32x16x8xf32> to vector<8x16x8xf32>
    %116 = vector.broadcast %114 : vector<1x1x8xf32> to vector<8x16x8xf32>
    %117 = arith.mulf %116, %115 : vector<8x16x8xf32>
    %c1_59 = arith.constant 1 : index
    %c3_60 = arith.constant 3 : index
    %c0_61 = arith.constant 0 : index
    %118 = vector.load %arg4[%c1_59, %c3_60, %c0_61] : memref<3x9x8xf32, #tpu.memory_space<vmem>>, vector<1x1x8xf32>
    %119 = vector.shape_cast %118 : vector<1x1x8xf32> to vector<1x8xf32>
    %120 = vector.shape_cast %119 : vector<1x8xf32> to vector<1x1x8xf32>
    %121 = vector.extract_strided_slice %111 {offsets = [12, 0, 0], sizes = [8, 16, 8], strides = [1, 1, 1]} : vector<32x16x8xf32> to vector<8x16x8xf32>
    %122 = vector.broadcast %120 : vector<1x1x8xf32> to vector<8x16x8xf32>
    %123 = arith.mulf %122, %121 : vector<8x16x8xf32>
    %124 = arith.addf %117, %123 : vector<8x16x8xf32>
    %c1_62 = arith.constant 1 : index
    %c6_63 = arith.constant 6 : index
    %c0_64 = arith.constant 0 : index
    %125 = vector.load %arg4[%c1_62, %c6_63, %c0_64] : memref<3x9x8xf32, #tpu.memory_space<vmem>>, vector<1x1x8xf32>
    %126 = vector.shape_cast %125 : vector<1x1x8xf32> to vector<1x8xf32>
    %127 = vector.shape_cast %126 : vector<1x8xf32> to vector<1x1x8xf32>
    %128 = vector.extract_strided_slice %111 {offsets = [24, 0, 0], sizes = [8, 16, 8], strides = [1, 1, 1]} : vector<32x16x8xf32> to vector<8x16x8xf32>
    %129 = vector.broadcast %127 : vector<1x1x8xf32> to vector<8x16x8xf32>
    %130 = arith.mulf %129, %128 : vector<8x16x8xf32>
    %131 = arith.addf %124, %130 : vector<8x16x8xf32>
    %c18_i32_65 = arith.constant 18 : i32
    %132 = arith.addi %c18_i32_65, %1 : i32
    %c12_i32_66 = arith.constant 12 : i32
    %133 = arith.subi %132, %c12_i32_66 : i32
    %c0_67 = arith.constant 0 : index
    %134 = arith.index_cast %133 : i32 to index
    %c18_68 = arith.constant 18 : index
    %c0_69 = arith.constant 0 : index
    %135 = vector.load %arg2[%c0_67, %134, %c18_68, %c0_69] : memref<1x52x56x8xf32, #tpu.memory_space<vmem>>, vector<1x32x16x8xf32>
    %136 = vector.shape_cast %135 : vector<1x32x16x8xf32> to vector<32x16x8xf32>
    %c1_70 = arith.constant 1 : index
    %c1_71 = arith.constant 1 : index
    %c0_72 = arith.constant 0 : index
    %137 = vector.load %arg4[%c1_70, %c1_71, %c0_72] : memref<3x9x8xf32, #tpu.memory_space<vmem>>, vector<1x1x8xf32>
    %138 = vector.shape_cast %137 : vector<1x1x8xf32> to vector<1x8xf32>
    %139 = vector.shape_cast %138 : vector<1x8xf32> to vector<1x1x8xf32>
    %140 = vector.extract_strided_slice %136 {offsets = [0, 0, 0], sizes = [8, 16, 8], strides = [1, 1, 1]} : vector<32x16x8xf32> to vector<8x16x8xf32>
    %141 = vector.broadcast %139 : vector<1x1x8xf32> to vector<8x16x8xf32>
    %142 = arith.mulf %141, %140 : vector<8x16x8xf32>
    %143 = arith.addf %131, %142 : vector<8x16x8xf32>
    %c1_73 = arith.constant 1 : index
    %c4_74 = arith.constant 4 : index
    %c0_75 = arith.constant 0 : index
    %144 = vector.load %arg4[%c1_73, %c4_74, %c0_75] : memref<3x9x8xf32, #tpu.memory_space<vmem>>, vector<1x1x8xf32>
    %145 = vector.shape_cast %144 : vector<1x1x8xf32> to vector<1x8xf32>
    %146 = vector.shape_cast %145 : vector<1x8xf32> to vector<1x1x8xf32>
    %147 = vector.extract_strided_slice %136 {offsets = [12, 0, 0], sizes = [8, 16, 8], strides = [1, 1, 1]} : vector<32x16x8xf32> to vector<8x16x8xf32>
    %148 = vector.broadcast %146 : vector<1x1x8xf32> to vector<8x16x8xf32>
    %149 = arith.mulf %148, %147 : vector<8x16x8xf32>
    %150 = arith.addf %143, %149 : vector<8x16x8xf32>
    %c1_76 = arith.constant 1 : index
    %c7_77 = arith.constant 7 : index
    %c0_78 = arith.constant 0 : index
    %151 = vector.load %arg4[%c1_76, %c7_77, %c0_78] : memref<3x9x8xf32, #tpu.memory_space<vmem>>, vector<1x1x8xf32>
    %152 = vector.shape_cast %151 : vector<1x1x8xf32> to vector<1x8xf32>
    %153 = vector.shape_cast %152 : vector<1x8xf32> to vector<1x1x8xf32>
    %154 = vector.extract_strided_slice %136 {offsets = [24, 0, 0], sizes = [8, 16, 8], strides = [1, 1, 1]} : vector<32x16x8xf32> to vector<8x16x8xf32>
    %155 = vector.broadcast %153 : vector<1x1x8xf32> to vector<8x16x8xf32>
    %156 = arith.mulf %155, %154 : vector<8x16x8xf32>
    %157 = arith.addf %150, %156 : vector<8x16x8xf32>
    %c18_i32_79 = arith.constant 18 : i32
    %158 = arith.addi %c18_i32_79, %1 : i32
    %c12_i32_80 = arith.constant 12 : i32
    %159 = arith.subi %158, %c12_i32_80 : i32
    %c0_81 = arith.constant 0 : index
    %160 = arith.index_cast %159 : i32 to index
    %c30 = arith.constant 30 : index
    %c0_82 = arith.constant 0 : index
    %161 = vector.load %arg2[%c0_81, %160, %c30, %c0_82] : memref<1x52x56x8xf32, #tpu.memory_space<vmem>>, vector<1x32x16x8xf32>
    %162 = vector.shape_cast %161 : vector<1x32x16x8xf32> to vector<32x16x8xf32>
    %c1_83 = arith.constant 1 : index
    %c2_84 = arith.constant 2 : index
    %c0_85 = arith.constant 0 : index
    %163 = vector.load %arg4[%c1_83, %c2_84, %c0_85] : memref<3x9x8xf32, #tpu.memory_space<vmem>>, vector<1x1x8xf32>
    %164 = vector.shape_cast %163 : vector<1x1x8xf32> to vector<1x8xf32>
    %165 = vector.shape_cast %164 : vector<1x8xf32> to vector<1x1x8xf32>
    %166 = vector.extract_strided_slice %162 {offsets = [0, 0, 0], sizes = [8, 16, 8], strides = [1, 1, 1]} : vector<32x16x8xf32> to vector<8x16x8xf32>
    %167 = vector.broadcast %165 : vector<1x1x8xf32> to vector<8x16x8xf32>
    %168 = arith.mulf %167, %166 : vector<8x16x8xf32>
    %169 = arith.addf %157, %168 : vector<8x16x8xf32>
    %c1_86 = arith.constant 1 : index
    %c5_87 = arith.constant 5 : index
    %c0_88 = arith.constant 0 : index
    %170 = vector.load %arg4[%c1_86, %c5_87, %c0_88] : memref<3x9x8xf32, #tpu.memory_space<vmem>>, vector<1x1x8xf32>
    %171 = vector.shape_cast %170 : vector<1x1x8xf32> to vector<1x8xf32>
    %172 = vector.shape_cast %171 : vector<1x8xf32> to vector<1x1x8xf32>
    %173 = vector.extract_strided_slice %162 {offsets = [12, 0, 0], sizes = [8, 16, 8], strides = [1, 1, 1]} : vector<32x16x8xf32> to vector<8x16x8xf32>
    %174 = vector.broadcast %172 : vector<1x1x8xf32> to vector<8x16x8xf32>
    %175 = arith.mulf %174, %173 : vector<8x16x8xf32>
    %176 = arith.addf %169, %175 : vector<8x16x8xf32>
    %c1_89 = arith.constant 1 : index
    %c8_90 = arith.constant 8 : index
    %c0_91 = arith.constant 0 : index
    %177 = vector.load %arg4[%c1_89, %c8_90, %c0_91] : memref<3x9x8xf32, #tpu.memory_space<vmem>>, vector<1x1x8xf32>
    %178 = vector.shape_cast %177 : vector<1x1x8xf32> to vector<1x8xf32>
    %179 = vector.shape_cast %178 : vector<1x8xf32> to vector<1x1x8xf32>
    %180 = vector.extract_strided_slice %162 {offsets = [24, 0, 0], sizes = [8, 16, 8], strides = [1, 1, 1]} : vector<32x16x8xf32> to vector<8x16x8xf32>
    %181 = vector.broadcast %179 : vector<1x1x8xf32> to vector<8x16x8xf32>
    %182 = arith.mulf %181, %180 : vector<8x16x8xf32>
    %183 = arith.addf %176, %182 : vector<8x16x8xf32>
    %184 = vector.shape_cast %183 : vector<8x16x8xf32> to vector<128x8xf32>
    %c1_92 = arith.constant 1 : index
    %c0_93 = arith.constant 0 : index
    %c0_94 = arith.constant 0 : index
    %185 = vector.load %arg6[%c1_92, %c0_93, %c0_94] : memref<3x8x128xf32, #tpu.memory_space<vmem>>, vector<1x8x128xf32>
    %186 = vector.shape_cast %185 : vector<1x8x128xf32> to vector<8x128xf32>
    %c2_95 = arith.constant 2 : index
    %c0_96 = arith.constant 0 : index
    %187 = vector.load %arg9[%c2_95, %c0_96] : memref<5x128xf32, #tpu.memory_space<vmem>>, vector<1x128xf32>
    %cst_97 = arith.constant dense<0.000000e+00> : vector<128x128xf32>
    %188 = tpu.matmul %184, %186, %cst_97 {dimension_numbers = #tpu.dot_dimension_numbers<[1], [0], [0], [1], [0, 0, 1, 1], [], []>} : vector<128x8xf32>, vector<8x128xf32>, vector<128x128xf32> -> vector<128x128xf32>
    %189 = vector.broadcast %187 : vector<1x128xf32> to vector<128x128xf32>
    %190 = arith.addf %188, %189 : vector<128x128xf32>
    %cst_98 = arith.constant 0.000000e+00 : f32
    %191 = vector.broadcast %cst_98 : f32 to vector<128x128xf32>
    %192 = arith.maximumf %190, %191 : vector<128x128xf32>
    %c2_99 = arith.constant 2 : index
    %c0_100 = arith.constant 0 : index
    %c0_101 = arith.constant 0 : index
    %193 = vector.load %arg8[%c2_99, %c0_100, %c0_101] : memref<5x128x128xf32, #tpu.memory_space<vmem>>, vector<1x128x128xf32>
    %194 = vector.shape_cast %193 : vector<1x128x128xf32> to vector<128x128xf32>
    %cst_102 = arith.constant dense<0.000000e+00> : vector<128x128xf32>
    %195 = tpu.matmul %192, %194, %cst_102 {dimension_numbers = #tpu.dot_dimension_numbers<[1], [0], [0], [1], [0, 0, 1, 1], [], []>} : vector<128x128xf32>, vector<128x128xf32>, vector<128x128xf32> -> vector<128x128xf32>
    %196 = arith.addf %106, %195 : vector<128x128xf32>
    %c18_i32_103 = arith.constant 18 : i32
    %197 = arith.addi %c18_i32_103, %1 : i32
    %c18_i32_104 = arith.constant 18 : i32
    %198 = arith.subi %197, %c18_i32_104 : i32
    %c0_105 = arith.constant 0 : index
    %199 = arith.index_cast %198 : i32 to index
    %c0_106 = arith.constant 0 : index
    %c0_107 = arith.constant 0 : index
    %200 = vector.load %arg2[%c0_105, %199, %c0_106, %c0_107] : memref<1x52x56x8xf32, #tpu.memory_space<vmem>>, vector<1x44x16x8xf32>
    %201 = vector.shape_cast %200 : vector<1x44x16x8xf32> to vector<44x16x8xf32>
    %c2_108 = arith.constant 2 : index
    %c0_109 = arith.constant 0 : index
    %c0_110 = arith.constant 0 : index
    %202 = vector.load %arg4[%c2_108, %c0_109, %c0_110] : memref<3x9x8xf32, #tpu.memory_space<vmem>>, vector<1x1x8xf32>
    %203 = vector.shape_cast %202 : vector<1x1x8xf32> to vector<1x8xf32>
    %204 = vector.shape_cast %203 : vector<1x8xf32> to vector<1x1x8xf32>
    %205 = vector.extract_strided_slice %201 {offsets = [0, 0, 0], sizes = [8, 16, 8], strides = [1, 1, 1]} : vector<44x16x8xf32> to vector<8x16x8xf32>
    %206 = vector.broadcast %204 : vector<1x1x8xf32> to vector<8x16x8xf32>
    %207 = arith.mulf %206, %205 : vector<8x16x8xf32>
    %c2_111 = arith.constant 2 : index
    %c3_112 = arith.constant 3 : index
    %c0_113 = arith.constant 0 : index
    %208 = vector.load %arg4[%c2_111, %c3_112, %c0_113] : memref<3x9x8xf32, #tpu.memory_space<vmem>>, vector<1x1x8xf32>
    %209 = vector.shape_cast %208 : vector<1x1x8xf32> to vector<1x8xf32>
    %210 = vector.shape_cast %209 : vector<1x8xf32> to vector<1x1x8xf32>
    %211 = vector.extract_strided_slice %201 {offsets = [18, 0, 0], sizes = [8, 16, 8], strides = [1, 1, 1]} : vector<44x16x8xf32> to vector<8x16x8xf32>
    %212 = vector.broadcast %210 : vector<1x1x8xf32> to vector<8x16x8xf32>
    %213 = arith.mulf %212, %211 : vector<8x16x8xf32>
    %214 = arith.addf %207, %213 : vector<8x16x8xf32>
    %c2_114 = arith.constant 2 : index
    %c6_115 = arith.constant 6 : index
    %c0_116 = arith.constant 0 : index
    %215 = vector.load %arg4[%c2_114, %c6_115, %c0_116] : memref<3x9x8xf32, #tpu.memory_space<vmem>>, vector<1x1x8xf32>
    %216 = vector.shape_cast %215 : vector<1x1x8xf32> to vector<1x8xf32>
    %217 = vector.shape_cast %216 : vector<1x8xf32> to vector<1x1x8xf32>
    %218 = vector.extract_strided_slice %201 {offsets = [36, 0, 0], sizes = [8, 16, 8], strides = [1, 1, 1]} : vector<44x16x8xf32> to vector<8x16x8xf32>
    %219 = vector.broadcast %217 : vector<1x1x8xf32> to vector<8x16x8xf32>
    %220 = arith.mulf %219, %218 : vector<8x16x8xf32>
    %221 = arith.addf %214, %220 : vector<8x16x8xf32>
    %c18_i32_117 = arith.constant 18 : i32
    %222 = arith.addi %c18_i32_117, %1 : i32
    %c18_i32_118 = arith.constant 18 : i32
    %223 = arith.subi %222, %c18_i32_118 : i32
    %c0_119 = arith.constant 0 : index
    %224 = arith.index_cast %223 : i32 to index
    %c18_120 = arith.constant 18 : index
    %c0_121 = arith.constant 0 : index
    %225 = vector.load %arg2[%c0_119, %224, %c18_120, %c0_121] : memref<1x52x56x8xf32, #tpu.memory_space<vmem>>, vector<1x44x16x8xf32>
    %226 = vector.shape_cast %225 : vector<1x44x16x8xf32> to vector<44x16x8xf32>
    %c2_122 = arith.constant 2 : index
    %c1_123 = arith.constant 1 : index
    %c0_124 = arith.constant 0 : index
    %227 = vector.load %arg4[%c2_122, %c1_123, %c0_124] : memref<3x9x8xf32, #tpu.memory_space<vmem>>, vector<1x1x8xf32>
    %228 = vector.shape_cast %227 : vector<1x1x8xf32> to vector<1x8xf32>
    %229 = vector.shape_cast %228 : vector<1x8xf32> to vector<1x1x8xf32>
    %230 = vector.extract_strided_slice %226 {offsets = [0, 0, 0], sizes = [8, 16, 8], strides = [1, 1, 1]} : vector<44x16x8xf32> to vector<8x16x8xf32>
    %231 = vector.broadcast %229 : vector<1x1x8xf32> to vector<8x16x8xf32>
    %232 = arith.mulf %231, %230 : vector<8x16x8xf32>
    %233 = arith.addf %221, %232 : vector<8x16x8xf32>
    %c2_125 = arith.constant 2 : index
    %c4_126 = arith.constant 4 : index
    %c0_127 = arith.constant 0 : index
    %234 = vector.load %arg4[%c2_125, %c4_126, %c0_127] : memref<3x9x8xf32, #tpu.memory_space<vmem>>, vector<1x1x8xf32>
    %235 = vector.shape_cast %234 : vector<1x1x8xf32> to vector<1x8xf32>
    %236 = vector.shape_cast %235 : vector<1x8xf32> to vector<1x1x8xf32>
    %237 = vector.extract_strided_slice %226 {offsets = [18, 0, 0], sizes = [8, 16, 8], strides = [1, 1, 1]} : vector<44x16x8xf32> to vector<8x16x8xf32>
    %238 = vector.broadcast %236 : vector<1x1x8xf32> to vector<8x16x8xf32>
    %239 = arith.mulf %238, %237 : vector<8x16x8xf32>
    %240 = arith.addf %233, %239 : vector<8x16x8xf32>
    %c2_128 = arith.constant 2 : index
    %c7_129 = arith.constant 7 : index
    %c0_130 = arith.constant 0 : index
    %241 = vector.load %arg4[%c2_128, %c7_129, %c0_130] : memref<3x9x8xf32, #tpu.memory_space<vmem>>, vector<1x1x8xf32>
    %242 = vector.shape_cast %241 : vector<1x1x8xf32> to vector<1x8xf32>
    %243 = vector.shape_cast %242 : vector<1x8xf32> to vector<1x1x8xf32>
    %244 = vector.extract_strided_slice %226 {offsets = [36, 0, 0], sizes = [8, 16, 8], strides = [1, 1, 1]} : vector<44x16x8xf32> to vector<8x16x8xf32>
    %245 = vector.broadcast %243 : vector<1x1x8xf32> to vector<8x16x8xf32>
    %246 = arith.mulf %245, %244 : vector<8x16x8xf32>
    %247 = arith.addf %240, %246 : vector<8x16x8xf32>
    %c18_i32_131 = arith.constant 18 : i32
    %248 = arith.addi %c18_i32_131, %1 : i32
    %c18_i32_132 = arith.constant 18 : i32
    %249 = arith.subi %248, %c18_i32_132 : i32
    %c0_133 = arith.constant 0 : index
    %250 = arith.index_cast %249 : i32 to index
    %c36 = arith.constant 36 : index
    %c0_134 = arith.constant 0 : index
    %251 = vector.load %arg2[%c0_133, %250, %c36, %c0_134] : memref<1x52x56x8xf32, #tpu.memory_space<vmem>>, vector<1x44x16x8xf32>
    %252 = vector.shape_cast %251 : vector<1x44x16x8xf32> to vector<44x16x8xf32>
    %c2_135 = arith.constant 2 : index
    %c2_136 = arith.constant 2 : index
    %c0_137 = arith.constant 0 : index
    %253 = vector.load %arg4[%c2_135, %c2_136, %c0_137] : memref<3x9x8xf32, #tpu.memory_space<vmem>>, vector<1x1x8xf32>
    %254 = vector.shape_cast %253 : vector<1x1x8xf32> to vector<1x8xf32>
    %255 = vector.shape_cast %254 : vector<1x8xf32> to vector<1x1x8xf32>
    %256 = vector.extract_strided_slice %252 {offsets = [0, 0, 0], sizes = [8, 16, 8], strides = [1, 1, 1]} : vector<44x16x8xf32> to vector<8x16x8xf32>
    %257 = vector.broadcast %255 : vector<1x1x8xf32> to vector<8x16x8xf32>
    %258 = arith.mulf %257, %256 : vector<8x16x8xf32>
    %259 = arith.addf %247, %258 : vector<8x16x8xf32>
    %c2_138 = arith.constant 2 : index
    %c5_139 = arith.constant 5 : index
    %c0_140 = arith.constant 0 : index
    %260 = vector.load %arg4[%c2_138, %c5_139, %c0_140] : memref<3x9x8xf32, #tpu.memory_space<vmem>>, vector<1x1x8xf32>
    %261 = vector.shape_cast %260 : vector<1x1x8xf32> to vector<1x8xf32>
    %262 = vector.shape_cast %261 : vector<1x8xf32> to vector<1x1x8xf32>
    %263 = vector.extract_strided_slice %252 {offsets = [18, 0, 0], sizes = [8, 16, 8], strides = [1, 1, 1]} : vector<44x16x8xf32> to vector<8x16x8xf32>
    %264 = vector.broadcast %262 : vector<1x1x8xf32> to vector<8x16x8xf32>
    %265 = arith.mulf %264, %263 : vector<8x16x8xf32>
    %266 = arith.addf %259, %265 : vector<8x16x8xf32>
    %c2_141 = arith.constant 2 : index
    %c8_142 = arith.constant 8 : index
    %c0_143 = arith.constant 0 : index
    %267 = vector.load %arg4[%c2_141, %c8_142, %c0_143] : memref<3x9x8xf32, #tpu.memory_space<vmem>>, vector<1x1x8xf32>
    %268 = vector.shape_cast %267 : vector<1x1x8xf32> to vector<1x8xf32>
    %269 = vector.shape_cast %268 : vector<1x8xf32> to vector<1x1x8xf32>
    %270 = vector.extract_strided_slice %252 {offsets = [36, 0, 0], sizes = [8, 16, 8], strides = [1, 1, 1]} : vector<44x16x8xf32> to vector<8x16x8xf32>
    %271 = vector.broadcast %269 : vector<1x1x8xf32> to vector<8x16x8xf32>
    %272 = arith.mulf %271, %270 : vector<8x16x8xf32>
    %273 = arith.addf %266, %272 : vector<8x16x8xf32>
    %274 = vector.shape_cast %273 : vector<8x16x8xf32> to vector<128x8xf32>
    %c2_144 = arith.constant 2 : index
    %c0_145 = arith.constant 0 : index
    %c0_146 = arith.constant 0 : index
    %275 = vector.load %arg6[%c2_144, %c0_145, %c0_146] : memref<3x8x128xf32, #tpu.memory_space<vmem>>, vector<1x8x128xf32>
    %276 = vector.shape_cast %275 : vector<1x8x128xf32> to vector<8x128xf32>
    %c3_147 = arith.constant 3 : index
    %c0_148 = arith.constant 0 : index
    %277 = vector.load %arg9[%c3_147, %c0_148] : memref<5x128xf32, #tpu.memory_space<vmem>>, vector<1x128xf32>
    %cst_149 = arith.constant dense<0.000000e+00> : vector<128x128xf32>
    %278 = tpu.matmul %274, %276, %cst_149 {dimension_numbers = #tpu.dot_dimension_numbers<[1], [0], [0], [1], [0, 0, 1, 1], [], []>} : vector<128x8xf32>, vector<8x128xf32>, vector<128x128xf32> -> vector<128x128xf32>
    %279 = vector.broadcast %277 : vector<1x128xf32> to vector<128x128xf32>
    %280 = arith.addf %278, %279 : vector<128x128xf32>
    %cst_150 = arith.constant 0.000000e+00 : f32
    %281 = vector.broadcast %cst_150 : f32 to vector<128x128xf32>
    %282 = arith.maximumf %280, %281 : vector<128x128xf32>
    %c3_151 = arith.constant 3 : index
    %c0_152 = arith.constant 0 : index
    %c0_153 = arith.constant 0 : index
    %283 = vector.load %arg8[%c3_151, %c0_152, %c0_153] : memref<5x128x128xf32, #tpu.memory_space<vmem>>, vector<1x128x128xf32>
    %284 = vector.shape_cast %283 : vector<1x128x128xf32> to vector<128x128xf32>
    %cst_154 = arith.constant dense<0.000000e+00> : vector<128x128xf32>
    %285 = tpu.matmul %282, %284, %cst_154 {dimension_numbers = #tpu.dot_dimension_numbers<[1], [0], [0], [1], [0, 0, 1, 1], [], []>} : vector<128x128xf32>, vector<128x128xf32>, vector<128x128xf32> -> vector<128x128xf32>
    %286 = arith.addf %196, %285 : vector<128x128xf32>
    %c0_155 = arith.constant 0 : index
    %c0_156 = arith.constant 0 : index
    %c0_157 = arith.constant 0 : index
    %287 = vector.load %arg3[%c0_155, %c0_156, %c0_157] : memref<1x1x8xf32, #tpu.memory_space<vmem>>, vector<1x1x8xf32>
    %288 = vector.shape_cast %287 : vector<1x1x8xf32> to vector<1x8xf32>
    %289 = vector.shape_cast %288 : vector<1x8xf32> to vector<1x8xf32>
    %290 = vector.broadcast %289 : vector<1x8xf32> to vector<8x8xf32>
    %c0_158 = arith.constant 0 : index
    %c0_159 = arith.constant 0 : index
    %291 = vector.load %arg7[%c0_158, %c0_159] : memref<8x128xf32, #tpu.memory_space<vmem>>, vector<8x128xf32>
    %c4_160 = arith.constant 4 : index
    %c0_161 = arith.constant 0 : index
    %292 = vector.load %arg9[%c4_160, %c0_161] : memref<5x128xf32, #tpu.memory_space<vmem>>, vector<1x128xf32>
    %cst_162 = arith.constant dense<0.000000e+00> : vector<8x128xf32>
    %293 = tpu.matmul %290, %291, %cst_162 {dimension_numbers = #tpu.dot_dimension_numbers<[1], [0], [0], [1], [0, 0, 1, 1], [], []>} : vector<8x8xf32>, vector<8x128xf32>, vector<8x128xf32> -> vector<8x128xf32>
    %294 = vector.broadcast %292 : vector<1x128xf32> to vector<8x128xf32>
    %295 = arith.addf %293, %294 : vector<8x128xf32>
    %cst_163 = arith.constant 0.000000e+00 : f32
    %296 = vector.broadcast %cst_163 : f32 to vector<8x128xf32>
    %297 = arith.maximumf %295, %296 : vector<8x128xf32>
    %c0_164 = arith.constant 0 : index
    %c0_165 = arith.constant 0 : index
    %298 = vector.load %arg10[%c0_164, %c0_165] : memref<1x128xf32, #tpu.memory_space<vmem>>, vector<1x128xf32>
    %c4_166 = arith.constant 4 : index
    %c0_167 = arith.constant 0 : index
    %c0_168 = arith.constant 0 : index
    %299 = vector.load %arg8[%c4_166, %c0_167, %c0_168] : memref<5x128x128xf32, #tpu.memory_space<vmem>>, vector<1x128x128xf32>
    %300 = vector.shape_cast %299 : vector<1x128x128xf32> to vector<128x128xf32>
    %cst_169 = arith.constant dense<0.000000e+00> : vector<8x128xf32>
    %301 = tpu.matmul %297, %300, %cst_169 {dimension_numbers = #tpu.dot_dimension_numbers<[1], [0], [0], [1], [0, 0, 1, 1], [], []>} : vector<8x128xf32>, vector<128x128xf32>, vector<8x128xf32> -> vector<8x128xf32>
    %302 = vector.extract_strided_slice %301 {offsets = [0, 0], sizes = [1, 128], strides = [1, 1]} : vector<8x128xf32> to vector<1x128xf32>
    %303 = arith.addf %298, %302 : vector<1x128xf32>
    %304 = vector.broadcast %303 : vector<1x128xf32> to vector<128x128xf32>
    %305 = arith.addf %286, %304 : vector<128x128xf32>
    %cst_170 = arith.constant 0.000000e+00 : f32
    %306 = vector.broadcast %cst_170 : f32 to vector<128x128xf32>
    %307 = arith.maximumf %305, %306 : vector<128x128xf32>
    %c0_171 = arith.constant 0 : index
    %c0_172 = arith.constant 0 : index
    %c0_173 = arith.constant 0 : index
    %308 = vector.load %arg11[%c0_171, %c0_172, %c0_173] : memref<1x128x128xf32, #tpu.memory_space<vmem>>, vector<1x128x128xf32>
    %309 = vector.shape_cast %308 : vector<1x128x128xf32> to vector<128x128xf32>
    %310 = vector.shape_cast %307 : vector<128x128xf32> to vector<1x128x128xf32>
    tpu.vector_store %arg11[%c0_171, %c0_172, %c0_173], %310 {strides = array<i32>} : memref<1x128x128xf32, #tpu.memory_space<vmem>>, vector<1x128x128xf32>,
    return
  }
  func.func @transform_0(%arg0: i32, %arg1: i32) -> (i32, i32, i32, i32) {
    %c0_i32 = arith.constant 0 : i32
    %c0_i32_0 = arith.constant 0 : i32
    %c0_i32_1 = arith.constant 0 : i32
    %c0_i32_2 = arith.constant 0 : i32
    return %arg0, %c0_i32, %c0_i32_0, %c0_i32_1 : i32, i32, i32, i32
  }
  func.func @transform_1(%arg0: i32, %arg1: i32) -> (i32, i32, i32) {
    %c0_i32 = arith.constant 0 : i32
    %c0_i32_0 = arith.constant 0 : i32
    %c0_i32_1 = arith.constant 0 : i32
    return %arg0, %c0_i32, %c0_i32_0 : i32, i32, i32
  }
  func.func @transform_2(%arg0: i32, %arg1: i32) -> (i32, i32, i32) {
    %c0_i32 = arith.constant 0 : i32
    %c0_i32_0 = arith.constant 0 : i32
    %c0_i32_1 = arith.constant 0 : i32
    %c0_i32_2 = arith.constant 0 : i32
    return %c0_i32, %c0_i32_0, %c0_i32_1 : i32, i32, i32
  }
  func.func @transform_3(%arg0: i32, %arg1: i32) -> (i32, i32) {
    %c0_i32 = arith.constant 0 : i32
    %c0_i32_0 = arith.constant 0 : i32
    %c0_i32_1 = arith.constant 0 : i32
    return %c0_i32, %c0_i32_0 : i32, i32
  }
  func.func @transform_4(%arg0: i32, %arg1: i32) -> (i32, i32, i32) {
    %c0_i32 = arith.constant 0 : i32
    %c0_i32_0 = arith.constant 0 : i32
    %c0_i32_1 = arith.constant 0 : i32
    %c0_i32_2 = arith.constant 0 : i32
    return %c0_i32, %c0_i32_0, %c0_i32_1 : i32, i32, i32
  }
  func.func @transform_5(%arg0: i32, %arg1: i32) -> (i32, i32) {
    %c0_i32 = arith.constant 0 : i32
    %c0_i32_0 = arith.constant 0 : i32
    %c0_i32_1 = arith.constant 0 : i32
    return %c0_i32, %c0_i32_0 : i32, i32
  }
  func.func @transform_6(%arg0: i32, %arg1: i32) -> (i32, i32, i32) {
    %c0_i32 = arith.constant 0 : i32
    %c0_i32_0 = arith.constant 0 : i32
    %c0_i32_1 = arith.constant 0 : i32
    %c0_i32_2 = arith.constant 0 : i32
    return %c0_i32, %c0_i32_0, %c0_i32_1 : i32, i32, i32
  }
  func.func @transform_7(%arg0: i32, %arg1: i32) -> (i32, i32) {
    %c0_i32 = arith.constant 0 : i32
    %c0_i32_0 = arith.constant 0 : i32
    %c0_i32_1 = arith.constant 0 : i32
    return %c0_i32, %c0_i32_0 : i32, i32
  }
  func.func @transform_8(%arg0: i32, %arg1: i32) -> (i32, i32) {
    %c0_i32 = arith.constant 0 : i32
    %c0_i32_0 = arith.constant 0 : i32
    %c0_i32_1 = arith.constant 0 : i32
    return %c0_i32, %c0_i32_0 : i32, i32
  }
  func.func @transform_9(%arg0: i32, %arg1: i32) -> (i32, i32, i32) {
    %c0_i32 = arith.constant 0 : i32
    %c0_i32_0 = arith.constant 0 : i32
    return %arg0, %arg1, %c0_i32 : i32, i32, i32
  }
}

</mosaic_0001>

<llo_original>
// kernel: aspp_forward.1
$region0: #{aspp_forward.1}
  #allocation0 [shape = 'u32[]', space=smem, size = 0x4, offset = 0x4, fixed_abs, tag = 'smem constant byte address 0x4 - core index']
  #allocation1 [shape = 'u32[144,128]{1,0:T(1,128)}', space=vmem, size = 0x12000, scoped, tag = 'internal scratch']
  %s0 = inlined_call_operand.vmem [shape: f32[2,52,56,8], index: 0, kind: input, shape index: {}]
  %s1 = inlined_call_operand.vmem [shape: f32[2,1,8], index: 1, kind: input, shape index: {}]
  %s2 = inlined_call_operand.vmem [shape: f32[3,9,8], index: 2, kind: input, shape index: {}]
  %s3 = inlined_call_operand.vmem [shape: f32[8,128], index: 3, kind: input, shape index: {}]
  %s4 = inlined_call_operand.vmem [shape: f32[3,8,128], index: 4, kind: input, shape index: {}]
  %s5 = inlined_call_operand.vmem [shape: f32[8,128], index: 5, kind: input, shape index: {}]
  %s6 = inlined_call_operand.vmem [shape: f32[5,128,128], index: 6, kind: input, shape index: {}]
  %s7 = inlined_call_operand.vmem [shape: f32[5,128], index: 7, kind: input, shape index: {}]
  %s8 = inlined_call_operand.vmem [shape: f32[1,128], index: 8, kind: input, shape index: {}]
  %s9 = inlined_call_operand.vmem [shape: f32[2,256,128], index: 9, kind: output, shape index: {}]
  %s10 = sld [smem:[#allocation0]]
  $region69: #{aspp_forward.1} parent=0
    _
  %s12 = ssub.s32 1, %s10
  %s13 = scalar_select 0, %s12, %s10
  loop: start=0, step=1, limit=6
  $region2: #{aspp_forward.1} parent=0 // loop_pre_header
    _
  $region3: #{aspp_forward.1} parent=0 // loop_header
    %s15 = sphi 0, %s19
    %p16 = scmp.ge.s32.totalorder %s15, 6
    %s22 = sphi 0, %s34
    %s23 = sphi 0, %s30
    %s24 = sphi 0, %s22
    %s25 = sphi 0, %s23
    %s26 = sphi 0, %s24
    %s27 = sphi 0, %s25
    %s37 = sphi 0, %s39
    %s40 = sphi 0, %s37
    %s41 = sphi 0, %s40
    %s57 = sphi 0, %s41
    %s63 = sphi 0, %s65
    %s66 = sphi 0, %s63
    %s67 = sphi 0, %s66
    %s83 = sphi 0, %s67
    %s87 = sphi 0, %s87
    %s89 = sphi 0, %s87
    %s90 = sphi 0, %s89
    %s104 = sphi 0, %s90
    %s108 = sphi 0, %s108
    %s110 = sphi 0, %s108
    %s111 = sphi 0, %s110
    %s125 = sphi 0, %s111
    %s129 = sphi 0, %s129
    %s131 = sphi 0, %s129
    %s132 = sphi 0, %s131
    %s146 = sphi 0, %s132
    %s150 = sphi 0, %s150
    %s152 = sphi 0, %s150
    %s153 = sphi 0, %s152
    %s167 = sphi 0, %s153
    %s171 = sphi 0, %s171
    %s173 = sphi 0, %s171
    %s174 = sphi 0, %s173
    %s188 = sphi 0, %s174
    %s192 = sphi 0, %s192
    %s194 = sphi 0, %s192
    %s195 = sphi 0, %s194
    %s209 = sphi 0, %s195
    %s213 = sphi 0, %s213
    %s215 = sphi 0, %s213
    %s216 = sphi 0, %s215
    %s230 = sphi 0, %s216
    %s238 = sphi 0, %s240
    %s241 = sphi 0, %s238
    %s242 = sphi 0, %s241
    %s258 = sphi 0, %s242
  $region4: #{aspp_forward.1} parent=0 // loop_header_branch
    %18 = sbr.rel (%p16) target = $region8
  $region5: #{aspp_forward.1} parent=0 // loop_body
    %s20 = ssub.s32 %s15, 1
    %s21 = ssub.s32 %s15, 2
    %s28 = sadd.s32 1, %s23
    %p29 = scmp.ge.s32.totalorder %s28, 2
    %s30 = scalar_select %p29, 0, %s28
    %s31 = sadd.s32 1, %s22
    %s32 = scalar_select %p29, %s31, %s22
    %p33 = scmp.ge.s32.totalorder %s32, 2
    %s34 = scalar_select %p33, 0, %s32
    %s35 = ssub.s32 %s22, %s34
    %p36 = scmp.eq.s32.totalorder %s35, 0
    %s38 = sadd.s32 %s37, 1
    %s39 = scalar_select %p36, %s37, %s38
    %p42 = pneg %p36
    %p43 = scmp.eq.s32.totalorder %s15, 3
    %p44 = por %p42, %p43
    %p45 = scmp.ne.s32.totalorder %s37, %s40
    %p46 = scmp.eq.s32.totalorder %s15, 0
    %p47 = por %p45, %p46
    %p48 = scmp.ne.s32.totalorder %s37, %s40
    %p49 = scmp.eq.s32.totalorder %s20, 3
    %p50 = por %p48, %p49
    %p51 = scmp.ne.s32.totalorder %s40, %s41
    %p52 = scmp.eq.s32.totalorder %s20, 0
    %p53 = por %p51, %p52
    %p54 = scmp.ne.s32.totalorder %s40, %s41
    %p55 = scmp.eq.s32.totalorder %s21, 3
    %p56 = por %p54, %p55
    %p58 = scmp.ne.s32.totalorder %s41, %s57
    %p59 = scmp.eq.s32.totalorder %s21, 0
    %p60 = por %p58, %p59
    %s61 = ssub.s32 %s22, %s34
    %p62 = scmp.eq.s32.totalorder %s61, 0
    %s64 = sadd.s32 %s63, 1
    %s65 = scalar_select %p62, %s63, %s64
    %p68 = pneg %p62
    %p69 = scmp.eq.s32.totalorder %s15, 3
    %p70 = por %p68, %p69
    %p71 = scmp.ne.s32.totalorder %s63, %s66
    %p72 = scmp.eq.s32.totalorder %s15, 0
    %p73 = por %p71, %p72
    %p74 = scmp.ne.s32.totalorder %s63, %s66
    %p75 = scmp.eq.s32.totalorder %s20, 3
    %p76 = por %p74, %p75
    %p77 = scmp.ne.s32.totalorder %s66, %s67
    %p78 = scmp.eq.s32.totalorder %s20, 0
    %p79 = por %p77, %p78
    %p80 = scmp.ne.s32.totalorder %s66, %s67
    %p81 = scmp.eq.s32.totalorder %s21, 3
    %p82 = por %p80, %p81
    %p84 = scmp.ne.s32.totalorder %s67, %s83
    %p85 = scmp.eq.s32.totalorder %s21, 0
    %p86 = por %p84, %p85
    %s88 = sadd.s32 %s87, 1
    %p91 = scmp.eq.s32.totalorder %s15, 3
    %p92 = scmp.ne.s32.totalorder %s87, %s89
    %p93 = scmp.eq.s32.totalorder %s15, 0
    %p94 = por %p92, %p93
    %p95 = scmp.ne.s32.totalorder %s87, %s89
    %p96 = scmp.eq.s32.totalorder %s20, 3
    %p97 = por %p95, %p96
    %p98 = scmp.ne.s32.totalorder %s89, %s90
    %p99 = scmp.eq.s32.totalorder %s20, 0
    %p100 = por %p98, %p99
    %p101 = scmp.ne.s32.totalorder %s89, %s90
    %p102 = scmp.eq.s32.totalorder %s21, 3
    %p103 = por %p101, %p102
    %p105 = scmp.ne.s32.totalorder %s90, %s104
    %p106 = scmp.eq.s32.totalorder %s21, 0
    %p107 = por %p105, %p106
    %s109 = sadd.s32 %s108, 1
    %p112 = scmp.eq.s32.totalorder %s15, 3
    %p113 = scmp.ne.s32.totalorder %s108, %s110
    %p114 = scmp.eq.s32.totalorder %s15, 0
    %p115 = por %p113, %p114
    %p116 = scmp.ne.s32.totalorder %s108, %s110
    %p117 = scmp.eq.s32.totalorder %s20, 3
    %p118 = por %p116, %p117
    %p119 = scmp.ne.s32.totalorder %s110, %s111
    %p120 = scmp.eq.s32.totalorder %s20, 0
    %p121 = por %p119, %p120
    %p122 = scmp.ne.s32.totalorder %s110, %s111
    %p123 = scmp.eq.s32.totalorder %s21, 3
    %p124 = por %p122, %p123
    %p126 = scmp.ne.s32.totalorder %s111, %s125
    %p127 = scmp.eq.s32.totalorder %s21, 0
    %p128 = por %p126, %p127
    %s130 = sadd.s32 %s129, 1
    %p133 = scmp.eq.s32.totalorder %s15, 3
    %p134 = scmp.ne.s32.totalorder %s129, %s131
    %p135 = scmp.eq.s32.totalorder %s15, 0
    %p136 = por %p134, %p135
    %p137 = scmp.ne.s32.totalorder %s129, %s131
    %p138 = scmp.eq.s32.totalorder %s20, 3
    %p139 = por %p137, %p138
    %p140 = scmp.ne.s32.totalorder %s131, %s132
    %p141 = scmp.eq.s32.totalorder %s20, 0
    %p142 = por %p140, %p141
    %p143 = scmp.ne.s32.totalorder %s131, %s132
    %p144 = scmp.eq.s32.totalorder %s21, 3
    %p145 = por %p143, %p144
    %p147 = scmp.ne.s32.totalorder %s132, %s146
    %p148 = scmp.eq.s32.totalorder %s21, 0
    %p149 = por %p147, %p148
    %s151 = sadd.s32 %s150, 1
    %p154 = scmp.eq.s32.totalorder %s15, 3
    %p155 = scmp.ne.s32.totalorder %s150, %s152
    %p156 = scmp.eq.s32.totalorder %s15, 0
    %p157 = por %p155, %p156
    %p158 = scmp.ne.s32.totalorder %s150, %s152
    %p159 = scmp.eq.s32.totalorder %s20, 3
    %p160 = por %p158, %p159
    %p161 = scmp.ne.s32.totalorder %s152, %s153
    %p162 = scmp.eq.s32.totalorder %s20, 0
    %p163 = por %p161, %p162
    %p164 = scmp.ne.s32.totalorder %s152, %s153
    %p165 = scmp.eq.s32.totalorder %s21, 3
    %p166 = por %p164, %p165
    %p168 = scmp.ne.s32.totalorder %s153, %s167
    %p169 = scmp.eq.s32.totalorder %s21, 0
    %p170 = por %p168, %p169
    %s172 = sadd.s32 %s171, 1
    %p175 = scmp.eq.s32.totalorder %s15, 3
    %p176 = scmp.ne.s32.totalorder %s171, %s173
    %p177 = scmp.eq.s32.totalorder %s15, 0
    %p178 = por %p176, %p177
    %p179 = scmp.ne.s32.totalorder %s171, %s173
    %p180 = scmp.eq.s32.totalorder %s20, 3
    %p181 = por %p179, %p180
    %p182 = scmp.ne.s32.totalorder %s173, %s174
    %p183 = scmp.eq.s32.totalorder %s20, 0
    %p184 = por %p182, %p183
    %p185 = scmp.ne.s32.totalorder %s173, %s174
    %p186 = scmp.eq.s32.totalorder %s21, 3
    %p187 = por %p185, %p186
    %p189 = scmp.ne.s32.totalorder %s174, %s188
    %p190 = scmp.eq.s32.totalorder %s21, 0
    %p191 = por %p189, %p190
    %s193 = sadd.s32 %s192, 1
    %p196 = scmp.eq.s32.totalorder %s15, 3
    %p197 = scmp.ne.s32.totalorder %s192, %s194
    %p198 = scmp.eq.s32.totalorder %s15, 0
    %p199 = por %p197, %p198
    %p200 = scmp.ne.s32.totalorder %s192, %s194
    %p201 = scmp.eq.s32.totalorder %s20, 3
    %p202 = por %p200, %p201
    %p203 = scmp.ne.s32.totalorder %s194, %s195
    %p204 = scmp.eq.s32.totalorder %s20, 0
    %p205 = por %p203, %p204
    %p206 = scmp.ne.s32.totalorder %s194, %s195
    %p207 = scmp.eq.s32.totalorder %s21, 3
    %p208 = por %p206, %p207
    %p210 = scmp.ne.s32.totalorder %s195, %s209
    %p211 = scmp.eq.s32.totalorder %s21, 0
    %p212 = por %p210, %p211
    %s214 = sadd.s32 %s213, 1
    %p217 = scmp.eq.s32.totalorder %s15, 3
    %p218 = scmp.ne.s32.totalorder %s213, %s215
    %p219 = scmp.eq.s32.totalorder %s15, 0
    %p220 = por %p218, %p219
    %p221 = scmp.ne.s32.totalorder %s213, %s215
    %p222 = scmp.eq.s32.totalorder %s20, 3
    %p223 = por %p221, %p222
    %p224 = scmp.ne.s32.totalorder %s215, %s216
    %p225 = scmp.eq.s32.totalorder %s20, 0
    %p226 = por %p224, %p225
    %p227 = scmp.ne.s32.totalorder %s215, %s216
    %p228 = scmp.eq.s32.totalorder %s21, 3
    %p229 = por %p227, %p228
    %p231 = scmp.ne.s32.totalorder %s216, %s230
    %p232 = scmp.eq.s32.totalorder %s21, 0
    %p233 = por %p231, %p232
    %s234 = ssub.s32 %s22, %s34
    %s235 = ssub.s32 %s23, %s30
    %s236 = sor.u32 %s234, %s235
    %p237 = scmp.eq.s32.totalorder %s236, 0
    %s239 = sadd.s32 %s238, 1
    %s240 = scalar_select %p237, %s238, %s239
    %p243 = pneg %p237
    %p244 = scmp.eq.s32.totalorder %s15, 3
    %p245 = por %p243, %p244
    %p246 = scmp.ne.s32.totalorder %s238, %s241
    %p247 = scmp.eq.s32.totalorder %s15, 0
    %p248 = por %p246, %p247
    %p249 = scmp.ne.s32.totalorder %s238, %s241
    %p250 = scmp.eq.s32.totalorder %s20, 3
    %p251 = por %p249, %p250
    %p252 = scmp.ne.s32.totalorder %s241, %s242
    %p253 = scmp.eq.s32.totalorder %s20, 0
    %p254 = por %p252, %p253
    %p255 = scmp.ne.s32.totalorder %s241, %s242
    %p256 = scmp.eq.s32.totalorder %s21, 3
    %p257 = por %p255, %p256
    %p259 = scmp.ne.s32.totalorder %s242, %s258
    %p260 = scmp.eq.s32.totalorder %s21, 0
    %p261 = por %p259, %p260
    %p262 = scmp.le.s32.totalorder 1, %s15
    %p263 = scmp.lt.s32.totalorder %s15, 5
    %p264 = pnand %p262, %p263
    %p265 = pneg %p264
    // Predicated region
    $region9: #{aspp_forward.1} parent=5 // pred_check
      _
    $region10: #{aspp_forward.1} parent=5 // pred_check_branch
      %267 = sbr.rel (%p264) target = $region12
    $region11: #{aspp_forward.1} parent=5 // pred_region
      %s268 = ssub.s32 %s15, 1
      // Predicated region
      $region13: #{aspp_forward.1} parent=11 // pred_check
        %p269 = pneg %p100
      $region14: #{aspp_forward.1} parent=11 // pred_check_branch
        %271 = sbr.rel (%p269) target = $region16
      $region15: #{aspp_forward.1} parent=11 // pred_region
        _
      $region16: #{aspp_forward.1} parent=11 // pred_fallthru
        _
      // Predicated region
      $region17: #{aspp_forward.1} parent=11 // pred_check
        %p272 = pneg %p121
      $region18: #{aspp_forward.1} parent=11 // pred_check_branch
        %274 = sbr.rel (%p272) target = $region20
      $region19: #{aspp_forward.1} parent=11 // pred_region
        _
      $region20: #{aspp_forward.1} parent=11 // pred_fallthru
        _
      // Predicated region
      $region21: #{aspp_forward.1} parent=11 // pred_check
        %p275 = pneg %p142
      $region22: #{aspp_forward.1} parent=11 // pred_check_branch
        %277 = sbr.rel (%p275) target = $region24
      $region23: #{aspp_forward.1} parent=11 // pred_region
        _
      $region24: #{aspp_forward.1} parent=11 // pred_fallthru
        _
      // Predicated region
      $region25: #{aspp_forward.1} parent=11 // pred_check
        %p278 = pneg %p163
      $region26: #{aspp_forward.1} parent=11 // pred_check_branch
        %280 = sbr.rel (%p278) target = $region28
      $region27: #{aspp_forward.1} parent=11 // pred_region
        _
      $region28: #{aspp_forward.1} parent=11 // pred_fallthru
        _
      // Predicated region
      $region29: #{aspp_forward.1} parent=11 // pred_check
        %p281 = pneg %p184
      $region30: #{aspp_forward.1} parent=11 // pred_check_branch
        %283 = sbr.rel (%p281) target = $region32
      $region31: #{aspp_forward.1} parent=11 // pred_region
        _
      $region32: #{aspp_forward.1} parent=11 // pred_fallthru
        _
      // Predicated region
      $region33: #{aspp_forward.1} parent=11 // pred_check
        %p284 = pneg %p205
      $region34: #{aspp_forward.1} parent=11 // pred_check_branch
        %286 = sbr.rel (%p284) target = $region36
      $region35: #{aspp_forward.1} parent=11 // pred_region
        _
      $region36: #{aspp_forward.1} parent=11 // pred_fallthru
        _
      // Predicated region
      $region37: #{aspp_forward.1} parent=11 // pred_check
        %p287 = pneg %p226
      $region38: #{aspp_forward.1} parent=11 // pred_check_branch
        %289 = sbr.rel (%p287) target = $region40
      $region39: #{aspp_forward.1} parent=11 // pred_region
        _
      $region40: #{aspp_forward.1} parent=11 // pred_fallthru
        _
    $region12: #{aspp_forward.1} parent=5 // pred_fallthru
      _
    %p290 = scmp.lt.s32.totalorder %s15, 4
    // Predicated region
    $region41: #{aspp_forward.1} parent=5 // pred_check
      %p291 = pneg %p290
    $region42: #{aspp_forward.1} parent=5 // pred_check_branch
      %293 = sbr.rel (%p291) target = $region44
    $region43: #{aspp_forward.1} parent=5 // pred_region
      // Predicated region
      $region45: #{aspp_forward.1} parent=43 // pred_check
        %p294 = pneg %p47
      $region46: #{aspp_forward.1} parent=43 // pred_check_branch
        %296 = sbr.rel (%p294) target = $region48
      $region47: #{aspp_forward.1} parent=43 // pred_region
        %p297 = scmp.lt.s32.totalorder %s22, 1
        %s298 = scalar_select %p297, %s22, 1
        %s299 = smul.addr %s298, 364
        %s300 = smul.addr %s299, 8
        %s301 = scalar_lea.vmem %s0, %s300
      $region48: #{aspp_forward.1} parent=43 // pred_fallthru
        _
      // Predicated region
      $region49: #{aspp_forward.1} parent=43 // pred_check
        %p302 = pneg %p73
      $region50: #{aspp_forward.1} parent=43 // pred_check_branch
        %304 = sbr.rel (%p302) target = $region52
      $region51: #{aspp_forward.1} parent=43 // pred_region
        %p305 = scmp.lt.s32.totalorder %s22, 1
        %s306 = scalar_select %p305, %s22, 1
        %s307 = scalar_lea.vmem %s1, %s306
      $region52: #{aspp_forward.1} parent=43 // pred_fallthru
        _
    $region44: #{aspp_forward.1} parent=5 // pred_fallthru
      _
    %p308 = scmp.le.s32.totalorder 1, %s15
    %p309 = scmp.lt.s32.totalorder %s15, 5
    %p310 = pnand %p308, %p309
    %p311 = pneg %p310
    // Predicated region
    $region53: #{aspp_forward.1} parent=5 // pred_check
      _
    $region54: #{aspp_forward.1} parent=5 // pred_check_branch
      %313 = sbr.rel (%p310) target = $region56
    $region55: #{aspp_forward.1} parent=5 // pred_region
      %s314 = ssub.s32 %s15, 1
      %p315 = scmp.lt.s32.totalorder %s24, 1
      %s316 = scalar_select %p315, %s24, 1
      %s317 = smul.addr %s316, 364
      %s318 = smul.addr %s317, 8
      %s319 = scalar_lea.vmem %s0, %s318
      %p320 = pneg %p53
      %p321 = pneg %p50
      %p322 = scmp.lt.s32.totalorder %s24, 1
      %s323 = scalar_select %p322, %s24, 1
      %s324 = scalar_lea.vmem %s1, %s323
      %p325 = pneg %p79
      %p326 = pneg %p76
      %p327 = pneg %p100
      %p328 = pneg %p97
      %p329 = pneg %p121
      %p330 = pneg %p118
      %p331 = pneg %p142
      %p332 = pneg %p139
      %p333 = pneg %p163
      %p334 = pneg %p160
      %p335 = pneg %p184
      %p336 = pneg %p181
      %p337 = pneg %p205
      %p338 = pneg %p202
      %p339 = pneg %p226
      %p340 = pneg %p223
      %p341 = pneg %p254
      %p342 = pneg %p251
      %s343 = smul.u32 16, %s25
      %p344 = scmp.lt.s32.totalorder %s24, 1
      %s345 = scalar_select %p344, %s24, 1
      %p346 = scmp.lt.s32.totalorder %s343, 31
      %s347 = scalar_select %p346, %s343, 31
      %s348 = smul.addr %s345, 32
      %s349 = sadd.s32 %s347, %s348
      %s350 = smul.addr %s349, 8
      %s351 = scalar_lea.vmem %s9, %s350
      %p352 = scmp.lt.s32.totalorder %s24, 1
      %s353 = scalar_select %p352, %s24, 1
      %s354 = smul.addr %s353, 364
      %s355 = smul.addr %s354, 8
      %s356 = scalar_lea.vmem %s0, %s355
      %p357 = scmp.lt.s32.totalorder %s24, 1
      %s358 = scalar_select %p357, %s24, 1
      %s359 = scalar_lea.vmem %s1, %s358
      %s360 = smul.u32 16, %s25
      %p361 = scmp.lt.s32.totalorder %s24, 1
      %s362 = scalar_select %p361, %s24, 1
      %p363 = scmp.lt.s32.totalorder %s360, 31
      %s364 = scalar_select %p363, %s360, 31
      %s365 = smul.addr %s362, 32
      %s366 = sadd.s32 %s364, %s365
      %s367 = smul.addr %s366, 8
      %s368 = scalar_lea.vmem %s9, %s367
      %s369 = smul.u32 16, %s25
      %s370 = smul.u32 %s25, 8
      %s371 = sadd.s32 %s370, 18
      %s372 = smul.u32 %s371, 56
      %s373 = scalar_lea.vmem %s356, %s372
      %v374 = vld [vmem:[%s373 + $0x12] sm:$0xff]
      %v375 = vld [vmem:[%s373 + $0x1a] sm:$0xff]
      %v376 = vld [vmem:[%s373 + $0x4a] sm:$0xff]
      %v377 = vld [vmem:[%s373 + $0x52] sm:$0xff]
      %v378 = vld [vmem:[%s373 + $0x82] sm:$0xff]
      %v379 = vld [vmem:[%s373 + $0x8a] sm:$0xff]
      %v380 = vld [vmem:[%s373 + $0xba] sm:$0xff]
      %v381 = vld [vmem:[%s373 + $0xc2] sm:$0xff]
      %v382 = vld [vmem:[%s373 + $0xf2] sm:$0xff]
      %v383 = vld [vmem:[%s373 + $0xfa] sm:$0xff]
      %v384 = vld [vmem:[%s373 + $0x12a] sm:$0xff]
      %v385 = vld [vmem:[%s373 + $0x132] sm:$0xff]
      %v386 = vld [vmem:[%s373 + $0x162] sm:$0xff]
      %v387 = vld [vmem:[%s373 + $0x16a] sm:$0xff]
      %v388 = vld [vmem:[%s373 + $0x19a] sm:$0xff]
      %v389 = vld [vmem:[%s373 + $0x1a2] sm:$0xff]
      %v390 = vld [vmem:[%s3] sm:$0xff]
      %v391 = vld [vmem:[%s7] sm:$0x1]
      %v392 = vlaneseq
      %v393 = vshrl.u32 %v392, 7
      %v394 = vsub.s32 0, %v393
      %v395 = vrot.slane %v391, %v394
      %vm396 = vcmask 64512
      %v398 = vsel %vm396, %v374, 0
      %v401 = vsel %vm396, %v375, 0
      %v404 = vsel %vm396, %v376, 0
      %v407 = vsel %vm396, %v377, 0
      %v410 = vsel %vm396, %v378, 0
      %v413 = vsel %vm396, %v379, 0
      %v416 = vsel %vm396, %v380, 0
      %v419 = vsel %vm396, %v381, 0
      %v422 = vsel %vm396, %v382, 0
      %v425 = vsel %vm396, %v383, 0
      %v428 = vsel %vm396, %v384, 0
      %v431 = vsel %vm396, %v385, 0
      %v434 = vsel %vm396, %v386, 0
      %v437 = vsel %vm396, %v387, 0
      %v440 = vsel %vm396, %v388, 0
      %v443 = vsel %vm396, %v389, 0
      %445 = vmatprep.subr.mxu0 0.0
      %446 = vmatpush1.msra.mxu0 %v390
      %447 = vmatprep.subr.mxu0 0.0
      %448 = vmatpush1.msra.mxu0 0.0
      %449 = vmatprep.subr.mxu0 0.0
      %450 = vmatpush1.msra.mxu0 0.0
      %451 = vmatprep.subr.mxu0 0.0
      %452 = vmatpush1.msra.mxu0 0.0
      %453 = vmatprep.subr.mxu0 0.0
      %454 = vmatpush1.msra.mxu0 0.0
      %455 = vmatprep.subr.mxu0 0.0
      %456 = vmatpush1.msra.mxu0 0.0
      %457 = vmatprep.subr.mxu0 0.0
      %458 = vmatpush1.msra.mxu0 0.0
      %459 = vmatprep.subr.mxu0 0.0
      %460 = vmatpush1.msra.mxu0 0.0
      %461 = vmatprep.subr.mxu0 0.0
      %462 = vmatpush1.msra.mxu0 0.0
      %463 = vmatprep.subr.mxu0 0.0
      %464 = vmatpush1.msra.mxu0 0.0
      %465 = vmatprep.subr.mxu0 0.0
      %466 = vmatpush1.msra.mxu0 0.0
      %467 = vmatprep.subr.mxu0 0.0
      %468 = vmatpush1.msra.mxu0 0.0
      %469 = vmatprep.subr.mxu0 0.0
      %470 = vmatpush1.msra.mxu0 0.0
      %471 = vmatprep.subr.mxu0 0.0
      %472 = vmatpush1.msra.mxu0 0.0
      %473 = vmatprep.subr.mxu0 0.0
      %474 = vmatpush1.msra.mxu0 0.0
      %475 = vmatprep.subr.mxu0 0.0
      %476 = vmatpush1.msra.mxu0 0.0
      %477 = vmatprep.subr.mxu0 0.0
      %478 = vmatpush1.msra.mxu0 0.0
      %479 = vmatprep.subr.mxu0 0.0
      %480 = vmatpush1.msra.mxu0 0.0
      %481 = vmatprep.subr.mxu0 0.0
      %482 = vmatpush1.msra.mxu0 0.0
      %483 = vmatprep.subr.mxu0 0.0
      %484 = vmatpush1.msra.mxu0 0.0
      %485 = vmatprep.subr.mxu0 0.0
      %486 = vmatpush1.msra.mxu0 0.0
      %487 = vmatprep.subr.mxu0 0.0
      %488 = vmatpush1.msra.mxu0 0.0
      %489 = vmatprep.subr.mxu0 0.0
      %490 = vmatpush1.msra.mxu0 0.0
      %491 = vmatprep.subr.mxu0 0.0
      %492 = vmatpush1.msra.mxu0 0.0
      %493 = vmatprep.subr.mxu0 0.0
      %494 = vmatpush1.msra.mxu0 0.0
      %495 = vmatprep.subr.mxu0 0.0
      %496 = vmatpush1.msra.mxu0 0.0
      %497 = vmatprep.subr.mxu0 0.0
      %498 = vmatpush1.msra.mxu0 0.0
      %499 = vmatprep.subr.mxu0 0.0
      %500 = vmatpush1.msra.mxu0 0.0
      %501 = vmatprep.subr.mxu0 0.0
      %502 = vmatpush1.msra.mxu0 0.0
      %503 = vmatprep.subr.mxu0 0.0
      %504 = vmatpush1.msra.mxu0 0.0
      %505 = vmatprep.subr.mxu0 0.0
      %506 = vmatpush1.msra.mxu0 0.0
      %507 = vmatprep.subr.mxu0 0.0
      %508 = vmatpush1.msra.mxu0 0.0
      %509 = vmatprep.mubr.f32.mxu0 0.0
      %510 = vmatmul.mubr.f32.gmra.mrb[0].mxu0 %v398
      %v511 = vpop.f32.mrb[0].mxu0
      %v512 = vadd.f32 %v395, %v511
      %v513 = vpop.f32.mrb[0].mxu0
      %514 = vmatprep.mubr.f32.mxu0 0.0
      %515 = vmatmul.mubr.f32.gmra.mrb[0].mxu0 %v401
      %v516 = vpop.f32.mrb[0].mxu0
      %v517 = vadd.f32 %v395, %v516
      %v518 = vpop.f32.mrb[0].mxu0
      %519 = vmatprep.mubr.f32.mxu0 0.0
      %520 = vmatmul.mubr.f32.gmra.mrb[0].mxu0 %v404
      %v521 = vpop.f32.mrb[0].mxu0
      %v522 = vadd.f32 %v395, %v521
      %v523 = vpop.f32.mrb[0].mxu0
      %524 = vmatprep.mubr.f32.mxu0 0.0
      %525 = vmatmul.mubr.f32.gmra.mrb[0].mxu0 %v407
      %v526 = vpop.f32.mrb[0].mxu0
      %v527 = vadd.f32 %v395, %v526
      %v528 = vpop.f32.mrb[0].mxu0
      %529 = vmatprep.mubr.f32.mxu0 0.0
      %530 = vmatmul.mubr.f32.gmra.mrb[0].mxu0 %v410
      %v531 = vpop.f32.mrb[0].mxu0
      %v532 = vadd.f32 %v395, %v531
      %v533 = vpop.f32.mrb[0].mxu0
      %534 = vmatprep.mubr.f32.mxu0 0.0
      %535 = vmatmul.mubr.f32.gmra.mrb[0].mxu0 %v413
      %v536 = vpop.f32.mrb[0].mxu0
      %v537 = vadd.f32 %v395, %v536
      %v538 = vpop.f32.mrb[0].mxu0
      %539 = vmatprep.mubr.f32.mxu0 0.0
      %540 = vmatmul.mubr.f32.gmra.mrb[0].mxu0 %v416
      %v541 = vpop.f32.mrb[0].mxu0
      %v542 = vadd.f32 %v395, %v541
      %v543 = vpop.f32.mrb[0].mxu0
      %544 = vmatprep.mubr.f32.mxu0 0.0
      %545 = vmatmul.mubr.f32.gmra.mrb[0].mxu0 %v419
      %v546 = vpop.f32.mrb[0].mxu0
      %v547 = vadd.f32 %v395, %v546
      %v548 = vpop.f32.mrb[0].mxu0
      %549 = vmatprep.mubr.f32.mxu0 0.0
      %550 = vmatmul.mubr.f32.gmra.mrb[0].mxu0 %v422
      %v551 = vpop.f32.mrb[0].mxu0
      %v552 = vadd.f32 %v395, %v551
      %v553 = vpop.f32.mrb[0].mxu0
      %554 = vmatprep.mubr.f32.mxu0 0.0
      %555 = vmatmul.mubr.f32.gmra.mrb[0].mxu0 %v425
      %v556 = vpop.f32.mrb[0].mxu0
      %v557 = vadd.f32 %v395, %v556
      %v558 = vpop.f32.mrb[0].mxu0
      %559 = vmatprep.mubr.f32.mxu0 0.0
      %560 = vmatmul.mubr.f32.gmra.mrb[0].mxu0 %v428
      %v561 = vpop.f32.mrb[0].mxu0
      %v562 = vadd.f32 %v395, %v561
      %v563 = vpop.f32.mrb[0].mxu0
      %564 = vmatprep.mubr.f32.mxu0 0.0
      %565 = vmatmul.mubr.f32.gmra.mrb[0].mxu0 %v431
      %v566 = vpop.f32.mrb[0].mxu0
      %v567 = vadd.f32 %v395, %v566
      %v568 = vpop.f32.mrb[0].mxu0
      %569 = vmatprep.mubr.f32.mxu0 0.0
      %570 = vmatmul.mubr.f32.gmra.mrb[0].mxu0 %v434
      %v571 = vpop.f32.mrb[0].mxu0
      %v572 = vadd.f32 %v395, %v571
      %v573 = vpop.f32.mrb[0].mxu0
      %574 = vmatprep.mubr.f32.mxu0 0.0
      %575 = vmatmul.mubr.f32.gmra.mrb[0].mxu0 %v437
      %v576 = vpop.f32.mrb[0].mxu0
      %v577 = vadd.f32 %v395, %v576
      %v578 = vpop.f32.mrb[0].mxu0
      %579 = vmatprep.mubr.f32.mxu0 0.0
      %580 = vmatmul.mubr.f32.gmra.mrb[0].mxu0 %v440
      %v581 = vpop.f32.mrb[0].mxu0
      %v582 = vadd.f32 %v395, %v581
      %v583 = vpop.f32.mrb[0].mxu0
      %584 = vmatprep.mubr.f32.mxu0 0.0
      %585 = vmatmul.mubr.f32.gmra.mrb[0].mxu0 %v443
      %v586 = vpop.f32.mrb[0].mxu0
      %v587 = vadd.f32 %v395, %v586
      %v588 = vpop.f32.mrb[0].mxu0
      %589 = vdwg.mxu0
      %v590 = vmax.f32 %v512, 0.0
      %v591 = vmax.f32 %v517, 0.0
      %v592 = vmax.f32 %v522, 0.0
      %v593 = vmax.f32 %v527, 0.0
      %v594 = vmax.f32 %v532, 0.0
      %v595 = vmax.f32 %v537, 0.0
      %v596 = vmax.f32 %v542, 0.0
      %v597 = vmax.f32 %v547, 0.0
      %v598 = vmax.f32 %v552, 0.0
      %v599 = vmax.f32 %v557, 0.0
      %v600 = vmax.f32 %v562, 0.0
      %v601 = vmax.f32 %v567, 0.0
      %v602 = vmax.f32 %v572, 0.0
      %v603 = vmax.f32 %v577, 0.0
      %v604 = vmax.f32 %v582, 0.0
      %v605 = vmax.f32 %v587, 0.0
      %v606 = vld [vmem:[%s6] sm:$0xff]
      %v607 = vld [vmem:[%s6 + $0x8] sm:$0xff]
      %v608 = vld [vmem:[%s6 + $0x10] sm:$0xff]
      %v609 = vld [vmem:[%s6 + $0x18] sm:$0xff]
      %v610 = vld [vmem:[%s6 + $0x20] sm:$0xff]
      %v611 = vld [vmem:[%s6 + $0x28] sm:$0xff]
      %v612 = vld [vmem:[%s6 + $0x30] sm:$0xff]
      %v613 = vld [vmem:[%s6 + $0x38] sm:$0xff]
      %v614 = vld [vmem:[%s6 + $0x40] sm:$0xff]
      %v615 = vld [vmem:[%s6 + $0x48] sm:$0xff]
      %v616 = vld [vmem:[%s6 + $0x50] sm:$0xff]
      %v617 = vld [vmem:[%s6 + $0x58] sm:$0xff]
      %v618 = vld [vmem:[%s6 + $0x60] sm:$0xff]
      %v619 = vld [vmem:[%s6 + $0x68] sm:$0xff]
      %v620 = vld [vmem:[%s6 + $0x70] sm:$0xff]
      %v621 = vld [vmem:[%s6 + $0x78] sm:$0xff]
      %s622 = sadd.s32 %s370, 12
      %s623 = smul.u32 %s622, 56
      %s624 = scalar_lea.vmem %s356, %s623
      %v625 = vld [vmem:[%s624 + $0xc] sm:$0xff]
      %v626 = vld [vmem:[%s624 + $0x14] sm:$0xff]
      %v627 = vld [vmem:[%s624 + $0x44] sm:$0xff]
      %v628 = vld [vmem:[%s624 + $0x4c] sm:$0xff]
      %v629 = vld [vmem:[%s624 + $0x7c] sm:$0xff]
      %v630 = vld [vmem:[%s624 + $0x84] sm:$0xff]
      %v631 = vld [vmem:[%s624 + $0xb4] sm:$0xff]
      %v632 = vld [vmem:[%s624 + $0xbc] sm:$0xff]
      %v633 = vld [vmem:[%s624 + $0xec] sm:$0xff]
      %v634 = vld [vmem:[%s624 + $0xf4] sm:$0xff]
      %v635 = vld [vmem:[%s624 + $0x124] sm:$0xff]
      %v636 = vld [vmem:[%s624 + $0x12c] sm:$0xff]
      %v637 = vld [vmem:[%s624 + $0x15c] sm:$0xff]
      %v638 = vld [vmem:[%s624 + $0x164] sm:$0xff]
      %v639 = vld [vmem:[%s624 + $0x194] sm:$0xff]
      %v640 = vld [vmem:[%s624 + $0x19c] sm:$0xff]
      %v641 = vld [vmem:[%s624 + $0x1cc] sm:$0xff]
      %v642 = vld [vmem:[%s624 + $0x1d4] sm:$0xff]
      %v643 = vld [vmem:[%s624 + $0x204] sm:$0xff]
      %v644 = vld [vmem:[%s624 + $0x20c] sm:$0xff]
      %v645 = vld [vmem:[%s624 + $0x23c] sm:$0xff]
      %v646 = vld [vmem:[%s624 + $0x244] sm:$0xff]
      %v647 = vld [vmem:[%s624 + $0x274] sm:$0xff]
      %v648 = vld [vmem:[%s624 + $0x27c] sm:$0xff]
      %v649 = vld [vmem:[%s624 + $0x2ac] sm:$0xff]
      %v650 = vld [vmem:[%s624 + $0x2b4] sm:$0xff]
      %v651 = vld [vmem:[%s624 + $0x2e4] sm:$0xff]
      %v652 = vld [vmem:[%s624 + $0x2ec] sm:$0xff]
      %v653 = vld [vmem:[%s624 + $0x31c] sm:$0xff]
      %v654 = vld [vmem:[%s624 + $0x324] sm:$0xff]
      %v655 = vld [vmem:[%s624 + $0x354] sm:$0xff]
      %v656 = vld [vmem:[%s624 + $0x35c] sm:$0xff]
      %v657 = vld [vmem:[%s624 + $0x38c] sm:$0xff]
      %v658 = vld [vmem:[%s624 + $0x394] sm:$0xff]
      %v659 = vld [vmem:[%s624 + $0x3c4] sm:$0xff]
      %v660 = vld [vmem:[%s624 + $0x3cc] sm:$0xff]
      %v661 = vld [vmem:[%s624 + $0x3fc] sm:$0xff]
      %v662 = vld [vmem:[%s624 + $0x404] sm:$0xff]
      %v663 = vld [vmem:[%s624 + $0x434] sm:$0xff]
      %v664 = vld [vmem:[%s624 + $0x43c] sm:$0xff]
      %v665 = vld [vmem:[%s2] sm:$0x1]
      %v666 = vlaneseq
      %v667 = vshrl.u32 %v666, 7
      %v668 = vsub.s32 0, %v667
      %v669 = vrot.slane %v665, %v668
      %v670 = vmul.f32 %v669, %v625
      %v671 = vmul.f32 %v669, %v626
      %v672 = vmul.f32 %v669, %v627
      %v673 = vmul.f32 %v669, %v628
      %v674 = vmul.f32 %v669, %v629
      %v675 = vmul.f32 %v669, %v630
      %v676 = vmul.f32 %v669, %v631
      %v677 = vmul.f32 %v669, %v632
      %v678 = vmul.f32 %v669, %v633
      %v679 = vmul.f32 %v669, %v634
      %v680 = vmul.f32 %v669, %v635
      %v681 = vmul.f32 %v669, %v636
      %v682 = vmul.f32 %v669, %v637
      %v683 = vmul.f32 %v669, %v638
      %v684 = vmul.f32 %v669, %v639
      %v685 = vmul.f32 %v669, %v640
      %v686 = vld [vmem:[%s2 + $0x3] sm:$0x1]
      %v687 = vlaneseq
      %v688 = vshrl.u32 %v687, 7
      %v689 = vsub.s32 0, %v688
      %v690 = vrot.slane %v686, %v689
      %v691 = vmul.f32 %v690, %v637
      %v692 = vmul.f32 %v690, %v638
      %v693 = vmul.f32 %v690, %v639
      %v694 = vmul.f32 %v690, %v640
      %v695 = vmul.f32 %v690, %v641
      %v696 = vmul.f32 %v690, %v642
      %v697 = vmul.f32 %v690, %v643
      %v698 = vmul.f32 %v690, %v644
      %v699 = vmul.f32 %v690, %v645
      %v700 = vmul.f32 %v690, %v646
      %v701 = vmul.f32 %v690, %v647
      %v702 = vmul.f32 %v690, %v648
      %v703 = vmul.f32 %v690, %v649
      %v704 = vmul.f32 %v690, %v650
      %v705 = vmul.f32 %v690, %v651
      %v706 = vmul.f32 %v690, %v652
      %v707 = vadd.f32 %v670, %v691
      %v708 = vadd.f32 %v671, %v692
      %v709 = vadd.f32 %v672, %v693
      %v710 = vadd.f32 %v673, %v694
      %v711 = vadd.f32 %v674, %v695
      %v712 = vadd.f32 %v675, %v696
      %v713 = vadd.f32 %v676, %v697
      %v714 = vadd.f32 %v677, %v698
      %v715 = vadd.f32 %v678, %v699
      %v716 = vadd.f32 %v679, %v700
      %v717 = vadd.f32 %v680, %v701
      %v718 = vadd.f32 %v681, %v702
      %v719 = vadd.f32 %v682, %v703
      %v720 = vadd.f32 %v683, %v704
      %v721 = vadd.f32 %v684, %v705
      %v722 = vadd.f32 %v685, %v706
      %v723 = vld [vmem:[%s2 + $0x6] sm:$0x1]
      %v724 = vlaneseq
      %v725 = vshrl.u32 %v724, 7
      %v726 = vsub.s32 0, %v725
      %v727 = vrot.slane %v723, %v726
      %v728 = vmul.f32 %v727, %v649
      %v729 = vmul.f32 %v727, %v650
      %v730 = vmul.f32 %v727, %v651
      %v731 = vmul.f32 %v727, %v652
      %v732 = vmul.f32 %v727, %v653
      %v733 = vmul.f32 %v727, %v654
      %v734 = vmul.f32 %v727, %v655
      %v735 = vmul.f32 %v727, %v656
      %v736 = vmul.f32 %v727, %v657
      %v737 = vmul.f32 %v727, %v658
      %v738 = vmul.f32 %v727, %v659
      %v739 = vmul.f32 %v727, %v660
      %v740 = vmul.f32 %v727, %v661
      %v741 = vmul.f32 %v727, %v662
      %v742 = vmul.f32 %v727, %v663
      %v743 = vmul.f32 %v727, %v664
      %v744 = vadd.f32 %v707, %v728
      %v745 = vadd.f32 %v708, %v729
      %v746 = vadd.f32 %v709, %v730
      %v747 = vadd.f32 %v710, %v731
      %v748 = vadd.f32 %v711, %v732
      %v749 = vadd.f32 %v712, %v733
      %v750 = vadd.f32 %v713, %v734
      %v751 = vadd.f32 %v714, %v735
      %v752 = vadd.f32 %v715, %v736
      %v753 = vadd.f32 %v716, %v737
      %v754 = vadd.f32 %v717, %v738
      %v755 = vadd.f32 %v718, %v739
      %v756 = vadd.f32 %v719, %v740
      %v757 = vadd.f32 %v720, %v741
      %v758 = vadd.f32 %v721, %v742
      %v759 = vadd.f32 %v722, %v743
      %v760 = vld [vmem:[%s624 + $0x12] sm:$0xff]
      %v761 = vld [vmem:[%s624 + $0x1a] sm:$0xff]
      %v762 = vld [vmem:[%s624 + $0x4a] sm:$0xff]
      %v763 = vld [vmem:[%s624 + $0x52] sm:$0xff]
      %v764 = vld [vmem:[%s624 + $0x82] sm:$0xff]
      %v765 = vld [vmem:[%s624 + $0x8a] sm:$0xff]
      %v766 = vld [vmem:[%s624 + $0xba] sm:$0xff]
      %v767 = vld [vmem:[%s624 + $0xc2] sm:$0xff]
      %v768 = vld [vmem:[%s624 + $0xf2] sm:$0xff]
      %v769 = vld [vmem:[%s624 + $0xfa] sm:$0xff]
      %v770 = vld [vmem:[%s624 + $0x12a] sm:$0xff]
      %v771 = vld [vmem:[%s624 + $0x132] sm:$0xff]
      %v772 = vld [vmem:[%s624 + $0x162] sm:$0xff]
      %v773 = vld [vmem:[%s624 + $0x16a] sm:$0xff]
      %v774 = vld [vmem:[%s624 + $0x19a] sm:$0xff]
      %v775 = vld [vmem:[%s624 + $0x1a2] sm:$0xff]
      %v776 = vld [vmem:[%s624 + $0x1d2] sm:$0xff]
      %v777 = vld [vmem:[%s624 + $0x1da] sm:$0xff]
      %v778 = vld [vmem:[%s624 + $0x20a] sm:$0xff]
      %v779 = vld [vmem:[%s624 + $0x212] sm:$0xff]
      %v780 = vld [vmem:[%s624 + $0x242] sm:$0xff]
      %v781 = vld [vmem:[%s624 + $0x24a] sm:$0xff]
      %v782 = vld [vmem:[%s624 + $0x27a] sm:$0xff]
      %v783 = vld [vmem:[%s624 + $0x282] sm:$0xff]
      %v784 = vld [vmem:[%s624 + $0x2b2] sm:$0xff]
      %v785 = vld [vmem:[%s624 + $0x2ba] sm:$0xff]
      %v786 = vld [vmem:[%s624 + $0x2ea] sm:$0xff]
      %v787 = vld [vmem:[%s624 + $0x2f2] sm:$0xff]
      %v788 = vld [vmem:[%s624 + $0x322] sm:$0xff]
      %v789 = vld [vmem:[%s624 + $0x32a] sm:$0xff]
      %v790 = vld [vmem:[%s624 + $0x35a] sm:$0xff]
      %v791 = vld [vmem:[%s624 + $0x362] sm:$0xff]
      %v792 = vld [vmem:[%s624 + $0x392] sm:$0xff]
      %v793 = vld [vmem:[%s624 + $0x39a] sm:$0xff]
      %v794 = vld [vmem:[%s624 + $0x3ca] sm:$0xff]
      %v795 = vld [vmem:[%s624 + $0x3d2] sm:$0xff]
      %v796 = vld [vmem:[%s624 + $0x402] sm:$0xff]
      %v797 = vld [vmem:[%s624 + $0x40a] sm:$0xff]
      %v798 = vld [vmem:[%s624 + $0x43a] sm:$0xff]
      %v799 = vld [vmem:[%s624 + $0x442] sm:$0xff]
      %v800 = vld [vmem:[%s2 + $0x1] sm:$0x1]
      %v801 = vlaneseq
      %v802 = vshrl.u32 %v801, 7
      %v803 = vsub.s32 0, %v802
      %v804 = vrot.slane %v800, %v803
      %v805 = vmul.f32 %v804, %v760
      %v806 = vmul.f32 %v804, %v761
      %v807 = vmul.f32 %v804, %v762
      %v808 = vmul.f32 %v804, %v763
      %v809 = vmul.f32 %v804, %v764
      %v810 = vmul.f32 %v804, %v765
      %v811 = vmul.f32 %v804, %v766
      %v812 = vmul.f32 %v804, %v767
      %v813 = vmul.f32 %v804, %v768
      %v814 = vmul.f32 %v804, %v769
      %v815 = vmul.f32 %v804, %v770
      %v816 = vmul.f32 %v804, %v771
      %v817 = vmul.f32 %v804, %v772
      %v818 = vmul.f32 %v804, %v773
      %v819 = vmul.f32 %v804, %v774
      %v820 = vmul.f32 %v804, %v775
      %v821 = vadd.f32 %v744, %v805
      %v822 = vadd.f32 %v745, %v806
      %v823 = vadd.f32 %v746, %v807
      %v824 = vadd.f32 %v747, %v808
      %v825 = vadd.f32 %v748, %v809
      %v826 = vadd.f32 %v749, %v810
      %v827 = vadd.f32 %v750, %v811
      %v828 = vadd.f32 %v751, %v812
      %v829 = vadd.f32 %v752, %v813
      %v830 = vadd.f32 %v753, %v814
      %v831 = vadd.f32 %v754, %v815
      %v832 = vadd.f32 %v755, %v816
      %v833 = vadd.f32 %v756, %v817
      %v834 = vadd.f32 %v757, %v818
      %v835 = vadd.f32 %v758, %v819
      %v836 = vadd.f32 %v759, %v820
      %v837 = vld [vmem:[%s2 + $0x4] sm:$0x1]
      %v838 = vlaneseq
      %v839 = vshrl.u32 %v838, 7
      %v840 = vsub.s32 0, %v839
      %v841 = vrot.slane %v837, %v840
      %v842 = vmul.f32 %v841, %v772
      %v843 = vmul.f32 %v841, %v773
      %v844 = vmul.f32 %v841, %v774
      %v845 = vmul.f32 %v841, %v775
      %v846 = vmul.f32 %v841, %v776
      %v847 = vmul.f32 %v841, %v777
      %v848 = vmul.f32 %v841, %v778
      %v849 = vmul.f32 %v841, %v779
      %v850 = vmul.f32 %v841, %v780
      %v851 = vmul.f32 %v841, %v781
      %v852 = vmul.f32 %v841, %v782
      %v853 = vmul.f32 %v841, %v783
      %v854 = vmul.f32 %v841, %v784
      %v855 = vmul.f32 %v841, %v785
      %v856 = vmul.f32 %v841, %v786
      %v857 = vmul.f32 %v841, %v787
      %v858 = vadd.f32 %v821, %v842
      %v859 = vadd.f32 %v822, %v843
      %v860 = vadd.f32 %v823, %v844
      %v861 = vadd.f32 %v824, %v845
      %v862 = vadd.f32 %v825, %v846
      %v863 = vadd.f32 %v826, %v847
      %v864 = vadd.f32 %v827, %v848
      %v865 = vadd.f32 %v828, %v849
      %v866 = vadd.f32 %v829, %v850
      %v867 = vadd.f32 %v830, %v851
      %v868 = vadd.f32 %v831, %v852
      %v869 = vadd.f32 %v832, %v853
      %v870 = vadd.f32 %v833, %v854
      %v871 = vadd.f32 %v834, %v855
      %v872 = vadd.f32 %v835, %v856
      %v873 = vadd.f32 %v836, %v857
      %v874 = vld [vmem:[%s2 + $0x7] sm:$0x1]
      %v875 = vlaneseq
      %v876 = vshrl.u32 %v875, 7
      %v877 = vsub.s32 0, %v876
      %v878 = vrot.slane %v874, %v877
      %v879 = vmul.f32 %v878, %v784
      %v880 = vmul.f32 %v878, %v785
      %v881 = vmul.f32 %v878, %v786
      %v882 = vmul.f32 %v878, %v787
      %v883 = vmul.f32 %v878, %v788
      %v884 = vmul.f32 %v878, %v789
      %v885 = vmul.f32 %v878, %v790
      %v886 = vmul.f32 %v878, %v791
      %v887 = vmul.f32 %v878, %v792
      %v888 = vmul.f32 %v878, %v793
      %v889 = vmul.f32 %v878, %v794
      %v890 = vmul.f32 %v878, %v795
      %v891 = vmul.f32 %v878, %v796
      %v892 = vmul.f32 %v878, %v797
      %v893 = vmul.f32 %v878, %v798
      %v894 = vmul.f32 %v878, %v799
      %v895 = vadd.f32 %v858, %v879
      %v896 = vadd.f32 %v859, %v880
      %v897 = vadd.f32 %v860, %v881
      %v898 = vadd.f32 %v861, %v882
      %v899 = vadd.f32 %v862, %v883
      %v900 = vadd.f32 %v863, %v884
      %v901 = vadd.f32 %v864, %v885
      %v902 = vadd.f32 %v865, %v886
      %v903 = vadd.f32 %v866, %v887
      %v904 = vadd.f32 %v867, %v888
      %v905 = vadd.f32 %v868, %v889
      %v906 = vadd.f32 %v869, %v890
      %v907 = vadd.f32 %v870, %v891
      %v908 = vadd.f32 %v871, %v892
      %v909 = vadd.f32 %v872, %v893
      %v910 = vadd.f32 %v873, %v894
      %v911 = vld [vmem:[%s624 + $0x18] sm:$0xff]
      %v912 = vld [vmem:[%s624 + $0x20] sm:$0xff]
      %v913 = vld [vmem:[%s624 + $0x50] sm:$0xff]
      %v914 = vld [vmem:[%s624 + $0x58] sm:$0xff]
      %v915 = vld [vmem:[%s624 + $0x88] sm:$0xff]
      %v916 = vld [vmem:[%s624 + $0x90] sm:$0xff]
      %v917 = vld [vmem:[%s624 + $0xc0] sm:$0xff]
      %v918 = vld [vmem:[%s624 + $0xc8] sm:$0xff]
      %v919 = vld [vmem:[%s624 + $0xf8] sm:$0xff]
      %v920 = vld [vmem:[%s624 + $0x100] sm:$0xff]
      %v921 = vld [vmem:[%s624 + $0x130] sm:$0xff]
      %v922 = vld [vmem:[%s624 + $0x138] sm:$0xff]
      %v923 = vld [vmem:[%s624 + $0x168] sm:$0xff]
      %v924 = vld [vmem:[%s624 + $0x170] sm:$0xff]
      %v925 = vld [vmem:[%s624 + $0x1a0] sm:$0xff]
      %v926 = vld [vmem:[%s624 + $0x1a8] sm:$0xff]
      %v927 = vld [vmem:[%s624 + $0x1d8] sm:$0xff]
      %v928 = vld [vmem:[%s624 + $0x1e0] sm:$0xff]
      %v929 = vld [vmem:[%s624 + $0x210] sm:$0xff]
      %v930 = vld [vmem:[%s624 + $0x218] sm:$0xff]
      %v931 = vld [vmem:[%s624 + $0x248] sm:$0xff]
      %v932 = vld [vmem:[%s624 + $0x250] sm:$0xff]
      %v933 = vld [vmem:[%s624 + $0x280] sm:$0xff]
      %v934 = vld [vmem:[%s624 + $0x288] sm:$0xff]
      %v935 = vld [vmem:[%s624 + $0x2b8] sm:$0xff]
      %v936 = vld [vmem:[%s624 + $0x2c0] sm:$0xff]
      %v937 = vld [vmem:[%s624 + $0x2f0] sm:$0xff]
      %v938 = vld [vmem:[%s624 + $0x2f8] sm:$0xff]
      %v939 = vld [vmem:[%s624 + $0x328] sm:$0xff]
      %v940 = vld [vmem:[%s624 + $0x330] sm:$0xff]
      %v941 = vld [vmem:[%s624 + $0x360] sm:$0xff]
      %v942 = vld [vmem:[%s624 + $0x368] sm:$0xff]
      %v943 = vld [vmem:[%s624 + $0x398] sm:$0xff]
      %v944 = vld [vmem:[%s624 + $0x3a0] sm:$0xff]
      %v945 = vld [vmem:[%s624 + $0x3d0] sm:$0xff]
      %v946 = vld [vmem:[%s624 + $0x3d8] sm:$0xff]
      %v947 = vld [vmem:[%s624 + $0x408] sm:$0xff]
      %v948 = vld [vmem:[%s624 + $0x410] sm:$0xff]
      %v949 = vld [vmem:[%s624 + $0x440] sm:$0xff]
      %v950 = vld [vmem:[%s624 + $0x448] sm:$0xff]
      %v951 = vld [vmem:[%s2 + $0x2] sm:$0x1]
      %v952 = vlaneseq
      %v953 = vshrl.u32 %v952, 7
      %v954 = vsub.s32 0, %v953
      %v955 = vrot.slane %v951, %v954
      %v956 = vmul.f32 %v955, %v911
      %v957 = vmul.f32 %v955, %v912
      %v958 = vmul.f32 %v955, %v913
      %v959 = vmul.f32 %v955, %v914
      %v960 = vmul.f32 %v955, %v915
      %v961 = vmul.f32 %v955, %v916
      %v962 = vmul.f32 %v955, %v917
      %v963 = vmul.f32 %v955, %v918
      %v964 = vmul.f32 %v955, %v919
      %v965 = vmul.f32 %v955, %v920
      %v966 = vmul.f32 %v955, %v921
      %v967 = vmul.f32 %v955, %v922
      %v968 = vmul.f32 %v955, %v923
      %v969 = vmul.f32 %v955, %v924
      %v970 = vmul.f32 %v955, %v925
      %v971 = vmul.f32 %v955, %v926
      %v972 = vadd.f32 %v895, %v956
      %v973 = vadd.f32 %v896, %v957
      %v974 = vadd.f32 %v897, %v958
      %v975 = vadd.f32 %v898, %v959
      %v976 = vadd.f32 %v899, %v960
      %v977 = vadd.f32 %v900, %v961
      %v978 = vadd.f32 %v901, %v962
      %v979 = vadd.f32 %v902, %v963
      %v980 = vadd.f32 %v903, %v964
      %v981 = vadd.f32 %v904, %v965
      %v982 = vadd.f32 %v905, %v966
      %v983 = vadd.f32 %v906, %v967
      %v984 = vadd.f32 %v907, %v968
      %v985 = vadd.f32 %v908, %v969
      %v986 = vadd.f32 %v909, %v970
      %v987 = vadd.f32 %v910, %v971
      %v988 = vld [vmem:[%s2 + $0x5] sm:$0x1]
      %v989 = vlaneseq
      %v990 = vshrl.u32 %v989, 7
      %v991 = vsub.s32 0, %v990
      %v992 = vrot.slane %v988, %v991
      %v993 = vmul.f32 %v992, %v923
      %v994 = vmul.f32 %v992, %v924
      %v995 = vmul.f32 %v992, %v925
      %v996 = vmul.f32 %v992, %v926
      %v997 = vmul.f32 %v992, %v927
      %v998 = vmul.f32 %v992, %v928
      %v999 = vmul.f32 %v992, %v929
      %v1000 = vmul.f32 %v992, %v930
      %v1001 = vmul.f32 %v992, %v931
      %v1002 = vmul.f32 %v992, %v932
      %v1003 = vmul.f32 %v992, %v933
      %v1004 = vmul.f32 %v992, %v934
      %v1005 = vmul.f32 %v992, %v935
      %v1006 = vmul.f32 %v992, %v936
      %v1007 = vmul.f32 %v992, %v937
      %v1008 = vmul.f32 %v992, %v938
      %v1009 = vadd.f32 %v972, %v993
      %v1010 = vadd.f32 %v973, %v994
      %v1011 = vadd.f32 %v974, %v995
      %v1012 = vadd.f32 %v975, %v996
      %v1013 = vadd.f32 %v976, %v997
      %v1014 = vadd.f32 %v977, %v998
      %v1015 = vadd.f32 %v978, %v999
      %v1016 = vadd.f32 %v979, %v1000
      %v1017 = vadd.f32 %v980, %v1001
      %v1018 = vadd.f32 %v981, %v1002
      %v1019 = vadd.f32 %v982, %v1003
      %v1020 = vadd.f32 %v983, %v1004
      %v1021 = vadd.f32 %v984, %v1005
      %v1022 = vadd.f32 %v985, %v1006
      %v1023 = vadd.f32 %v986, %v1007
      %v1024 = vadd.f32 %v987, %v1008
      %v1025 = vld [vmem:[%s2 + $0x8] sm:$0x1]
      %v1026 = vlaneseq
      %v1027 = vshrl.u32 %v1026, 7
      %v1028 = vsub.s32 0, %v1027
      %v1029 = vrot.slane %v1025, %v1028
      %v1030 = vmul.f32 %v1029, %v935
      %v1031 = vmul.f32 %v1029, %v936
      %v1032 = vmul.f32 %v1029, %v937
      %v1033 = vmul.f32 %v1029, %v938
      %v1034 = vmul.f32 %v1029, %v939
      %v1035 = vmul.f32 %v1029, %v940
      %v1036 = vmul.f32 %v1029, %v941
      %v1037 = vmul.f32 %v1029, %v942
      %v1038 = vmul.f32 %v1029, %v943
      %v1039 = vmul.f32 %v1029, %v944
      %v1040 = vmul.f32 %v1029, %v945
      %v1041 = vmul.f32 %v1029, %v946
      %v1042 = vmul.f32 %v1029, %v947
      %v1043 = vmul.f32 %v1029, %v948
      %v1044 = vmul.f32 %v1029, %v949
      %v1045 = vmul.f32 %v1029, %v950
      %v1046 = vadd.f32 %v1009, %v1030
      %v1047 = vadd.f32 %v1010, %v1031
      %v1048 = vadd.f32 %v1011, %v1032
      %v1049 = vadd.f32 %v1012, %v1033
      %v1050 = vadd.f32 %v1013, %v1034
      %v1051 = vadd.f32 %v1014, %v1035
      %v1052 = vadd.f32 %v1015, %v1036
      %v1053 = vadd.f32 %v1016, %v1037
      %v1054 = vadd.f32 %v1017, %v1038
      %v1055 = vadd.f32 %v1018, %v1039
      %v1056 = vadd.f32 %v1019, %v1040
      %v1057 = vadd.f32 %v1020, %v1041
      %v1058 = vadd.f32 %v1021, %v1042
      %v1059 = vadd.f32 %v1022, %v1043
      %v1060 = vadd.f32 %v1023, %v1044
      %v1061 = vadd.f32 %v1024, %v1045
      %v1062 = vld [vmem:[%s4] sm:$0xff]
      %v1063 = vld [vmem:[%s7 + $0x1] sm:$0x1]
      %v1064 = vlaneseq
      %v1065 = vshrl.u32 %v1064, 7
      %v1066 = vsub.s32 0, %v1065
      %v1067 = vrot.slane %v1063, %v1066
      %v1069 = vsel %vm396, %v1046, 0
      %v1072 = vsel %vm396, %v1047, 0
      %v1075 = vsel %vm396, %v1048, 0
      %v1078 = vsel %vm396, %v1049, 0
      %v1081 = vsel %vm396, %v1050, 0
      %v1084 = vsel %vm396, %v1051, 0
      %v1087 = vsel %vm396, %v1052, 0
      %v1090 = vsel %vm396, %v1053, 0
      %v1093 = vsel %vm396, %v1054, 0
      %v1096 = vsel %vm396, %v1055, 0
      %v1099 = vsel %vm396, %v1056, 0
      %v1102 = vsel %vm396, %v1057, 0
      %v1105 = vsel %vm396, %v1058, 0
      %v1108 = vsel %vm396, %v1059, 0
      %v1111 = vsel %vm396, %v1060, 0
      %v1114 = vsel %vm396, %v1061, 0
      %1116 = vmatprep.subr.mxu0 0.0
      %1117 = vmatpush1.msra.mxu0 %v1062
      %1118 = vmatprep.subr.mxu0 0.0
      %1119 = vmatpush1.msra.mxu0 0.0
      %1120 = vmatprep.subr.mxu0 0.0
      %1121 = vmatpush1.msra.mxu0 0.0
      %1122 = vmatprep.subr.mxu0 0.0
      %1123 = vmatpush1.msra.mxu0 0.0
      %1124 = vmatprep.subr.mxu0 0.0
      %1125 = vmatpush1.msra.mxu0 0.0
      %1126 = vmatprep.subr.mxu0 0.0
      %1127 = vmatpush1.msra.mxu0 0.0
      %1128 = vmatprep.subr.mxu0 0.0
      %1129 = vmatpush1.msra.mxu0 0.0
      %1130 = vmatprep.subr.mxu0 0.0
      %1131 = vmatpush1.msra.mxu0 0.0
      %1132 = vmatprep.subr.mxu0 0.0
      %1133 = vmatpush1.msra.mxu0 0.0
      %1134 = vmatprep.subr.mxu0 0.0
      %1135 = vmatpush1.msra.mxu0 0.0
      %1136 = vmatprep.subr.mxu0 0.0
      %1137 = vmatpush1.msra.mxu0 0.0
      %1138 = vmatprep.subr.mxu0 0.0
      %1139 = vmatpush1.msra.mxu0 0.0
      %1140 = vmatprep.subr.mxu0 0.0
      %1141 = vmatpush1.msra.mxu0 0.0
      %1142 = vmatprep.subr.mxu0 0.0
      %1143 = vmatpush1.msra.mxu0 0.0
      %1144 = vmatprep.subr.mxu0 0.0
      %1145 = vmatpush1.msra.mxu0 0.0
      %1146 = vmatprep.subr.mxu0 0.0
      %1147 = vmatpush1.msra.mxu0 0.0
      %1148 = vmatprep.subr.mxu0 0.0
      %1149 = vmatpush1.msra.mxu0 0.0
      %1150 = vmatprep.subr.mxu0 0.0
      %1151 = vmatpush1.msra.mxu0 0.0
      %1152 = vmatprep.subr.mxu0 0.0
      %1153 = vmatpush1.msra.mxu0 0.0
      %1154 = vmatprep.subr.mxu0 0.0
      %1155 = vmatpush1.msra.mxu0 0.0
      %1156 = vmatprep.subr.mxu0 0.0
      %1157 = vmatpush1.msra.mxu0 0.0
      %1158 = vmatprep.subr.mxu0 0.0
      %1159 = vmatpush1.msra.mxu0 0.0
      %1160 = vmatprep.subr.mxu0 0.0
      %1161 = vmatpush1.msra.mxu0 0.0
      %1162 = vmatprep.subr.mxu0 0.0
      %1163 = vmatpush1.msra.mxu0 0.0
      %1164 = vmatprep.subr.mxu0 0.0
      %1165 = vmatpush1.msra.mxu0 0.0
      %1166 = vmatprep.subr.mxu0 0.0
      %1167 = vmatpush1.msra.mxu0 0.0
      %1168 = vmatprep.subr.mxu0 0.0
      %1169 = vmatpush1.msra.mxu0 0.0
      %1170 = vmatprep.subr.mxu0 0.0
      %1171 = vmatpush1.msra.mxu0 0.0
      %1172 = vmatprep.subr.mxu0 0.0
      %1173 = vmatpush1.msra.mxu0 0.0
      %1174 = vmatprep.subr.mxu0 0.0
      %1175 = vmatpush1.msra.mxu0 0.0
      %1176 = vmatprep.subr.mxu0 0.0
      %1177 = vmatpush1.msra.mxu0 0.0
      %1178 = vmatprep.subr.mxu0 0.0
      %1179 = vmatpush1.msra.mxu0 0.0
      %1180 = vmatprep.mubr.f32.mxu0 0.0
      %1181 = vmatmul.mubr.f32.gmra.mrb[0].mxu0 %v1069
      %v1182 = vpop.f32.mrb[0].mxu0
      %v1183 = vadd.f32 %v1067, %v1182
      %v1184 = vpop.f32.mrb[0].mxu0
      %1185 = vmatprep.mubr.f32.mxu0 0.0
      %1186 = vmatmul.mubr.f32.gmra.mrb[0].mxu0 %v1072
      %v1187 = vpop.f32.mrb[0].mxu0
      %v1188 = vadd.f32 %v1067, %v1187
      %v1189 = vpop.f32.mrb[0].mxu0
      %1190 = vmatprep.mubr.f32.mxu0 0.0
      %1191 = vmatmul.mubr.f32.gmra.mrb[0].mxu0 %v1075
      %v1192 = vpop.f32.mrb[0].mxu0
      %v1193 = vadd.f32 %v1067, %v1192
      %v1194 = vpop.f32.mrb[0].mxu0
      %1195 = vmatprep.mubr.f32.mxu0 0.0
      %1196 = vmatmul.mubr.f32.gmra.mrb[0].mxu0 %v1078
      %v1197 = vpop.f32.mrb[0].mxu0
      %v1198 = vadd.f32 %v1067, %v1197
      %v1199 = vpop.f32.mrb[0].mxu0
      %1200 = vmatprep.mubr.f32.mxu0 0.0
      %1201 = vmatmul.mubr.f32.gmra.mrb[0].mxu0 %v1081
      %v1202 = vpop.f32.mrb[0].mxu0
      %v1203 = vadd.f32 %v1067, %v1202
      %v1204 = vpop.f32.mrb[0].mxu0
      %1205 = vmatprep.mubr.f32.mxu0 0.0
      %1206 = vmatmul.mubr.f32.gmra.mrb[0].mxu0 %v1084
      %v1207 = vpop.f32.mrb[0].mxu0
      %v1208 = vadd.f32 %v1067, %v1207
      %v1209 = vpop.f32.mrb[0].mxu0
      %1210 = vmatprep.mubr.f32.mxu0 0.0
      %1211 = vmatmul.mubr.f32.gmra.mrb[0].mxu0 %v1087
      %v1212 = vpop.f32.mrb[0].mxu0
      %v1213 = vadd.f32 %v1067, %v1212
      %v1214 = vpop.f32.mrb[0].mxu0
      %1215 = vmatprep.mubr.f32.mxu0 0.0
      %1216 = vmatmul.mubr.f32.gmra.mrb[0].mxu0 %v1090
      %v1217 = vpop.f32.mrb[0].mxu0
      %v1218 = vadd.f32 %v1067, %v1217
      %v1219 = vpop.f32.mrb[0].mxu0
      %1220 = vmatprep.mubr.f32.mxu0 0.0
      %1221 = vmatmul.mubr.f32.gmra.mrb[0].mxu0 %v1093
      %v1222 = vpop.f32.mrb[0].mxu0
      %v1223 = vadd.f32 %v1067, %v1222
      %v1224 = vpop.f32.mrb[0].mxu0
      %1225 = vmatprep.mubr.f32.mxu0 0.0
      %1226 = vmatmul.mubr.f32.gmra.mrb[0].mxu0 %v1096
      %v1227 = vpop.f32.mrb[0].mxu0
      %v1228 = vadd.f32 %v1067, %v1227
      %v1229 = vpop.f32.mrb[0].mxu0
      %1230 = vmatprep.mubr.f32.mxu0 0.0
      %1231 = vmatmul.mubr.f32.gmra.mrb[0].mxu0 %v1099
      %v1232 = vpop.f32.mrb[0].mxu0
      %v1233 = vadd.f32 %v1067, %v1232
      %v1234 = vpop.f32.mrb[0].mxu0
      %1235 = vmatprep.mubr.f32.mxu0 0.0
      %1236 = vmatmul.mubr.f32.gmra.mrb[0].mxu0 %v1102
      %v1237 = vpop.f32.mrb[0].mxu0
      %v1238 = vadd.f32 %v1067, %v1237
      %v1239 = vpop.f32.mrb[0].mxu0
      %1240 = vmatprep.mubr.f32.mxu0 0.0
      %1241 = vmatmul.mubr.f32.gmra.mrb[0].mxu0 %v1105
      %v1242 = vpop.f32.mrb[0].mxu0
      %v1243 = vadd.f32 %v1067, %v1242
      %v1244 = vpop.f32.mrb[0].mxu0
      %1245 = vmatprep.mubr.f32.mxu0 0.0
      %1246 = vmatmul.mubr.f32.gmra.mrb[0].mxu0 %v1108
      %v1247 = vpop.f32.mrb[0].mxu0
      %v1248 = vadd.f32 %v1067, %v1247
      %v1249 = vpop.f32.mrb[0].mxu0
      %1250 = vmatprep.mubr.f32.mxu0 0.0
      %1251 = vmatmul.mubr.f32.gmra.mrb[0].mxu0 %v1111
      %v1252 = vpop.f32.mrb[0].mxu0
      %v1253 = vadd.f32 %v1067, %v1252
      %v1254 = vpop.f32.mrb[0].mxu0
      %1255 = vmatprep.mubr.f32.mxu0 0.0
      %1256 = vmatmul.mubr.f32.gmra.mrb[0].mxu0 %v1114
      %v1257 = vpop.f32.mrb[0].mxu0
      %v1258 = vadd.f32 %v1067, %v1257
      %v1259 = vpop.f32.mrb[0].mxu0
      %1260 = vdwg.mxu0
      %v1261 = vmax.f32 %v1183, 0.0
      %v1262 = vmax.f32 %v1188, 0.0
      %v1263 = vmax.f32 %v1193, 0.0
      %v1264 = vmax.f32 %v1198, 0.0
      %v1265 = vmax.f32 %v1203, 0.0
      %v1266 = vmax.f32 %v1208, 0.0
      %v1267 = vmax.f32 %v1213, 0.0
      %v1268 = vmax.f32 %v1218, 0.0
      %v1269 = vmax.f32 %v1223, 0.0
      %v1270 = vmax.f32 %v1228, 0.0
      %v1271 = vmax.f32 %v1233, 0.0
      %v1272 = vmax.f32 %v1238, 0.0
      %v1273 = vmax.f32 %v1243, 0.0
      %v1274 = vmax.f32 %v1248, 0.0
      %v1275 = vmax.f32 %v1253, 0.0
      %v1276 = vmax.f32 %v1258, 0.0
      %s1277 = scalar_lea.vmem %s6, 128
      %v1278 = vld [vmem:[%s1277] sm:$0xff]
      %v1279 = vld [vmem:[%s1277 + $0x8] sm:$0xff]
      %v1280 = vld [vmem:[%s1277 + $0x10] sm:$0xff]
      %v1281 = vld [vmem:[%s1277 + $0x18] sm:$0xff]
      %v1282 = vld [vmem:[%s1277 + $0x20] sm:$0xff]
      %v1283 = vld [vmem:[%s1277 + $0x28] sm:$0xff]
      %v1284 = vld [vmem:[%s1277 + $0x30] sm:$0xff]
      %v1285 = vld [vmem:[%s1277 + $0x38] sm:$0xff]
      %v1286 = vld [vmem:[%s1277 + $0x40] sm:$0xff]
      %v1287 = vld [vmem:[%s1277 + $0x48] sm:$0xff]
      %v1288 = vld [vmem:[%s1277 + $0x50] sm:$0xff]
      %v1289 = vld [vmem:[%s1277 + $0x58] sm:$0xff]
      %v1290 = vld [vmem:[%s1277 + $0x60] sm:$0xff]
      %v1291 = vld [vmem:[%s1277 + $0x68] sm:$0xff]
      %v1292 = vld [vmem:[%s1277 + $0x70] sm:$0xff]
      %v1293 = vld [vmem:[%s1277 + $0x78] sm:$0xff]
      %1294 = vmatprep.subr.mxu0 0.0
      %1295 = vmatpush1.msra.mxu0 %v1278
      %1296 = vmatprep.subr.mxu0 0.0
      %1297 = vmatpush1.msra.mxu0 %v1279
      %1298 = vmatprep.subr.mxu0 0.0
      %1299 = vmatpush1.msra.mxu0 %v1280
      %1300 = vmatprep.subr.mxu0 0.0
      %1301 = vmatpush1.msra.mxu0 %v1281
      %1302 = vmatprep.subr.mxu0 0.0
      %1303 = vmatpush1.msra.mxu0 %v1282
      %1304 = vmatprep.subr.mxu0 0.0
      %1305 = vmatpush1.msra.mxu0 %v1283
      %1306 = vmatprep.subr.mxu0 0.0
      %1307 = vmatpush1.msra.mxu0 %v1284
      %1308 = vmatprep.subr.mxu0 0.0
      %1309 = vmatpush1.msra.mxu0 %v1285
      %1310 = vmatprep.subr.mxu0 0.0
      %1311 = vmatpush1.msra.mxu0 %v1286
      %1312 = vmatprep.subr.mxu0 0.0
      %1313 = vmatpush1.msra.mxu0 %v1287
      %1314 = vmatprep.subr.mxu0 0.0
      %1315 = vmatpush1.msra.mxu0 %v1288
      %1316 = vmatprep.subr.mxu0 0.0
      %1317 = vmatpush1.msra.mxu0 %v1289
      %1318 = vmatprep.subr.mxu0 0.0
      %1319 = vmatpush1.msra.mxu0 %v1290
      %1320 = vmatprep.subr.mxu0 0.0
      %1321 = vmatpush1.msra.mxu0 %v1291
      %1322 = vmatprep.subr.mxu0 0.0
      %1323 = vmatpush1.msra.mxu0 %v1292
      %1324 = vmatprep.subr.mxu0 0.0
      %1325 = vmatpush1.msra.mxu0 %v1293
      %1326 = vmatprep.subr.mxu0 0.0
      %1327 = vmatpush1.msra.mxu0 0.0
      %1328 = vmatprep.subr.mxu0 0.0
      %1329 = vmatpush1.msra.mxu0 0.0
      %1330 = vmatprep.subr.mxu0 0.0
      %1331 = vmatpush1.msra.mxu0 0.0
      %1332 = vmatprep.subr.mxu0 0.0
      %1333 = vmatpush1.msra.mxu0 0.0
      %1334 = vmatprep.subr.mxu0 0.0
      %1335 = vmatpush1.msra.mxu0 0.0
      %1336 = vmatprep.subr.mxu0 0.0
      %1337 = vmatpush1.msra.mxu0 0.0
      %1338 = vmatprep.subr.mxu0 0.0
      %1339 = vmatpush1.msra.mxu0 0.0
      %1340 = vmatprep.subr.mxu0 0.0
      %1341 = vmatpush1.msra.mxu0 0.0
      %1342 = vmatprep.subr.mxu0 0.0
      %1343 = vmatpush1.msra.mxu0 0.0
      %1344 = vmatprep.subr.mxu0 0.0
      %1345 = vmatpush1.msra.mxu0 0.0
      %1346 = vmatprep.subr.mxu0 0.0
      %1347 = vmatpush1.msra.mxu0 0.0
      %1348 = vmatprep.subr.mxu0 0.0
      %1349 = vmatpush1.msra.mxu0 0.0
      %1350 = vmatprep.subr.mxu0 0.0
      %1351 = vmatpush1.msra.mxu0 0.0
      %1352 = vmatprep.subr.mxu0 0.0
      %1353 = vmatpush1.msra.mxu0 0.0
      %1354 = vmatprep.subr.mxu0 0.0
      %1355 = vmatpush1.msra.mxu0 0.0
      %1356 = vmatprep.subr.mxu0 0.0
      %1357 = vmatpush1.msra.mxu0 0.0
      %1358 = vmatprep.mubr.f32.mxu0 0.0
      %1359 = vmatmul.mubr.f32.gmra.mrb[0].mxu0 %v1261
      %v1360 = vpop.f32.mrb[0].mxu0
      %v1361 = vadd.f32 0.0, %v1360
      %v1362 = vpop.f32.mrb[0].mxu0
      %1363 = vmatprep.mubr.f32.mxu0 0.0
      %1364 = vmatmul.mubr.f32.gmra.mrb[0].mxu0 %v1262
      %v1365 = vpop.f32.mrb[0].mxu0
      %v1366 = vadd.f32 0.0, %v1365
      %v1367 = vpop.f32.mrb[0].mxu0
      %1368 = vmatprep.mubr.f32.mxu0 0.0
      %1369 = vmatmul.mubr.f32.gmra.mrb[0].mxu0 %v1263
      %v1370 = vpop.f32.mrb[0].mxu0
      %v1371 = vadd.f32 0.0, %v1370
      %v1372 = vpop.f32.mrb[0].mxu0
      %1373 = vmatprep.mubr.f32.mxu0 0.0
      %1374 = vmatmul.mubr.f32.gmra.mrb[0].mxu0 %v1264
      %v1375 = vpop.f32.mrb[0].mxu0
      %v1376 = vadd.f32 0.0, %v1375
      %v1377 = vpop.f32.mrb[0].mxu0
      %1378 = vmatprep.mubr.f32.mxu0 0.0
      %1379 = vmatmul.mubr.f32.gmra.mrb[0].mxu0 %v1265
      %v1380 = vpop.f32.mrb[0].mxu0
      %v1381 = vadd.f32 0.0, %v1380
      %v1382 = vpop.f32.mrb[0].mxu0
      %1383 = vmatprep.mubr.f32.mxu0 0.0
      %1384 = vmatmul.mubr.f32.gmra.mrb[0].mxu0 %v1266
      %v1385 = vpop.f32.mrb[0].mxu0
      %v1386 = vadd.f32 0.0, %v1385
      %v1387 = vpop.f32.mrb[0].mxu0
      %1388 = vmatprep.mubr.f32.mxu0 0.0
      %1389 = vmatmul.mubr.f32.gmra.mrb[0].mxu0 %v1267
      %v1390 = vpop.f32.mrb[0].mxu0
      %v1391 = vadd.f32 0.0, %v1390
      %v1392 = vpop.f32.mrb[0].mxu0
      %1393 = vmatprep.mubr.f32.mxu0 0.0
      %1394 = vmatmul.mubr.f32.gmra.mrb[0].mxu0 %v1268
      %v1395 = vpop.f32.mrb[0].mxu0
      %v1396 = vadd.f32 0.0, %v1395
      %v1397 = vpop.f32.mrb[0].mxu0
      %1398 = vmatprep.mubr.f32.mxu0 0.0
      %1399 = vmatmul.mubr.f32.gmra.mrb[0].mxu0 %v1269
      %v1400 = vpop.f32.mrb[0].mxu0
      %v1401 = vadd.f32 0.0, %v1400
      %v1402 = vpop.f32.mrb[0].mxu0
      %1403 = vmatprep.mubr.f32.mxu0 0.0
      %1404 = vmatmul.mubr.f32.gmra.mrb[0].mxu0 %v1270
      %v1405 = vpop.f32.mrb[0].mxu0
      %v1406 = vadd.f32 0.0, %v1405
      %v1407 = vpop.f32.mrb[0].mxu0
      %1408 = vmatprep.mubr.f32.mxu0 0.0
      %1409 = vmatmul.mubr.f32.gmra.mrb[0].mxu0 %v1271
      %v1410 = vpop.f32.mrb[0].mxu0
      %v1411 = vadd.f32 0.0, %v1410
      %v1412 = vpop.f32.mrb[0].mxu0
      %1413 = vmatprep.mubr.f32.mxu0 0.0
      %1414 = vmatmul.mubr.f32.gmra.mrb[0].mxu0 %v1272
      %v1415 = vpop.f32.mrb[0].mxu0
      %v1416 = vadd.f32 0.0, %v1415
      %v1417 = vpop.f32.mrb[0].mxu0
      %1418 = vmatprep.mubr.f32.mxu0 0.0
      %1419 = vmatmul.mubr.f32.gmra.mrb[0].mxu0 %v1273
      %v1420 = vpop.f32.mrb[0].mxu0
      %v1421 = vadd.f32 0.0, %v1420
      %v1422 = vpop.f32.mrb[0].mxu0
      %1423 = vmatprep.mubr.f32.mxu0 0.0
      %1424 = vmatmul.mubr.f32.gmra.mrb[0].mxu0 %v1274
      %v1425 = vpop.f32.mrb[0].mxu0
      %v1426 = vadd.f32 0.0, %v1425
      %v1427 = vpop.f32.mrb[0].mxu0
      %1428 = vmatprep.mubr.f32.mxu0 0.0
      %1429 = vmatmul.mubr.f32.gmra.mrb[0].mxu0 %v1275
      %v1430 = vpop.f32.mrb[0].mxu0
      %v1431 = vadd.f32 0.0, %v1430
      %v1432 = vpop.f32.mrb[0].mxu0
      %1433 = vmatprep.mubr.f32.mxu0 0.0
      %1434 = vmatmul.mubr.f32.gmra.mrb[0].mxu0 %v1276
      %v1435 = vpop.f32.mrb[0].mxu0
      %v1436 = vadd.f32 0.0, %v1435
      %v1437 = vpop.f32.mrb[0].mxu0
      %1438 = vdwg.mxu0
      %1439 = vmatprep.subr.mxu0 0.0
      %1440 = vmatpush1.msra.mxu0 %v606
      %1441 = vmatprep.subr.mxu0 0.0
      %1442 = vmatpush1.msra.mxu0 %v607
      %1443 = vmatprep.subr.mxu0 0.0
      %1444 = vmatpush1.msra.mxu0 %v608
      %1445 = vmatprep.subr.mxu0 0.0
      %1446 = vmatpush1.msra.mxu0 %v609
      %1447 = vmatprep.subr.mxu0 0.0
      %1448 = vmatpush1.msra.mxu0 %v610
      %1449 = vmatprep.subr.mxu0 0.0
      %1450 = vmatpush1.msra.mxu0 %v611
      %1451 = vmatprep.subr.mxu0 0.0
      %1452 = vmatpush1.msra.mxu0 %v612
      %1453 = vmatprep.subr.mxu0 0.0
      %1454 = vmatpush1.msra.mxu0 %v613
      %1455 = vmatprep.subr.mxu0 0.0
      %1456 = vmatpush1.msra.mxu0 %v614
      %1457 = vmatprep.subr.mxu0 0.0
      %1458 = vmatpush1.msra.mxu0 %v615
      %1459 = vmatprep.subr.mxu0 0.0
      %1460 = vmatpush1.msra.mxu0 %v616
      %1461 = vmatprep.subr.mxu0 0.0
      %1462 = vmatpush1.msra.mxu0 %v617
      %1463 = vmatprep.subr.mxu0 0.0
      %1464 = vmatpush1.msra.mxu0 %v618
      %1465 = vmatprep.subr.mxu0 0.0
      %1466 = vmatpush1.msra.mxu0 %v619
      %1467 = vmatprep.subr.mxu0 0.0
      %1468 = vmatpush1.msra.mxu0 %v620
      %1469 = vmatprep.subr.mxu0 0.0
      %1470 = vmatpush1.msra.mxu0 %v621
      %1471 = vmatprep.subr.mxu0 0.0
      %1472 = vmatpush1.msra.mxu0 0.0
      %1473 = vmatprep.subr.mxu0 0.0
      %1474 = vmatpush1.msra.mxu0 0.0
      %1475 = vmatprep.subr.mxu0 0.0
      %1476 = vmatpush1.msra.mxu0 0.0
      %1477 = vmatprep.subr.mxu0 0.0
      %1478 = vmatpush1.msra.mxu0 0.0
      %1479 = vmatprep.subr.mxu0 0.0
      %1480 = vmatpush1.msra.mxu0 0.0
      %1481 = vmatprep.subr.mxu0 0.0
      %1482 = vmatpush1.msra.mxu0 0.0
      %1483 = vmatprep.subr.mxu0 0.0
      %1484 = vmatpush1.msra.mxu0 0.0
      %1485 = vmatprep.subr.mxu0 0.0
      %1486 = vmatpush1.msra.mxu0 0.0
      %1487 = vmatprep.subr.mxu0 0.0
      %1488 = vmatpush1.msra.mxu0 0.0
      %1489 = vmatprep.subr.mxu0 0.0
      %1490 = vmatpush1.msra.mxu0 0.0
      %1491 = vmatprep.subr.mxu0 0.0
      %1492 = vmatpush1.msra.mxu0 0.0
      %1493 = vmatprep.subr.mxu0 0.0
      %1494 = vmatpush1.msra.mxu0 0.0
      %1495 = vmatprep.subr.mxu0 0.0
      %1496 = vmatpush1.msra.mxu0 0.0
      %1497 = vmatprep.subr.mxu0 0.0
      %1498 = vmatpush1.msra.mxu0 0.0
      %1499 = vmatprep.subr.mxu0 0.0
      %1500 = vmatpush1.msra.mxu0 0.0
      %1501 = vmatprep.subr.mxu0 0.0
      %1502 = vmatpush1.msra.mxu0 0.0
      %1503 = vmatprep.mubr.f32.mxu0 0.0
      %1504 = vmatmul.mubr.f32.gmra.mrb[0].mxu0 %v590
      %v1505 = vpop.f32.mrb[0].mxu0
      %v1506 = vadd.f32 %v1361, %v1505
      %v1507 = vpop.f32.mrb[0].mxu0
      %1508 = vmatprep.mubr.f32.mxu0 0.0
      %1509 = vmatmul.mubr.f32.gmra.mrb[0].mxu0 %v591
      %v1510 = vpop.f32.mrb[0].mxu0
      %v1511 = vadd.f32 %v1366, %v1510
      %v1512 = vpop.f32.mrb[0].mxu0
      %1513 = vmatprep.mubr.f32.mxu0 0.0
      %1514 = vmatmul.mubr.f32.gmra.mrb[0].mxu0 %v592
      %v1515 = vpop.f32.mrb[0].mxu0
      %v1516 = vadd.f32 %v1371, %v1515
      %v1517 = vpop.f32.mrb[0].mxu0
      %1518 = vmatprep.mubr.f32.mxu0 0.0
      %1519 = vmatmul.mubr.f32.gmra.mrb[0].mxu0 %v593
      %v1520 = vpop.f32.mrb[0].mxu0
      %v1521 = vadd.f32 %v1376, %v1520
      %v1522 = vpop.f32.mrb[0].mxu0
      %1523 = vmatprep.mubr.f32.mxu0 0.0
      %1524 = vmatmul.mubr.f32.gmra.mrb[0].mxu0 %v594
      %v1525 = vpop.f32.mrb[0].mxu0
      %v1526 = vadd.f32 %v1381, %v1525
      %v1527 = vpop.f32.mrb[0].mxu0
      %1528 = vmatprep.mubr.f32.mxu0 0.0
      %1529 = vmatmul.mubr.f32.gmra.mrb[0].mxu0 %v595
      %v1530 = vpop.f32.mrb[0].mxu0
      %v1531 = vadd.f32 %v1386, %v1530
      %v1532 = vpop.f32.mrb[0].mxu0
      %1533 = vmatprep.mubr.f32.mxu0 0.0
      %1534 = vmatmul.mubr.f32.gmra.mrb[0].mxu0 %v596
      %v1535 = vpop.f32.mrb[0].mxu0
      %v1536 = vadd.f32 %v1391, %v1535
      %v1537 = vpop.f32.mrb[0].mxu0
      %1538 = vmatprep.mubr.f32.mxu0 0.0
      %1539 = vmatmul.mubr.f32.gmra.mrb[0].mxu0 %v597
      %v1540 = vpop.f32.mrb[0].mxu0
      %v1541 = vadd.f32 %v1396, %v1540
      %v1542 = vpop.f32.mrb[0].mxu0
      %1543 = vmatprep.mubr.f32.mxu0 0.0
      %1544 = vmatmul.mubr.f32.gmra.mrb[0].mxu0 %v598
      %v1545 = vpop.f32.mrb[0].mxu0
      %v1546 = vadd.f32 %v1401, %v1545
      %v1547 = vpop.f32.mrb[0].mxu0
      %1548 = vmatprep.mubr.f32.mxu0 0.0
      %1549 = vmatmul.mubr.f32.gmra.mrb[0].mxu0 %v599
      %v1550 = vpop.f32.mrb[0].mxu0
      %v1551 = vadd.f32 %v1406, %v1550
      %v1552 = vpop.f32.mrb[0].mxu0
      %1553 = vmatprep.mubr.f32.mxu0 0.0
      %1554 = vmatmul.mubr.f32.gmra.mrb[0].mxu0 %v600
      %v1555 = vpop.f32.mrb[0].mxu0
      %v1556 = vadd.f32 %v1411, %v1555
      %v1557 = vpop.f32.mrb[0].mxu0
      %1558 = vmatprep.mubr.f32.mxu0 0.0
      %1559 = vmatmul.mubr.f32.gmra.mrb[0].mxu0 %v601
      %v1560 = vpop.f32.mrb[0].mxu0
      %v1561 = vadd.f32 %v1416, %v1560
      %v1562 = vpop.f32.mrb[0].mxu0
      %1563 = vmatprep.mubr.f32.mxu0 0.0
      %1564 = vmatmul.mubr.f32.gmra.mrb[0].mxu0 %v602
      %v1565 = vpop.f32.mrb[0].mxu0
      %v1566 = vadd.f32 %v1421, %v1565
      %v1567 = vpop.f32.mrb[0].mxu0
      %1568 = vmatprep.mubr.f32.mxu0 0.0
      %1569 = vmatmul.mubr.f32.gmra.mrb[0].mxu0 %v603
      %v1570 = vpop.f32.mrb[0].mxu0
      %v1571 = vadd.f32 %v1426, %v1570
      %v1572 = vpop.f32.mrb[0].mxu0
      %1573 = vmatprep.mubr.f32.mxu0 0.0
      %1574 = vmatmul.mubr.f32.gmra.mrb[0].mxu0 %v604
      %v1575 = vpop.f32.mrb[0].mxu0
      %v1576 = vadd.f32 %v1431, %v1575
      %v1577 = vpop.f32.mrb[0].mxu0
      %1578 = vmatprep.mubr.f32.mxu0 0.0
      %1579 = vmatmul.mubr.f32.gmra.mrb[0].mxu0 %v605
      %v1580 = vpop.f32.mrb[0].mxu0
      %v1581 = vadd.f32 %v1436, %v1580
      %v1582 = vpop.f32.mrb[0].mxu0
      %1583 = vdwg.mxu0
      %s1584 = sadd.s32 %s370, 6
      %s1585 = smul.u32 %s1584, 56
      %s1586 = scalar_lea.vmem %s356, %s1585
      %v1587 = vld [vmem:[%s1586 + $0x6] sm:$0xff]
      %v1588 = vld [vmem:[%s1586 + $0xe] sm:$0xff]
      %v1589 = vld [vmem:[%s1586 + $0x3e] sm:$0xff]
      %v1590 = vld [vmem:[%s1586 + $0x46] sm:$0xff]
      %v1591 = vld [vmem:[%s1586 + $0x76] sm:$0xff]
      %v1592 = vld [vmem:[%s1586 + $0x7e] sm:$0xff]
      %v1593 = vld [vmem:[%s1586 + $0xae] sm:$0xff]
      %v1594 = vld [vmem:[%s1586 + $0xb6] sm:$0xff]
      %v1595 = vld [vmem:[%s1586 + $0xe6] sm:$0xff]
      %v1596 = vld [vmem:[%s1586 + $0xee] sm:$0xff]
      %v1597 = vld [vmem:[%s1586 + $0x11e] sm:$0xff]
      %v1598 = vld [vmem:[%s1586 + $0x126] sm:$0xff]
      %v1599 = vld [vmem:[%s1586 + $0x156] sm:$0xff]
      %v1600 = vld [vmem:[%s1586 + $0x15e] sm:$0xff]
      %v1601 = vld [vmem:[%s1586 + $0x18e] sm:$0xff]
      %v1602 = vld [vmem:[%s1586 + $0x196] sm:$0xff]
      %v1603 = vld [vmem:[%s1586 + $0x2a6] sm:$0xff]
      %v1604 = vld [vmem:[%s1586 + $0x2ae] sm:$0xff]
      %v1605 = vld [vmem:[%s1586 + $0x2de] sm:$0xff]
      %v1606 = vld [vmem:[%s1586 + $0x2e6] sm:$0xff]
      %v1607 = vld [vmem:[%s1586 + $0x316] sm:$0xff]
      %v1608 = vld [vmem:[%s1586 + $0x31e] sm:$0xff]
      %v1609 = vld [vmem:[%s1586 + $0x34e] sm:$0xff]
      %v1610 = vld [vmem:[%s1586 + $0x356] sm:$0xff]
      %v1611 = vld [vmem:[%s1586 + $0x386] sm:$0xff]
      %v1612 = vld [vmem:[%s1586 + $0x38e] sm:$0xff]
      %v1613 = vld [vmem:[%s1586 + $0x3be] sm:$0xff]
      %v1614 = vld [vmem:[%s1586 + $0x3c6] sm:$0xff]
      %v1615 = vld [vmem:[%s1586 + $0x3f6] sm:$0xff]
      %v1616 = vld [vmem:[%s1586 + $0x3fe] sm:$0xff]
      %v1617 = vld [vmem:[%s1586 + $0x42e] sm:$0xff]
      %v1618 = vld [vmem:[%s1586 + $0x436] sm:$0xff]
      %v1619 = vld [vmem:[%s1586 + $0x546] sm:$0xff]
      %v1620 = vld [vmem:[%s1586 + $0x54e] sm:$0xff]
      %v1621 = vld [vmem:[%s1586 + $0x57e] sm:$0xff]
      %v1622 = vld [vmem:[%s1586 + $0x586] sm:$0xff]
      %v1623 = vld [vmem:[%s1586 + $0x5b6] sm:$0xff]
      %v1624 = vld [vmem:[%s1586 + $0x5be] sm:$0xff]
      %v1625 = vld [vmem:[%s1586 + $0x5ee] sm:$0xff]
      %v1626 = vld [vmem:[%s1586 + $0x5f6] sm:$0xff]
      %v1627 = vld [vmem:[%s1586 + $0x626] sm:$0xff]
      %v1628 = vld [vmem:[%s1586 + $0x62e] sm:$0xff]
      %v1629 = vld [vmem:[%s1586 + $0x65e] sm:$0xff]
      %v1630 = vld [vmem:[%s1586 + $0x666] sm:$0xff]
      %v1631 = vld [vmem:[%s1586 + $0x696] sm:$0xff]
      %v1632 = vld [vmem:[%s1586 + $0x69e] sm:$0xff]
      %v1633 = vld [vmem:[%s1586 + $0x6ce] sm:$0xff]
      %v1634 = vld [vmem:[%s1586 + $0x6d6] sm:$0xff]
      %s1635 = scalar_lea.vmem %s2, 16
      %v1636 = vld [vmem:[%s1635] sm:$0x1]
      %v1637 = vlaneseq
      %v1638 = vshrl.u32 %v1637, 7
      %v1639 = vsub.s32 0, %v1638
      %v1640 = vrot.slane %v1636, %v1639
      %v1641 = vmul.f32 %v1640, %v1587
      %v1642 = vmul.f32 %v1640, %v1588
      %v1643 = vmul.f32 %v1640, %v1589
      %v1644 = vmul.f32 %v1640, %v1590
      %v1645 = vmul.f32 %v1640, %v1591
      %v1646 = vmul.f32 %v1640, %v1592
      %v1647 = vmul.f32 %v1640, %v1593
      %v1648 = vmul.f32 %v1640, %v1594
      %v1649 = vmul.f32 %v1640, %v1595
      %v1650 = vmul.f32 %v1640, %v1596
      %v1651 = vmul.f32 %v1640, %v1597
      %v1652 = vmul.f32 %v1640, %v1598
      %v1653 = vmul.f32 %v1640, %v1599
      %v1654 = vmul.f32 %v1640, %v1600
      %v1655 = vmul.f32 %v1640, %v1601
      %v1656 = vmul.f32 %v1640, %v1602
      %v1657 = vld [vmem:[%s1635 + $0x3] sm:$0x1]
      %v1658 = vlaneseq
      %v1659 = vshrl.u32 %v1658, 7
      %v1660 = vsub.s32 0, %v1659
      %v1661 = vrot.slane %v1657, %v1660
      %v1662 = vmul.f32 %v1661, %v1603
      %v1663 = vmul.f32 %v1661, %v1604
      %v1664 = vmul.f32 %v1661, %v1605
      %v1665 = vmul.f32 %v1661, %v1606
      %v1666 = vmul.f32 %v1661, %v1607
      %v1667 = vmul.f32 %v1661, %v1608
      %v1668 = vmul.f32 %v1661, %v1609
      %v1669 = vmul.f32 %v1661, %v1610
      %v1670 = vmul.f32 %v1661, %v1611
      %v1671 = vmul.f32 %v1661, %v1612
      %v1672 = vmul.f32 %v1661, %v1613
      %v1673 = vmul.f32 %v1661, %v1614
      %v1674 = vmul.f32 %v1661, %v1615
      %v1675 = vmul.f32 %v1661, %v1616
      %v1676 = vmul.f32 %v1661, %v1617
      %v1677 = vmul.f32 %v1661, %v1618
      %v1678 = vadd.f32 %v1641, %v1662
      %v1679 = vadd.f32 %v1642, %v1663
      %v1680 = vadd.f32 %v1643, %v1664
      %v1681 = vadd.f32 %v1644, %v1665
      %v1682 = vadd.f32 %v1645, %v1666
      %v1683 = vadd.f32 %v1646, %v1667
      %v1684 = vadd.f32 %v1647, %v1668
      %v1685 = vadd.f32 %v1648, %v1669
      %v1686 = vadd.f32 %v1649, %v1670
      %v1687 = vadd.f32 %v1650, %v1671
      %v1688 = vadd.f32 %v1651, %v1672
      %v1689 = vadd.f32 %v1652, %v1673
      %v1690 = vadd.f32 %v1653, %v1674
      %v1691 = vadd.f32 %v1654, %v1675
      %v1692 = vadd.f32 %v1655, %v1676
      %v1693 = vadd.f32 %v1656, %v1677
      %v1694 = vld [vmem:[%s1635 + $0x6] sm:$0x1]
      %v1695 = vlaneseq
      %v1696 = vshrl.u32 %v1695, 7
      %v1697 = vsub.s32 0, %v1696
      %v1698 = vrot.slane %v1694, %v1697
      %v1699 = vmul.f32 %v1698, %v1619
      %v1700 = vmul.f32 %v1698, %v1620
      %v1701 = vmul.f32 %v1698, %v1621
      %v1702 = vmul.f32 %v1698, %v1622
      %v1703 = vmul.f32 %v1698, %v1623
      %v1704 = vmul.f32 %v1698, %v1624
      %v1705 = vmul.f32 %v1698, %v1625
      %v1706 = vmul.f32 %v1698, %v1626
      %v1707 = vmul.f32 %v1698, %v1627
      %v1708 = vmul.f32 %v1698, %v1628
      %v1709 = vmul.f32 %v1698, %v1629
      %v1710 = vmul.f32 %v1698, %v1630
      %v1711 = vmul.f32 %v1698, %v1631
      %v1712 = vmul.f32 %v1698, %v1632
      %v1713 = vmul.f32 %v1698, %v1633
      %v1714 = vmul.f32 %v1698, %v1634
      %v1715 = vadd.f32 %v1678, %v1699
      %v1716 = vadd.f32 %v1679, %v1700
      %v1717 = vadd.f32 %v1680, %v1701
      %v1718 = vadd.f32 %v1681, %v1702
      %v1719 = vadd.f32 %v1682, %v1703
      %v1720 = vadd.f32 %v1683, %v1704
      %v1721 = vadd.f32 %v1684, %v1705
      %v1722 = vadd.f32 %v1685, %v1706
      %v1723 = vadd.f32 %v1686, %v1707
      %v1724 = vadd.f32 %v1687, %v1708
      %v1725 = vadd.f32 %v1688, %v1709
      %v1726 = vadd.f32 %v1689, %v1710
      %v1727 = vadd.f32 %v1690, %v1711
      %v1728 = vadd.f32 %v1691, %v1712
      %v1729 = vadd.f32 %v1692, %v1713
      %v1730 = vadd.f32 %v1693, %v1714
      %v1731 = vld [vmem:[%s1586 + $0x12] sm:$0xff]
      %v1732 = vld [vmem:[%s1586 + $0x1a] sm:$0xff]
      %v1733 = vld [vmem:[%s1586 + $0x4a] sm:$0xff]
      %v1734 = vld [vmem:[%s1586 + $0x52] sm:$0xff]
      %v1735 = vld [vmem:[%s1586 + $0x82] sm:$0xff]
      %v1736 = vld [vmem:[%s1586 + $0x8a] sm:$0xff]
      %v1737 = vld [vmem:[%s1586 + $0xba] sm:$0xff]
      %v1738 = vld [vmem:[%s1586 + $0xc2] sm:$0xff]
      %v1739 = vld [vmem:[%s1586 + $0xf2] sm:$0xff]
      %v1740 = vld [vmem:[%s1586 + $0xfa] sm:$0xff]
      %v1741 = vld [vmem:[%s1586 + $0x12a] sm:$0xff]
      %v1742 = vld [vmem:[%s1586 + $0x132] sm:$0xff]
      %v1743 = vld [vmem:[%s1586 + $0x162] sm:$0xff]
      %v1744 = vld [vmem:[%s1586 + $0x16a] sm:$0xff]
      %v1745 = vld [vmem:[%s1586 + $0x19a] sm:$0xff]
      %v1746 = vld [vmem:[%s1586 + $0x1a2] sm:$0xff]
      %v1747 = vld [vmem:[%s1586 + $0x2b2] sm:$0xff]
      %v1748 = vld [vmem:[%s1586 + $0x2ba] sm:$0xff]
      %v1749 = vld [vmem:[%s1586 + $0x2ea] sm:$0xff]
      %v1750 = vld [vmem:[%s1586 + $0x2f2] sm:$0xff]
      %v1751 = vld [vmem:[%s1586 + $0x322] sm:$0xff]
      %v1752 = vld [vmem:[%s1586 + $0x32a] sm:$0xff]
      %v1753 = vld [vmem:[%s1586 + $0x35a] sm:$0xff]
      %v1754 = vld [vmem:[%s1586 + $0x362] sm:$0xff]
      %v1755 = vld [vmem:[%s1586 + $0x392] sm:$0xff]
      %v1756 = vld [vmem:[%s1586 + $0x39a] sm:$0xff]
      %v1757 = vld [vmem:[%s1586 + $0x3ca] sm:$0xff]
      %v1758 = vld [vmem:[%s1586 + $0x3d2] sm:$0xff]
      %v1759 = vld [vmem:[%s1586 + $0x402] sm:$0xff]
      %v1760 = vld [vmem:[%s1586 + $0x40a] sm:$0xff]
      %v1761 = vld [vmem:[%s1586 + $0x43a] sm:$0xff]
      %v1762 = vld [vmem:[%s1586 + $0x442] sm:$0xff]
      %v1763 = vld [vmem:[%s1586 + $0x552] sm:$0xff]
      %v1764 = vld [vmem:[%s1586 + $0x55a] sm:$0xff]
      %v1765 = vld [vmem:[%s1586 + $0x58a] sm:$0xff]
      %v1766 = vld [vmem:[%s1586 + $0x592] sm:$0xff]
      %v1767 = vld [vmem:[%s1586 + $0x5c2] sm:$0xff]
      %v1768 = vld [vmem:[%s1586 + $0x5ca] sm:$0xff]
      %v1769 = vld [vmem:[%s1586 + $0x5fa] sm:$0xff]
      %v1770 = vld [vmem:[%s1586 + $0x602] sm:$0xff]
      %v1771 = vld [vmem:[%s1586 + $0x632] sm:$0xff]
      %v1772 = vld [vmem:[%s1586 + $0x63a] sm:$0xff]
      %v1773 = vld [vmem:[%s1586 + $0x66a] sm:$0xff]
      %v1774 = vld [vmem:[%s1586 + $0x672] sm:$0xff]
      %v1775 = vld [vmem:[%s1586 + $0x6a2] sm:$0xff]
      %v1776 = vld [vmem:[%s1586 + $0x6aa] sm:$0xff]
      %v1777 = vld [vmem:[%s1586 + $0x6da] sm:$0xff]
      %v1778 = vld [vmem:[%s1586 + $0x6e2] sm:$0xff]
      %v1779 = vld [vmem:[%s1635 + $0x1] sm:$0x1]
      %v1780 = vlaneseq
      %v1781 = vshrl.u32 %v1780, 7
      %v1782 = vsub.s32 0, %v1781
      %v1783 = vrot.slane %v1779, %v1782
      %v1784 = vmul.f32 %v1783, %v1731
      %v1785 = vmul.f32 %v1783, %v1732
      %v1786 = vmul.f32 %v1783, %v1733
      %v1787 = vmul.f32 %v1783, %v1734
      %v1788 = vmul.f32 %v1783, %v1735
      %v1789 = vmul.f32 %v1783, %v1736
      %v1790 = vmul.f32 %v1783, %v1737
      %v1791 = vmul.f32 %v1783, %v1738
      %v1792 = vmul.f32 %v1783, %v1739
      %v1793 = vmul.f32 %v1783, %v1740
      %v1794 = vmul.f32 %v1783, %v1741
      %v1795 = vmul.f32 %v1783, %v1742
      %v1796 = vmul.f32 %v1783, %v1743
      %v1797 = vmul.f32 %v1783, %v1744
      %v1798 = vmul.f32 %v1783, %v1745
      %v1799 = vmul.f32 %v1783, %v1746
      %v1800 = vadd.f32 %v1715, %v1784
      %v1801 = vadd.f32 %v1716, %v1785
      %v1802 = vadd.f32 %v1717, %v1786
      %v1803 = vadd.f32 %v1718, %v1787
      %v1804 = vadd.f32 %v1719, %v1788
      %v1805 = vadd.f32 %v1720, %v1789
      %v1806 = vadd.f32 %v1721, %v1790
      %v1807 = vadd.f32 %v1722, %v1791
      %v1808 = vadd.f32 %v1723, %v1792
      %v1809 = vadd.f32 %v1724, %v1793
      %v1810 = vadd.f32 %v1725, %v1794
      %v1811 = vadd.f32 %v1726, %v1795
      %v1812 = vadd.f32 %v1727, %v1796
      %v1813 = vadd.f32 %v1728, %v1797
      %v1814 = vadd.f32 %v1729, %v1798
      %v1815 = vadd.f32 %v1730, %v1799
      %v1816 = vld [vmem:[%s1635 + $0x4] sm:$0x1]
      %v1817 = vlaneseq
      %v1818 = vshrl.u32 %v1817, 7
      %v1819 = vsub.s32 0, %v1818
      %v1820 = vrot.slane %v1816, %v1819
      %v1821 = vmul.f32 %v1820, %v1747
      %v1822 = vmul.f32 %v1820, %v1748
      %v1823 = vmul.f32 %v1820, %v1749
      %v1824 = vmul.f32 %v1820, %v1750
      %v1825 = vmul.f32 %v1820, %v1751
      %v1826 = vmul.f32 %v1820, %v1752
      %v1827 = vmul.f32 %v1820, %v1753
      %v1828 = vmul.f32 %v1820, %v1754
      %v1829 = vmul.f32 %v1820, %v1755
      %v1830 = vmul.f32 %v1820, %v1756
      %v1831 = vmul.f32 %v1820, %v1757
      %v1832 = vmul.f32 %v1820, %v1758
      %v1833 = vmul.f32 %v1820, %v1759
      %v1834 = vmul.f32 %v1820, %v1760
      %v1835 = vmul.f32 %v1820, %v1761
      %v1836 = vmul.f32 %v1820, %v1762
      %v1837 = vadd.f32 %v1800, %v1821
      %v1838 = vadd.f32 %v1801, %v1822
      %v1839 = vadd.f32 %v1802, %v1823
      %v1840 = vadd.f32 %v1803, %v1824
      %v1841 = vadd.f32 %v1804, %v1825
      %v1842 = vadd.f32 %v1805, %v1826
      %v1843 = vadd.f32 %v1806, %v1827
      %v1844 = vadd.f32 %v1807, %v1828
      %v1845 = vadd.f32 %v1808, %v1829
      %v1846 = vadd.f32 %v1809, %v1830
      %v1847 = vadd.f32 %v1810, %v1831
      %v1848 = vadd.f32 %v1811, %v1832
      %v1849 = vadd.f32 %v1812, %v1833
      %v1850 = vadd.f32 %v1813, %v1834
      %v1851 = vadd.f32 %v1814, %v1835
      %v1852 = vadd.f32 %v1815, %v1836
      %v1853 = vld [vmem:[%s1635 + $0x7] sm:$0x1]
      %v1854 = vlaneseq
      %v1855 = vshrl.u32 %v1854, 7
      %v1856 = vsub.s32 0, %v1855
      %v1857 = vrot.slane %v1853, %v1856
      %v1858 = vmul.f32 %v1857, %v1763
      %v1859 = vmul.f32 %v1857, %v1764
      %v1860 = vmul.f32 %v1857, %v1765
      %v1861 = vmul.f32 %v1857, %v1766
      %v1862 = vmul.f32 %v1857, %v1767
      %v1863 = vmul.f32 %v1857, %v1768
      %v1864 = vmul.f32 %v1857, %v1769
      %v1865 = vmul.f32 %v1857, %v1770
      %v1866 = vmul.f32 %v1857, %v1771
      %v1867 = vmul.f32 %v1857, %v1772
      %v1868 = vmul.f32 %v1857, %v1773
      %v1869 = vmul.f32 %v1857, %v1774
      %v1870 = vmul.f32 %v1857, %v1775
      %v1871 = vmul.f32 %v1857, %v1776
      %v1872 = vmul.f32 %v1857, %v1777
      %v1873 = vmul.f32 %v1857, %v1778
      %v1874 = vadd.f32 %v1837, %v1858
      %v1875 = vadd.f32 %v1838, %v1859
      %v1876 = vadd.f32 %v1839, %v1860
      %v1877 = vadd.f32 %v1840, %v1861
      %v1878 = vadd.f32 %v1841, %v1862
      %v1879 = vadd.f32 %v1842, %v1863
      %v1880 = vadd.f32 %v1843, %v1864
      %v1881 = vadd.f32 %v1844, %v1865
      %v1882 = vadd.f32 %v1845, %v1866
      %v1883 = vadd.f32 %v1846, %v1867
      %v1884 = vadd.f32 %v1847, %v1868
      %v1885 = vadd.f32 %v1848, %v1869
      %v1886 = vadd.f32 %v1849, %v1870
      %v1887 = vadd.f32 %v1850, %v1871
      %v1888 = vadd.f32 %v1851, %v1872
      %v1889 = vadd.f32 %v1852, %v1873
      %v1890 = vld [vmem:[%s1586 + $0x1e] sm:$0xff]
      %v1891 = vld [vmem:[%s1586 + $0x26] sm:$0xff]
      %v1892 = vld [vmem:[%s1586 + $0x56] sm:$0xff]
      %v1893 = vld [vmem:[%s1586 + $0x5e] sm:$0xff]
      %v1894 = vld [vmem:[%s1586 + $0x8e] sm:$0xff]
      %v1895 = vld [vmem:[%s1586 + $0x96] sm:$0xff]
      %v1896 = vld [vmem:[%s1586 + $0xc6] sm:$0xff]
      %v1897 = vld [vmem:[%s1586 + $0xce] sm:$0xff]
      %v1898 = vld [vmem:[%s1586 + $0xfe] sm:$0xff]
      %v1899 = vld [vmem:[%s1586 + $0x106] sm:$0xff]
      %v1900 = vld [vmem:[%s1586 + $0x136] sm:$0xff]
      %v1901 = vld [vmem:[%s1586 + $0x13e] sm:$0xff]
      %v1902 = vld [vmem:[%s1586 + $0x16e] sm:$0xff]
      %v1903 = vld [vmem:[%s1586 + $0x176] sm:$0xff]
      %v1904 = vld [vmem:[%s1586 + $0x1a6] sm:$0xff]
      %v1905 = vld [vmem:[%s1586 + $0x1ae] sm:$0xff]
      %v1906 = vld [vmem:[%s1586 + $0x2be] sm:$0xff]
      %v1907 = vld [vmem:[%s1586 + $0x2c6] sm:$0xff]
      %v1908 = vld [vmem:[%s1586 + $0x2f6] sm:$0xff]
      %v1909 = vld [vmem:[%s1586 + $0x2fe] sm:$0xff]
      %v1910 = vld [vmem:[%s1586 + $0x32e] sm:$0xff]
      %v1911 = vld [vmem:[%s1586 + $0x336] sm:$0xff]
      %v1912 = vld [vmem:[%s1586 + $0x366] sm:$0xff]
      %v1913 = vld [vmem:[%s1586 + $0x36e] sm:$0xff]
      %v1914 = vld [vmem:[%s1586 + $0x39e] sm:$0xff]
      %v1915 = vld [vmem:[%s1586 + $0x3a6] sm:$0xff]
      %v1916 = vld [vmem:[%s1586 + $0x3d6] sm:$0xff]
      %v1917 = vld [vmem:[%s1586 + $0x3de] sm:$0xff]
      %v1918 = vld [vmem:[%s1586 + $0x40e] sm:$0xff]
      %v1919 = vld [vmem:[%s1586 + $0x416] sm:$0xff]
      %v1920 = vld [vmem:[%s1586 + $0x446] sm:$0xff]
      %v1921 = vld [vmem:[%s1586 + $0x44e] sm:$0xff]
      %v1922 = vld [vmem:[%s1586 + $0x55e] sm:$0xff]
      %v1923 = vld [vmem:[%s1586 + $0x566] sm:$0xff]
      %v1924 = vld [vmem:[%s1586 + $0x596] sm:$0xff]
      %v1925 = vld [vmem:[%s1586 + $0x59e] sm:$0xff]
      %v1926 = vld [vmem:[%s1586 + $0x5ce] sm:$0xff]
      %v1927 = vld [vmem:[%s1586 + $0x5d6] sm:$0xff]
      %v1928 = vld [vmem:[%s1586 + $0x606] sm:$0xff]
      %v1929 = vld [vmem:[%s1586 + $0x60e] sm:$0xff]
      %v1930 = vld [vmem:[%s1586 + $0x63e] sm:$0xff]
      %v1931 = vld [vmem:[%s1586 + $0x646] sm:$0xff]
      %v1932 = vld [vmem:[%s1586 + $0x676] sm:$0xff]
      %v1933 = vld [vmem:[%s1586 + $0x67e] sm:$0xff]
      %v1934 = vld [vmem:[%s1586 + $0x6ae] sm:$0xff]
      %v1935 = vld [vmem:[%s1586 + $0x6b6] sm:$0xff]
      %v1936 = vld [vmem:[%s1586 + $0x6e6] sm:$0xff]
      %v1937 = vld [vmem:[%s1586 + $0x6ee] sm:$0xff]
      %v1938 = vld [vmem:[%s1635 + $0x2] sm:$0x1]
      %v1939 = vlaneseq
      %v1940 = vshrl.u32 %v1939, 7
      %v1941 = vsub.s32 0, %v1940
      %v1942 = vrot.slane %v1938, %v1941
      %v1943 = vmul.f32 %v1942, %v1890
      %v1944 = vmul.f32 %v1942, %v1891
      %v1945 = vmul.f32 %v1942, %v1892
      %v1946 = vmul.f32 %v1942, %v1893
      %v1947 = vmul.f32 %v1942, %v1894
      %v1948 = vmul.f32 %v1942, %v1895
      %v1949 = vmul.f32 %v1942, %v1896
      %v1950 = vmul.f32 %v1942, %v1897
      %v1951 = vmul.f32 %v1942, %v1898
      %v1952 = vmul.f32 %v1942, %v1899
      %v1953 = vmul.f32 %v1942, %v1900
      %v1954 = vmul.f32 %v1942, %v1901
      %v1955 = vmul.f32 %v1942, %v1902
      %v1956 = vmul.f32 %v1942, %v1903
      %v1957 = vmul.f32 %v1942, %v1904
      %v1958 = vmul.f32 %v1942, %v1905
      %v1959 = vadd.f32 %v1874, %v1943
      %v1960 = vadd.f32 %v1875, %v1944
      %v1961 = vadd.f32 %v1876, %v1945
      %v1962 = vadd.f32 %v1877, %v1946
      %v1963 = vadd.f32 %v1878, %v1947
      %v1964 = vadd.f32 %v1879, %v1948
      %v1965 = vadd.f32 %v1880, %v1949
      %v1966 = vadd.f32 %v1881, %v1950
      %v1967 = vadd.f32 %v1882, %v1951
      %v1968 = vadd.f32 %v1883, %v1952
      %v1969 = vadd.f32 %v1884, %v1953
      %v1970 = vadd.f32 %v1885, %v1954
      %v1971 = vadd.f32 %v1886, %v1955
      %v1972 = vadd.f32 %v1887, %v1956
      %v1973 = vadd.f32 %v1888, %v1957
      %v1974 = vadd.f32 %v1889, %v1958
      %v1975 = vld [vmem:[%s1635 + $0x5] sm:$0x1]
      %v1976 = vlaneseq
      %v1977 = vshrl.u32 %v1976, 7
      %v1978 = vsub.s32 0, %v1977
      %v1979 = vrot.slane %v1975, %v1978
      %v1980 = vmul.f32 %v1979, %v1906
      %v1981 = vmul.f32 %v1979, %v1907
      %v1982 = vmul.f32 %v1979, %v1908
      %v1983 = vmul.f32 %v1979, %v1909
      %v1984 = vmul.f32 %v1979, %v1910
      %v1985 = vmul.f32 %v1979, %v1911
      %v1986 = vmul.f32 %v1979, %v1912
      %v1987 = vmul.f32 %v1979, %v1913
      %v1988 = vmul.f32 %v1979, %v1914
      %v1989 = vmul.f32 %v1979, %v1915
      %v1990 = vmul.f32 %v1979, %v1916
      %v1991 = vmul.f32 %v1979, %v1917
      %v1992 = vmul.f32 %v1979, %v1918
      %v1993 = vmul.f32 %v1979, %v1919
      %v1994 = vmul.f32 %v1979, %v1920
      %v1995 = vmul.f32 %v1979, %v1921
      %v1996 = vadd.f32 %v1959, %v1980
      %v1997 = vadd.f32 %v1960, %v1981
      %v1998 = vadd.f32 %v1961, %v1982
      %v1999 = vadd.f32 %v1962, %v1983
      %v2000 = vadd.f32 %v1963, %v1984
      %v2001 = vadd.f32 %v1964, %v1985
      %v2002 = vadd.f32 %v1965, %v1986
      %v2003 = vadd.f32 %v1966, %v1987
      %v2004 = vadd.f32 %v1967, %v1988
      %v2005 = vadd.f32 %v1968, %v1989
      %v2006 = vadd.f32 %v1969, %v1990
      %v2007 = vadd.f32 %v1970, %v1991
      %v2008 = vadd.f32 %v1971, %v1992
      %v2009 = vadd.f32 %v1972, %v1993
      %v2010 = vadd.f32 %v1973, %v1994
      %v2011 = vadd.f32 %v1974, %v1995
      %v2012 = vld [vmem:[%s1635 + $0x8] sm:$0x1]
      %v2013 = vlaneseq
      %v2014 = vshrl.u32 %v2013, 7
      %v2015 = vsub.s32 0, %v2014
      %v2016 = vrot.slane %v2012, %v2015
      %v2017 = vmul.f32 %v2016, %v1922
      %v2018 = vmul.f32 %v2016, %v1923
      %v2019 = vmul.f32 %v2016, %v1924
      %v2020 = vmul.f32 %v2016, %v1925
      %v2021 = vmul.f32 %v2016, %v1926
      %v2022 = vmul.f32 %v2016, %v1927
      %v2023 = vmul.f32 %v2016, %v1928
      %v2024 = vmul.f32 %v2016, %v1929
      %v2025 = vmul.f32 %v2016, %v1930
      %v2026 = vmul.f32 %v2016, %v1931
      %v2027 = vmul.f32 %v2016, %v1932
      %v2028 = vmul.f32 %v2016, %v1933
      %v2029 = vmul.f32 %v2016, %v1934
      %v2030 = vmul.f32 %v2016, %v1935
      %v2031 = vmul.f32 %v2016, %v1936
      %v2032 = vmul.f32 %v2016, %v1937
      %v2033 = vadd.f32 %v1996, %v2017
      %v2034 = vadd.f32 %v1997, %v2018
      %v2035 = vadd.f32 %v1998, %v2019
      %v2036 = vadd.f32 %v1999, %v2020
      %v2037 = vadd.f32 %v2000, %v2021
      %v2038 = vadd.f32 %v2001, %v2022
      %v2039 = vadd.f32 %v2002, %v2023
      %v2040 = vadd.f32 %v2003, %v2024
      %v2041 = vadd.f32 %v2004, %v2025
      %v2042 = vadd.f32 %v2005, %v2026
      %v2043 = vadd.f32 %v2006, %v2027
      %v2044 = vadd.f32 %v2007, %v2028
      %v2045 = vadd.f32 %v2008, %v2029
      %v2046 = vadd.f32 %v2009, %v2030
      %v2047 = vadd.f32 %v2010, %v2031
      %v2048 = vadd.f32 %v2011, %v2032
      %s2049 = scalar_lea.vmem %s4, 8
      %v2050 = vld [vmem:[%s2049] sm:$0xff]
      %v2051 = vld [vmem:[%s7 + $0x2] sm:$0x1]
      %v2052 = vlaneseq
      %v2053 = vshrl.u32 %v2052, 7
      %v2054 = vsub.s32 0, %v2053
      %v2055 = vrot.slane %v2051, %v2054
      %v2057 = vsel %vm396, %v2033, 0
      %v2060 = vsel %vm396, %v2034, 0
      %v2063 = vsel %vm396, %v2035, 0
      %v2066 = vsel %vm396, %v2036, 0
      %v2069 = vsel %vm396, %v2037, 0
      %v2072 = vsel %vm396, %v2038, 0
      %v2075 = vsel %vm396, %v2039, 0
      %v2078 = vsel %vm396, %v2040, 0
      %v2081 = vsel %vm396, %v2041, 0
      %v2084 = vsel %vm396, %v2042, 0
      %v2087 = vsel %vm396, %v2043, 0
      %v2090 = vsel %vm396, %v2044, 0
      %v2093 = vsel %vm396, %v2045, 0
      %v2096 = vsel %vm396, %v2046, 0
      %v2099 = vsel %vm396, %v2047, 0
      %v2102 = vsel %vm396, %v2048, 0
      %2104 = vmatprep.subr.mxu0 0.0
      %2105 = vmatpush1.msra.mxu0 %v2050
      %2106 = vmatprep.subr.mxu0 0.0
      %2107 = vmatpush1.msra.mxu0 0.0
      %2108 = vmatprep.subr.mxu0 0.0
      %2109 = vmatpush1.msra.mxu0 0.0
      %2110 = vmatprep.subr.mxu0 0.0
      %2111 = vmatpush1.msra.mxu0 0.0
      %2112 = vmatprep.subr.mxu0 0.0
      %2113 = vmatpush1.msra.mxu0 0.0
      %2114 = vmatprep.subr.mxu0 0.0
      %2115 = vmatpush1.msra.mxu0 0.0
      %2116 = vmatprep.subr.mxu0 0.0
      %2117 = vmatpush1.msra.mxu0 0.0
      %2118 = vmatprep.subr.mxu0 0.0
      %2119 = vmatpush1.msra.mxu0 0.0
      %2120 = vmatprep.subr.mxu0 0.0
      %2121 = vmatpush1.msra.mxu0 0.0
      %2122 = vmatprep.subr.mxu0 0.0
      %2123 = vmatpush1.msra.mxu0 0.0
      %2124 = vmatprep.subr.mxu0 0.0
      %2125 = vmatpush1.msra.mxu0 0.0
      %2126 = vmatprep.subr.mxu0 0.0
      %2127 = vmatpush1.msra.mxu0 0.0
      %2128 = vmatprep.subr.mxu0 0.0
      %2129 = vmatpush1.msra.mxu0 0.0
      %2130 = vmatprep.subr.mxu0 0.0
      %2131 = vmatpush1.msra.mxu0 0.0
      %2132 = vmatprep.subr.mxu0 0.0
      %2133 = vmatpush1.msra.mxu0 0.0
      %2134 = vmatprep.subr.mxu0 0.0
      %2135 = vmatpush1.msra.mxu0 0.0
      %2136 = vmatprep.subr.mxu0 0.0
      %2137 = vmatpush1.msra.mxu0 0.0
      %2138 = vmatprep.subr.mxu0 0.0
      %2139 = vmatpush1.msra.mxu0 0.0
      %2140 = vmatprep.subr.mxu0 0.0
      %2141 = vmatpush1.msra.mxu0 0.0
      %2142 = vmatprep.subr.mxu0 0.0
      %2143 = vmatpush1.msra.mxu0 0.0
      %2144 = vmatprep.subr.mxu0 0.0
      %2145 = vmatpush1.msra.mxu0 0.0
      %2146 = vmatprep.subr.mxu0 0.0
      %2147 = vmatpush1.msra.mxu0 0.0
      %2148 = vmatprep.subr.mxu0 0.0
      %2149 = vmatpush1.msra.mxu0 0.0
      %2150 = vmatprep.subr.mxu0 0.0
      %2151 = vmatpush1.msra.mxu0 0.0
      %2152 = vmatprep.subr.mxu0 0.0
      %2153 = vmatpush1.msra.mxu0 0.0
      %2154 = vmatprep.subr.mxu0 0.0
      %2155 = vmatpush1.msra.mxu0 0.0
      %2156 = vmatprep.subr.mxu0 0.0
      %2157 = vmatpush1.msra.mxu0 0.0
      %2158 = vmatprep.subr.mxu0 0.0
      %2159 = vmatpush1.msra.mxu0 0.0
      %2160 = vmatprep.subr.mxu0 0.0
      %2161 = vmatpush1.msra.mxu0 0.0
      %2162 = vmatprep.subr.mxu0 0.0
      %2163 = vmatpush1.msra.mxu0 0.0
      %2164 = vmatprep.subr.mxu0 0.0
      %2165 = vmatpush1.msra.mxu0 0.0
      %2166 = vmatprep.subr.mxu0 0.0
      %2167 = vmatpush1.msra.mxu0 0.0
      %2168 = vmatprep.mubr.f32.mxu0 0.0
      %2169 = vmatmul.mubr.f32.gmra.mrb[0].mxu0 %v2057
      %v2170 = vpop.f32.mrb[0].mxu0
      %v2171 = vadd.f32 %v2055, %v2170
      %v2172 = vpop.f32.mrb[0].mxu0
      %2173 = vmatprep.mubr.f32.mxu0 0.0
      %2174 = vmatmul.mubr.f32.gmra.mrb[0].mxu0 %v2060
      %v2175 = vpop.f32.mrb[0].mxu0
      %v2176 = vadd.f32 %v2055, %v2175
      %v2177 = vpop.f32.mrb[0].mxu0
      %2178 = vmatprep.mubr.f32.mxu0 0.0
      %2179 = vmatmul.mubr.f32.gmra.mrb[0].mxu0 %v2063
      %v2180 = vpop.f32.mrb[0].mxu0
      %v2181 = vadd.f32 %v2055, %v2180
      %v2182 = vpop.f32.mrb[0].mxu0
      %2183 = vmatprep.mubr.f32.mxu0 0.0
      %2184 = vmatmul.mubr.f32.gmra.mrb[0].mxu0 %v2066
      %v2185 = vpop.f32.mrb[0].mxu0
      %v2186 = vadd.f32 %v2055, %v2185
      %v2187 = vpop.f32.mrb[0].mxu0
      %2188 = vmatprep.mubr.f32.mxu0 0.0
      %2189 = vmatmul.mubr.f32.gmra.mrb[0].mxu0 %v2069
      %v2190 = vpop.f32.mrb[0].mxu0
      %v2191 = vadd.f32 %v2055, %v2190
      %v2192 = vpop.f32.mrb[0].mxu0
      %2193 = vmatprep.mubr.f32.mxu0 0.0
      %2194 = vmatmul.mubr.f32.gmra.mrb[0].mxu0 %v2072
      %v2195 = vpop.f32.mrb[0].mxu0
      %v2196 = vadd.f32 %v2055, %v2195
      %v2197 = vpop.f32.mrb[0].mxu0
      %2198 = vmatprep.mubr.f32.mxu0 0.0
      %2199 = vmatmul.mubr.f32.gmra.mrb[0].mxu0 %v2075
      %v2200 = vpop.f32.mrb[0].mxu0
      %v2201 = vadd.f32 %v2055, %v2200
      %v2202 = vpop.f32.mrb[0].mxu0
      %2203 = vmatprep.mubr.f32.mxu0 0.0
      %2204 = vmatmul.mubr.f32.gmra.mrb[0].mxu0 %v2078
      %v2205 = vpop.f32.mrb[0].mxu0
      %v2206 = vadd.f32 %v2055, %v2205
      %v2207 = vpop.f32.mrb[0].mxu0
      %2208 = vmatprep.mubr.f32.mxu0 0.0
      %2209 = vmatmul.mubr.f32.gmra.mrb[0].mxu0 %v2081
      %v2210 = vpop.f32.mrb[0].mxu0
      %v2211 = vadd.f32 %v2055, %v2210
      %v2212 = vpop.f32.mrb[0].mxu0
      %2213 = vmatprep.mubr.f32.mxu0 0.0
      %2214 = vmatmul.mubr.f32.gmra.mrb[0].mxu0 %v2084
      %v2215 = vpop.f32.mrb[0].mxu0
      %v2216 = vadd.f32 %v2055, %v2215
      %v2217 = vpop.f32.mrb[0].mxu0
      %2218 = vmatprep.mubr.f32.mxu0 0.0
      %2219 = vmatmul.mubr.f32.gmra.mrb[0].mxu0 %v2087
      %v2220 = vpop.f32.mrb[0].mxu0
      %v2221 = vadd.f32 %v2055, %v2220
      %v2222 = vpop.f32.mrb[0].mxu0
      %2223 = vmatprep.mubr.f32.mxu0 0.0
      %2224 = vmatmul.mubr.f32.gmra.mrb[0].mxu0 %v2090
      %v2225 = vpop.f32.mrb[0].mxu0
      %v2226 = vadd.f32 %v2055, %v2225
      %v2227 = vpop.f32.mrb[0].mxu0
      %2228 = vmatprep.mubr.f32.mxu0 0.0
      %2229 = vmatmul.mubr.f32.gmra.mrb[0].mxu0 %v2093
      %v2230 = vpop.f32.mrb[0].mxu0
      %v2231 = vadd.f32 %v2055, %v2230
      %v2232 = vpop.f32.mrb[0].mxu0
      %2233 = vmatprep.mubr.f32.mxu0 0.0
      %2234 = vmatmul.mubr.f32.gmra.mrb[0].mxu0 %v2096
      %v2235 = vpop.f32.mrb[0].mxu0
      %v2236 = vadd.f32 %v2055, %v2235
      %v2237 = vpop.f32.mrb[0].mxu0
      %2238 = vmatprep.mubr.f32.mxu0 0.0
      %2239 = vmatmul.mubr.f32.gmra.mrb[0].mxu0 %v2099
      %v2240 = vpop.f32.mrb[0].mxu0
      %v2241 = vadd.f32 %v2055, %v2240
      %v2242 = vpop.f32.mrb[0].mxu0
      %2243 = vmatprep.mubr.f32.mxu0 0.0
      %2244 = vmatmul.mubr.f32.gmra.mrb[0].mxu0 %v2102
      %v2245 = vpop.f32.mrb[0].mxu0
      %v2246 = vadd.f32 %v2055, %v2245
      %v2247 = vpop.f32.mrb[0].mxu0
      %2248 = vdwg.mxu0
      %v2249 = vmax.f32 %v2171, 0.0
      %v2250 = vmax.f32 %v2176, 0.0
      %v2251 = vmax.f32 %v2181, 0.0
      %v2252 = vmax.f32 %v2186, 0.0
      %v2253 = vmax.f32 %v2191, 0.0
      %v2254 = vmax.f32 %v2196, 0.0
      %v2255 = vmax.f32 %v2201, 0.0
      %v2256 = vmax.f32 %v2206, 0.0
      %v2257 = vmax.f32 %v2211, 0.0
      %v2258 = vmax.f32 %v2216, 0.0
      %v2259 = vmax.f32 %v2221, 0.0
      %v2260 = vmax.f32 %v2226, 0.0
      %v2261 = vmax.f32 %v2231, 0.0
      %v2262 = vmax.f32 %v2236, 0.0
      %v2263 = vmax.f32 %v2241, 0.0
      %v2264 = vmax.f32 %v2246, 0.0
      %s2265 = scalar_lea.vmem %s6, 256
      %v2266 = vld [vmem:[%s2265] sm:$0xff]
      %v2267 = vld [vmem:[%s2265 + $0x8] sm:$0xff]
      %v2268 = vld [vmem:[%s2265 + $0x10] sm:$0xff]
      %v2269 = vld [vmem:[%s2265 + $0x18] sm:$0xff]
      %v2270 = vld [vmem:[%s2265 + $0x20] sm:$0xff]
      %v2271 = vld [vmem:[%s2265 + $0x28] sm:$0xff]
      %v2272 = vld [vmem:[%s2265 + $0x30] sm:$0xff]
      %v2273 = vld [vmem:[%s2265 + $0x38] sm:$0xff]
      %v2274 = vld [vmem:[%s2265 + $0x40] sm:$0xff]
      %v2275 = vld [vmem:[%s2265 + $0x48] sm:$0xff]
      %v2276 = vld [vmem:[%s2265 + $0x50] sm:$0xff]
      %v2277 = vld [vmem:[%s2265 + $0x58] sm:$0xff]
      %v2278 = vld [vmem:[%s2265 + $0x60] sm:$0xff]
      %v2279 = vld [vmem:[%s2265 + $0x68] sm:$0xff]
      %v2280 = vld [vmem:[%s2265 + $0x70] sm:$0xff]
      %v2281 = vld [vmem:[%s2265 + $0x78] sm:$0xff]
      %2282 = vmatprep.subr.mxu0 0.0
      %2283 = vmatpush1.msra.mxu0 %v2266
      %2284 = vmatprep.subr.mxu0 0.0
      %2285 = vmatpush1.msra.mxu0 %v2267
      %2286 = vmatprep.subr.mxu0 0.0
      %2287 = vmatpush1.msra.mxu0 %v2268
      %2288 = vmatprep.subr.mxu0 0.0
      %2289 = vmatpush1.msra.mxu0 %v2269
      %2290 = vmatprep.subr.mxu0 0.0
      %2291 = vmatpush1.msra.mxu0 %v2270
      %2292 = vmatprep.subr.mxu0 0.0
      %2293 = vmatpush1.msra.mxu0 %v2271
      %2294 = vmatprep.subr.mxu0 0.0
      %2295 = vmatpush1.msra.mxu0 %v2272
      %2296 = vmatprep.subr.mxu0 0.0
      %2297 = vmatpush1.msra.mxu0 %v2273
      %2298 = vmatprep.subr.mxu0 0.0
      %2299 = vmatpush1.msra.mxu0 %v2274
      %2300 = vmatprep.subr.mxu0 0.0
      %2301 = vmatpush1.msra.mxu0 %v2275
      %2302 = vmatprep.subr.mxu0 0.0
      %2303 = vmatpush1.msra.mxu0 %v2276
      %2304 = vmatprep.subr.mxu0 0.0
      %2305 = vmatpush1.msra.mxu0 %v2277
      %2306 = vmatprep.subr.mxu0 0.0
      %2307 = vmatpush1.msra.mxu0 %v2278
      %2308 = vmatprep.subr.mxu0 0.0
      %2309 = vmatpush1.msra.mxu0 %v2279
      %2310 = vmatprep.subr.mxu0 0.0
      %2311 = vmatpush1.msra.mxu0 %v2280
      %2312 = vmatprep.subr.mxu0 0.0
      %2313 = vmatpush1.msra.mxu0 %v2281
      %2314 = vmatprep.subr.mxu0 0.0
      %2315 = vmatpush1.msra.mxu0 0.0
      %2316 = vmatprep.subr.mxu0 0.0
      %2317 = vmatpush1.msra.mxu0 0.0
      %2318 = vmatprep.subr.mxu0 0.0
      %2319 = vmatpush1.msra.mxu0 0.0
      %2320 = vmatprep.subr.mxu0 0.0
      %2321 = vmatpush1.msra.mxu0 0.0
      %2322 = vmatprep.subr.mxu0 0.0
      %2323 = vmatpush1.msra.mxu0 0.0
      %2324 = vmatprep.subr.mxu0 0.0
      %2325 = vmatpush1.msra.mxu0 0.0
      %2326 = vmatprep.subr.mxu0 0.0
      %2327 = vmatpush1.msra.mxu0 0.0
      %2328 = vmatprep.subr.mxu0 0.0
      %2329 = vmatpush1.msra.mxu0 0.0
      %2330 = vmatprep.subr.mxu0 0.0
      %2331 = vmatpush1.msra.mxu0 0.0
      %2332 = vmatprep.subr.mxu0 0.0
      %2333 = vmatpush1.msra.mxu0 0.0
      %2334 = vmatprep.subr.mxu0 0.0
      %2335 = vmatpush1.msra.mxu0 0.0
      %2336 = vmatprep.subr.mxu0 0.0
      %2337 = vmatpush1.msra.mxu0 0.0
      %2338 = vmatprep.subr.mxu0 0.0
      %2339 = vmatpush1.msra.mxu0 0.0
      %2340 = vmatprep.subr.mxu0 0.0
      %2341 = vmatpush1.msra.mxu0 0.0
      %2342 = vmatprep.subr.mxu0 0.0
      %2343 = vmatpush1.msra.mxu0 0.0
      %2344 = vmatprep.subr.mxu0 0.0
      %2345 = vmatpush1.msra.mxu0 0.0
      %2346 = vmatprep.mubr.f32.mxu0 0.0
      %2347 = vmatmul.mubr.f32.gmra.mrb[0].mxu0 %v2249
      %v2348 = vpop.f32.mrb[0].mxu0
      %v2349 = vadd.f32 0.0, %v2348
      %v2350 = vpop.f32.mrb[0].mxu0
      %2351 = vmatprep.mubr.f32.mxu0 0.0
      %2352 = vmatmul.mubr.f32.gmra.mrb[0].mxu0 %v2250
      %v2353 = vpop.f32.mrb[0].mxu0
      %v2354 = vadd.f32 0.0, %v2353
      %v2355 = vpop.f32.mrb[0].mxu0
      %2356 = vmatprep.mubr.f32.mxu0 0.0
      %2357 = vmatmul.mubr.f32.gmra.mrb[0].mxu0 %v2251
      %v2358 = vpop.f32.mrb[0].mxu0
      %v2359 = vadd.f32 0.0, %v2358
      %v2360 = vpop.f32.mrb[0].mxu0
      %2361 = vmatprep.mubr.f32.mxu0 0.0
      %2362 = vmatmul.mubr.f32.gmra.mrb[0].mxu0 %v2252
      %v2363 = vpop.f32.mrb[0].mxu0
      %v2364 = vadd.f32 0.0, %v2363
      %v2365 = vpop.f32.mrb[0].mxu0
      %2366 = vmatprep.mubr.f32.mxu0 0.0
      %2367 = vmatmul.mubr.f32.gmra.mrb[0].mxu0 %v2253
      %v2368 = vpop.f32.mrb[0].mxu0
      %v2369 = vadd.f32 0.0, %v2368
      %v2370 = vpop.f32.mrb[0].mxu0
      %2371 = vmatprep.mubr.f32.mxu0 0.0
      %2372 = vmatmul.mubr.f32.gmra.mrb[0].mxu0 %v2254
      %v2373 = vpop.f32.mrb[0].mxu0
      %v2374 = vadd.f32 0.0, %v2373
      %v2375 = vpop.f32.mrb[0].mxu0
      %2376 = vmatprep.mubr.f32.mxu0 0.0
      %2377 = vmatmul.mubr.f32.gmra.mrb[0].mxu0 %v2255
      %v2378 = vpop.f32.mrb[0].mxu0
      %v2379 = vadd.f32 0.0, %v2378
      %v2380 = vpop.f32.mrb[0].mxu0
      %2381 = vmatprep.mubr.f32.mxu0 0.0
      %2382 = vmatmul.mubr.f32.gmra.mrb[0].mxu0 %v2256
      %v2383 = vpop.f32.mrb[0].mxu0
      %v2384 = vadd.f32 0.0, %v2383
      %v2385 = vpop.f32.mrb[0].mxu0
      %2386 = vmatprep.mubr.f32.mxu0 0.0
      %2387 = vmatmul.mubr.f32.gmra.mrb[0].mxu0 %v2257
      %v2388 = vpop.f32.mrb[0].mxu0
      %v2389 = vadd.f32 0.0, %v2388
      %v2390 = vpop.f32.mrb[0].mxu0
      %2391 = vmatprep.mubr.f32.mxu0 0.0
      %2392 = vmatmul.mubr.f32.gmra.mrb[0].mxu0 %v2258
      %v2393 = vpop.f32.mrb[0].mxu0
      %v2394 = vadd.f32 0.0, %v2393
      %v2395 = vpop.f32.mrb[0].mxu0
      %2396 = vmatprep.mubr.f32.mxu0 0.0
      %2397 = vmatmul.mubr.f32.gmra.mrb[0].mxu0 %v2259
      %v2398 = vpop.f32.mrb[0].mxu0
      %v2399 = vadd.f32 0.0, %v2398
      %v2400 = vpop.f32.mrb[0].mxu0
      %2401 = vmatprep.mubr.f32.mxu0 0.0
      %2402 = vmatmul.mubr.f32.gmra.mrb[0].mxu0 %v2260
      %v2403 = vpop.f32.mrb[0].mxu0
      %v2404 = vadd.f32 0.0, %v2403
      %v2405 = vpop.f32.mrb[0].mxu0
      %2406 = vmatprep.mubr.f32.mxu0 0.0
      %2407 = vmatmul.mubr.f32.gmra.mrb[0].mxu0 %v2261
      %v2408 = vpop.f32.mrb[0].mxu0
      %v2409 = vadd.f32 0.0, %v2408
      %v2410 = vpop.f32.mrb[0].mxu0
      %2411 = vmatprep.mubr.f32.mxu0 0.0
      %2412 = vmatmul.mubr.f32.gmra.mrb[0].mxu0 %v2262
      %v2413 = vpop.f32.mrb[0].mxu0
      %v2414 = vadd.f32 0.0, %v2413
      %v2415 = vpop.f32.mrb[0].mxu0
      %2416 = vmatprep.mubr.f32.mxu0 0.0
      %2417 = vmatmul.mubr.f32.gmra.mrb[0].mxu0 %v2263
      %v2418 = vpop.f32.mrb[0].mxu0
      %v2419 = vadd.f32 0.0, %v2418
      %v2420 = vpop.f32.mrb[0].mxu0
      %2421 = vmatprep.mubr.f32.mxu0 0.0
      %2422 = vmatmul.mubr.f32.gmra.mrb[0].mxu0 %v2264
      %v2423 = vpop.f32.mrb[0].mxu0
      %v2424 = vadd.f32 0.0, %v2423
      %v2425 = vpop.f32.mrb[0].mxu0
      %2426 = vdwg.mxu0
      %v2427 = vadd.f32 %v1506, %v2349
      %v2428 = vadd.f32 %v1511, %v2354
      %v2429 = vadd.f32 %v1516, %v2359
      %v2430 = vadd.f32 %v1521, %v2364
      %v2431 = vadd.f32 %v1526, %v2369
      %v2432 = vadd.f32 %v1531, %v2374
      %v2433 = vadd.f32 %v1536, %v2379
      %v2434 = vadd.f32 %v1541, %v2384
      %v2435 = vadd.f32 %v1546, %v2389
      %v2436 = vadd.f32 %v1551, %v2394
      %v2437 = vadd.f32 %v1556, %v2399
      %v2438 = vadd.f32 %v1561, %v2404
      %v2439 = vadd.f32 %v1566, %v2409
      %v2440 = vadd.f32 %v1571, %v2414
      %v2441 = vadd.f32 %v1576, %v2419
      %v2442 = vadd.f32 %v1581, %v2424
      %s2443 = smul.u32 %s370, 56
      %s2444 = scalar_lea.vmem %s356, %s2443
      %v2445 = vld [vmem:[%s2444] sm:$0xff]
      %v2446 = vld [vmem:[%s2444 + $0x8] sm:$0xff]
      %v2447 = vld [vmem:[%s2444 + $0x38] sm:$0xff]
      %v2448 = vld [vmem:[%s2444 + $0x40] sm:$0xff]
      %v2449 = vld [vmem:[%s2444 + $0x70] sm:$0xff]
      %v2450 = vld [vmem:[%s2444 + $0x78] sm:$0xff]
      %v2451 = vld [vmem:[%s2444 + $0xa8] sm:$0xff]
      %v2452 = vld [vmem:[%s2444 + $0xb0] sm:$0xff]
      %v2453 = vld [vmem:[%s2444 + $0xe0] sm:$0xff]
      %v2454 = vld [vmem:[%s2444 + $0xe8] sm:$0xff]
      %v2455 = vld [vmem:[%s2444 + $0x118] sm:$0xff]
      %v2456 = vld [vmem:[%s2444 + $0x120] sm:$0xff]
      %v2457 = vld [vmem:[%s2444 + $0x150] sm:$0xff]
      %v2458 = vld [vmem:[%s2444 + $0x158] sm:$0xff]
      %v2459 = vld [vmem:[%s2444 + $0x188] sm:$0xff]
      %v2460 = vld [vmem:[%s2444 + $0x190] sm:$0xff]
      %v2461 = vld [vmem:[%s2444 + $0x3f0] sm:$0xff]
      %v2462 = vld [vmem:[%s2444 + $0x3f8] sm:$0xff]
      %v2463 = vld [vmem:[%s2444 + $0x428] sm:$0xff]
      %v2464 = vld [vmem:[%s2444 + $0x430] sm:$0xff]
      %v2465 = vld [vmem:[%s2444 + $0x460] sm:$0xff]
      %v2466 = vld [vmem:[%s2444 + $0x468] sm:$0xff]
      %v2467 = vld [vmem:[%s2444 + $0x498] sm:$0xff]
      %v2468 = vld [vmem:[%s2444 + $0x4a0] sm:$0xff]
      %v2469 = vld [vmem:[%s2444 + $0x4d0] sm:$0xff]
      %v2470 = vld [vmem:[%s2444 + $0x4d8] sm:$0xff]
      %v2471 = vld [vmem:[%s2444 + $0x508] sm:$0xff]
      %v2472 = vld [vmem:[%s2444 + $0x510] sm:$0xff]
      %v2473 = vld [vmem:[%s2444 + $0x540] sm:$0xff]
      %v2474 = vld [vmem:[%s2444 + $0x548] sm:$0xff]
      %v2475 = vld [vmem:[%s2444 + $0x578] sm:$0xff]
      %v2476 = vld [vmem:[%s2444 + $0x580] sm:$0xff]
      %v2477 = vld [vmem:[%s2444 + $0x7e0] sm:$0xff]
      %v2478 = vld [vmem:[%s2444 + $0x7e8] sm:$0xff]
      %v2479 = vld [vmem:[%s2444 + $0x818] sm:$0xff]
      %v2480 = vld [vmem:[%s2444 + $0x820] sm:$0xff]
      %v2481 = vld [vmem:[%s2444 + $0x850] sm:$0xff]
      %v2482 = vld [vmem:[%s2444 + $0x858] sm:$0xff]
      %v2483 = vld [vmem:[%s2444 + $0x888] sm:$0xff]
      %v2484 = vld [vmem:[%s2444 + $0x890] sm:$0xff]
      %v2485 = vld [vmem:[%s2444 + $0x8c0] sm:$0xff]
      %v2486 = vld [vmem:[%s2444 + $0x8c8] sm:$0xff]
      %v2487 = vld [vmem:[%s2444 + $0x8f8] sm:$0xff]
      %v2488 = vld [vmem:[%s2444 + $0x900] sm:$0xff]
      %v2489 = vld [vmem:[%s2444 + $0x930] sm:$0xff]
      %v2490 = vld [vmem:[%s2444 + $0x938] sm:$0xff]
      %v2491 = vld [vmem:[%s2444 + $0x968] sm:$0xff]
      %v2492 = vld [vmem:[%s2444 + $0x970] sm:$0xff]
      %s2493 = scalar_lea.vmem %s2, 32
      %v2494 = vld [vmem:[%s2493] sm:$0x1]
      %v2495 = vlaneseq
      %v2496 = vshrl.u32 %v2495, 7
      %v2497 = vsub.s32 0, %v2496
      %v2498 = vrot.slane %v2494, %v2497
      %v2499 = vmul.f32 %v2498, %v2445
      %v2500 = vmul.f32 %v2498, %v2446
      %v2501 = vmul.f32 %v2498, %v2447
      %v2502 = vmul.f32 %v2498, %v2448
      %v2503 = vmul.f32 %v2498, %v2449
      %v2504 = vmul.f32 %v2498, %v2450
      %v2505 = vmul.f32 %v2498, %v2451
      %v2506 = vmul.f32 %v2498, %v2452
      %v2507 = vmul.f32 %v2498, %v2453
      %v2508 = vmul.f32 %v2498, %v2454
      %v2509 = vmul.f32 %v2498, %v2455
      %v2510 = vmul.f32 %v2498, %v2456
      %v2511 = vmul.f32 %v2498, %v2457
      %v2512 = vmul.f32 %v2498, %v2458
      %v2513 = vmul.f32 %v2498, %v2459
      %v2514 = vmul.f32 %v2498, %v2460
      %v2515 = vld [vmem:[%s2493 + $0x3] sm:$0x1]
      %v2516 = vlaneseq
      %v2517 = vshrl.u32 %v2516, 7
      %v2518 = vsub.s32 0, %v2517
      %v2519 = vrot.slane %v2515, %v2518
      %v2520 = vmul.f32 %v2519, %v2461
      %v2521 = vmul.f32 %v2519, %v2462
      %v2522 = vmul.f32 %v2519, %v2463
      %v2523 = vmul.f32 %v2519, %v2464
      %v2524 = vmul.f32 %v2519, %v2465
      %v2525 = vmul.f32 %v2519, %v2466
      %v2526 = vmul.f32 %v2519, %v2467
      %v2527 = vmul.f32 %v2519, %v2468
      %v2528 = vmul.f32 %v2519, %v2469
      %v2529 = vmul.f32 %v2519, %v2470
      %v2530 = vmul.f32 %v2519, %v2471
      %v2531 = vmul.f32 %v2519, %v2472
      %v2532 = vmul.f32 %v2519, %v2473
      %v2533 = vmul.f32 %v2519, %v2474
      %v2534 = vmul.f32 %v2519, %v2475
      %v2535 = vmul.f32 %v2519, %v2476
      %v2536 = vadd.f32 %v2499, %v2520
      %v2537 = vadd.f32 %v2500, %v2521
      %v2538 = vadd.f32 %v2501, %v2522
      %v2539 = vadd.f32 %v2502, %v2523
      %v2540 = vadd.f32 %v2503, %v2524
      %v2541 = vadd.f32 %v2504, %v2525
      %v2542 = vadd.f32 %v2505, %v2526
      %v2543 = vadd.f32 %v2506, %v2527
      %v2544 = vadd.f32 %v2507, %v2528
      %v2545 = vadd.f32 %v2508, %v2529
      %v2546 = vadd.f32 %v2509, %v2530
      %v2547 = vadd.f32 %v2510, %v2531
      %v2548 = vadd.f32 %v2511, %v2532
      %v2549 = vadd.f32 %v2512, %v2533
      %v2550 = vadd.f32 %v2513, %v2534
      %v2551 = vadd.f32 %v2514, %v2535
      %v2552 = vld [vmem:[%s2493 + $0x6] sm:$0x1]
      %v2553 = vlaneseq
      %v2554 = vshrl.u32 %v2553, 7
      %v2555 = vsub.s32 0, %v2554
      %v2556 = vrot.slane %v2552, %v2555
      %v2557 = vmul.f32 %v2556, %v2477
      %v2558 = vmul.f32 %v2556, %v2478
      %v2559 = vmul.f32 %v2556, %v2479
      %v2560 = vmul.f32 %v2556, %v2480
      %v2561 = vmul.f32 %v2556, %v2481
      %v2562 = vmul.f32 %v2556, %v2482
      %v2563 = vmul.f32 %v2556, %v2483
      %v2564 = vmul.f32 %v2556, %v2484
      %v2565 = vmul.f32 %v2556, %v2485
      %v2566 = vmul.f32 %v2556, %v2486
      %v2567 = vmul.f32 %v2556, %v2487
      %v2568 = vmul.f32 %v2556, %v2488
      %v2569 = vmul.f32 %v2556, %v2489
      %v2570 = vmul.f32 %v2556, %v2490
      %v2571 = vmul.f32 %v2556, %v2491
      %v2572 = vmul.f32 %v2556, %v2492
      %v2573 = vadd.f32 %v2536, %v2557
      %v2574 = vadd.f32 %v2537, %v2558
      %v2575 = vadd.f32 %v2538, %v2559
      %v2576 = vadd.f32 %v2539, %v2560
      %v2577 = vadd.f32 %v2540, %v2561
      %v2578 = vadd.f32 %v2541, %v2562
      %v2579 = vadd.f32 %v2542, %v2563
      %v2580 = vadd.f32 %v2543, %v2564
      %v2581 = vadd.f32 %v2544, %v2565
      %v2582 = vadd.f32 %v2545, %v2566
      %v2583 = vadd.f32 %v2546, %v2567
      %v2584 = vadd.f32 %v2547, %v2568
      %v2585 = vadd.f32 %v2548, %v2569
      %v2586 = vadd.f32 %v2549, %v2570
      %v2587 = vadd.f32 %v2550, %v2571
      %v2588 = vadd.f32 %v2551, %v2572
      %v2589 = vld [vmem:[%s2444 + $0x12] sm:$0xff]
      %v2590 = vld [vmem:[%s2444 + $0x1a] sm:$0xff]
      %v2591 = vld [vmem:[%s2444 + $0x4a] sm:$0xff]
      %v2592 = vld [vmem:[%s2444 + $0x52] sm:$0xff]
      %v2593 = vld [vmem:[%s2444 + $0x82] sm:$0xff]
      %v2594 = vld [vmem:[%s2444 + $0x8a] sm:$0xff]
      %v2595 = vld [vmem:[%s2444 + $0xba] sm:$0xff]
      %v2596 = vld [vmem:[%s2444 + $0xc2] sm:$0xff]
      %v2597 = vld [vmem:[%s2444 + $0xf2] sm:$0xff]
      %v2598 = vld [vmem:[%s2444 + $0xfa] sm:$0xff]
      %v2599 = vld [vmem:[%s2444 + $0x12a] sm:$0xff]
      %v2600 = vld [vmem:[%s2444 + $0x132] sm:$0xff]
      %v2601 = vld [vmem:[%s2444 + $0x162] sm:$0xff]
      %v2602 = vld [vmem:[%s2444 + $0x16a] sm:$0xff]
      %v2603 = vld [vmem:[%s2444 + $0x19a] sm:$0xff]
      %v2604 = vld [vmem:[%s2444 + $0x1a2] sm:$0xff]
      %v2605 = vld [vmem:[%s2444 + $0x402] sm:$0xff]
      %v2606 = vld [vmem:[%s2444 + $0x40a] sm:$0xff]
      %v2607 = vld [vmem:[%s2444 + $0x43a] sm:$0xff]
      %v2608 = vld [vmem:[%s2444 + $0x442] sm:$0xff]
      %v2609 = vld [vmem:[%s2444 + $0x472] sm:$0xff]
      %v2610 = vld [vmem:[%s2444 + $0x47a] sm:$0xff]
      %v2611 = vld [vmem:[%s2444 + $0x4aa] sm:$0xff]
      %v2612 = vld [vmem:[%s2444 + $0x4b2] sm:$0xff]
      %v2613 = vld [vmem:[%s2444 + $0x4e2] sm:$0xff]
      %v2614 = vld [vmem:[%s2444 + $0x4ea] sm:$0xff]
      %v2615 = vld [vmem:[%s2444 + $0x51a] sm:$0xff]
      %v2616 = vld [vmem:[%s2444 + $0x522] sm:$0xff]
      %v2617 = vld [vmem:[%s2444 + $0x552] sm:$0xff]
      %v2618 = vld [vmem:[%s2444 + $0x55a] sm:$0xff]
      %v2619 = vld [vmem:[%s2444 + $0x58a] sm:$0xff]
      %v2620 = vld [vmem:[%s2444 + $0x592] sm:$0xff]
      %v2621 = vld [vmem:[%s2444 + $0x7f2] sm:$0xff]
      %v2622 = vld [vmem:[%s2444 + $0x7fa] sm:$0xff]
      %v2623 = vld [vmem:[%s2444 + $0x82a] sm:$0xff]
      %v2624 = vld [vmem:[%s2444 + $0x832] sm:$0xff]
      %v2625 = vld [vmem:[%s2444 + $0x862] sm:$0xff]
      %v2626 = vld [vmem:[%s2444 + $0x86a] sm:$0xff]
      %v2627 = vld [vmem:[%s2444 + $0x89a] sm:$0xff]
      %v2628 = vld [vmem:[%s2444 + $0x8a2] sm:$0xff]
      %v2629 = vld [vmem:[%s2444 + $0x8d2] sm:$0xff]
      %v2630 = vld [vmem:[%s2444 + $0x8da] sm:$0xff]
      %v2631 = vld [vmem:[%s2444 + $0x90a] sm:$0xff]
      %v2632 = vld [vmem:[%s2444 + $0x912] sm:$0xff]
      %v2633 = vld [vmem:[%s2444 + $0x942] sm:$0xff]
      %v2634 = vld [vmem:[%s2444 + $0x94a] sm:$0xff]
      %v2635 = vld [vmem:[%s2444 + $0x97a] sm:$0xff]
      %v2636 = vld [vmem:[%s2444 + $0x982] sm:$0xff]
      %v2637 = vld [vmem:[%s2493 + $0x1] sm:$0x1]
      %v2638 = vlaneseq
      %v2639 = vshrl.u32 %v2638, 7
      %v2640 = vsub.s32 0, %v2639
      %v2641 = vrot.slane %v2637, %v2640
      %v2642 = vmul.f32 %v2641, %v2589
      %v2643 = vmul.f32 %v2641, %v2590
      %v2644 = vmul.f32 %v2641, %v2591
      %v2645 = vmul.f32 %v2641, %v2592
      %v2646 = vmul.f32 %v2641, %v2593
      %v2647 = vmul.f32 %v2641, %v2594
      %v2648 = vmul.f32 %v2641, %v2595
      %v2649 = vmul.f32 %v2641, %v2596
      %v2650 = vmul.f32 %v2641, %v2597
      %v2651 = vmul.f32 %v2641, %v2598
      %v2652 = vmul.f32 %v2641, %v2599
      %v2653 = vmul.f32 %v2641, %v2600
      %v2654 = vmul.f32 %v2641, %v2601
      %v2655 = vmul.f32 %v2641, %v2602
      %v2656 = vmul.f32 %v2641, %v2603
      %v2657 = vmul.f32 %v2641, %v2604
      %v2658 = vadd.f32 %v2573, %v2642
      %v2659 = vadd.f32 %v2574, %v2643
      %v2660 = vadd.f32 %v2575, %v2644
      %v2661 = vadd.f32 %v2576, %v2645
      %v2662 = vadd.f32 %v2577, %v2646
      %v2663 = vadd.f32 %v2578, %v2647
      %v2664 = vadd.f32 %v2579, %v2648
      %v2665 = vadd.f32 %v2580, %v2649
      %v2666 = vadd.f32 %v2581, %v2650
      %v2667 = vadd.f32 %v2582, %v2651
      %v2668 = vadd.f32 %v2583, %v2652
      %v2669 = vadd.f32 %v2584, %v2653
      %v2670 = vadd.f32 %v2585, %v2654
      %v2671 = vadd.f32 %v2586, %v2655
      %v2672 = vadd.f32 %v2587, %v2656
      %v2673 = vadd.f32 %v2588, %v2657
      %v2674 = vld [vmem:[%s2493 + $0x4] sm:$0x1]
      %v2675 = vlaneseq
      %v2676 = vshrl.u32 %v2675, 7
      %v2677 = vsub.s32 0, %v2676
      %v2678 = vrot.slane %v2674, %v2677
      %v2679 = vmul.f32 %v2678, %v2605
      %v2680 = vmul.f32 %v2678, %v2606
      %v2681 = vmul.f32 %v2678, %v2607
      %v2682 = vmul.f32 %v2678, %v2608
      %v2683 = vmul.f32 %v2678, %v2609
      %v2684 = vmul.f32 %v2678, %v2610
      %v2685 = vmul.f32 %v2678, %v2611
      %v2686 = vmul.f32 %v2678, %v2612
      %v2687 = vmul.f32 %v2678, %v2613
      %v2688 = vmul.f32 %v2678, %v2614
      %v2689 = vmul.f32 %v2678, %v2615
      %v2690 = vmul.f32 %v2678, %v2616
      %v2691 = vmul.f32 %v2678, %v2617
      %v2692 = vmul.f32 %v2678, %v2618
      %v2693 = vmul.f32 %v2678, %v2619
      %v2694 = vmul.f32 %v2678, %v2620
      %v2695 = vadd.f32 %v2658, %v2679
      %v2696 = vadd.f32 %v2659, %v2680
      %v2697 = vadd.f32 %v2660, %v2681
      %v2698 = vadd.f32 %v2661, %v2682
      %v2699 = vadd.f32 %v2662, %v2683
      %v2700 = vadd.f32 %v2663, %v2684
      %v2701 = vadd.f32 %v2664, %v2685
      %v2702 = vadd.f32 %v2665, %v2686
      %v2703 = vadd.f32 %v2666, %v2687
      %v2704 = vadd.f32 %v2667, %v2688
      %v2705 = vadd.f32 %v2668, %v2689
      %v2706 = vadd.f32 %v2669, %v2690
      %v2707 = vadd.f32 %v2670, %v2691
      %v2708 = vadd.f32 %v2671, %v2692
      %v2709 = vadd.f32 %v2672, %v2693
      %v2710 = vadd.f32 %v2673, %v2694
      %v2711 = vld [vmem:[%s2493 + $0x7] sm:$0x1]
      %v2712 = vlaneseq
      %v2713 = vshrl.u32 %v2712, 7
      %v2714 = vsub.s32 0, %v2713
      %v2715 = vrot.slane %v2711, %v2714
      %v2716 = vmul.f32 %v2715, %v2621
      %v2717 = vmul.f32 %v2715, %v2622
      %v2718 = vmul.f32 %v2715, %v2623
      %v2719 = vmul.f32 %v2715, %v2624
      %v2720 = vmul.f32 %v2715, %v2625
      %v2721 = vmul.f32 %v2715, %v2626
      %v2722 = vmul.f32 %v2715, %v2627
      %v2723 = vmul.f32 %v2715, %v2628
      %v2724 = vmul.f32 %v2715, %v2629
      %v2725 = vmul.f32 %v2715, %v2630
      %v2726 = vmul.f32 %v2715, %v2631
      %v2727 = vmul.f32 %v2715, %v2632
      %v2728 = vmul.f32 %v2715, %v2633
      %v2729 = vmul.f32 %v2715, %v2634
      %v2730 = vmul.f32 %v2715, %v2635
      %v2731 = vmul.f32 %v2715, %v2636
      %v2732 = vadd.f32 %v2695, %v2716
      %v2733 = vadd.f32 %v2696, %v2717
      %v2734 = vadd.f32 %v2697, %v2718
      %v2735 = vadd.f32 %v2698, %v2719
      %v2736 = vadd.f32 %v2699, %v2720
      %v2737 = vadd.f32 %v2700, %v2721
      %v2738 = vadd.f32 %v2701, %v2722
      %v2739 = vadd.f32 %v2702, %v2723
      %v2740 = vadd.f32 %v2703, %v2724
      %v2741 = vadd.f32 %v2704, %v2725
      %v2742 = vadd.f32 %v2705, %v2726
      %v2743 = vadd.f32 %v2706, %v2727
      %v2744 = vadd.f32 %v2707, %v2728
      %v2745 = vadd.f32 %v2708, %v2729
      %v2746 = vadd.f32 %v2709, %v2730
      %v2747 = vadd.f32 %v2710, %v2731
      %v2748 = vld [vmem:[%s2444 + $0x24] sm:$0xff]
      %v2749 = vld [vmem:[%s2444 + $0x2c] sm:$0xff]
      %v2750 = vld [vmem:[%s2444 + $0x5c] sm:$0xff]
      %v2751 = vld [vmem:[%s2444 + $0x64] sm:$0xff]
      %v2752 = vld [vmem:[%s2444 + $0x94] sm:$0xff]
      %v2753 = vld [vmem:[%s2444 + $0x9c] sm:$0xff]
      %v2754 = vld [vmem:[%s2444 + $0xcc] sm:$0xff]
      %v2755 = vld [vmem:[%s2444 + $0xd4] sm:$0xff]
      %v2756 = vld [vmem:[%s2444 + $0x104] sm:$0xff]
      %v2757 = vld [vmem:[%s2444 + $0x10c] sm:$0xff]
      %v2758 = vld [vmem:[%s2444 + $0x13c] sm:$0xff]
      %v2759 = vld [vmem:[%s2444 + $0x144] sm:$0xff]
      %v2760 = vld [vmem:[%s2444 + $0x174] sm:$0xff]
      %v2761 = vld [vmem:[%s2444 + $0x17c] sm:$0xff]
      %v2762 = vld [vmem:[%s2444 + $0x1ac] sm:$0xff]
      %v2763 = vld [vmem:[%s2444 + $0x1b4] sm:$0xff]
      %v2764 = vld [vmem:[%s2444 + $0x414] sm:$0xff]
      %v2765 = vld [vmem:[%s2444 + $0x41c] sm:$0xff]
      %v2766 = vld [vmem:[%s2444 + $0x44c] sm:$0xff]
      %v2767 = vld [vmem:[%s2444 + $0x454] sm:$0xff]
      %v2768 = vld [vmem:[%s2444 + $0x484] sm:$0xff]
      %v2769 = vld [vmem:[%s2444 + $0x48c] sm:$0xff]
      %v2770 = vld [vmem:[%s2444 + $0x4bc] sm:$0xff]
      %v2771 = vld [vmem:[%s2444 + $0x4c4] sm:$0xff]
      %v2772 = vld [vmem:[%s2444 + $0x4f4] sm:$0xff]
      %v2773 = vld [vmem:[%s2444 + $0x4fc] sm:$0xff]
      %v2774 = vld [vmem:[%s2444 + $0x52c] sm:$0xff]
      %v2775 = vld [vmem:[%s2444 + $0x534] sm:$0xff]
      %v2776 = vld [vmem:[%s2444 + $0x564] sm:$0xff]
      %v2777 = vld [vmem:[%s2444 + $0x56c] sm:$0xff]
      %v2778 = vld [vmem:[%s2444 + $0x59c] sm:$0xff]
      %v2779 = vld [vmem:[%s2444 + $0x5a4] sm:$0xff]
      %v2780 = vld [vmem:[%s2444 + $0x804] sm:$0xff]
      %v2781 = vld [vmem:[%s2444 + $0x80c] sm:$0xff]
      %v2782 = vld [vmem:[%s2444 + $0x83c] sm:$0xff]
      %v2783 = vld [vmem:[%s2444 + $0x844] sm:$0xff]
      %v2784 = vld [vmem:[%s2444 + $0x874] sm:$0xff]
      %v2785 = vld [vmem:[%s2444 + $0x87c] sm:$0xff]
      %v2786 = vld [vmem:[%s2444 + $0x8ac] sm:$0xff]
      %v2787 = vld [vmem:[%s2444 + $0x8b4] sm:$0xff]
      %v2788 = vld [vmem:[%s2444 + $0x8e4] sm:$0xff]
      %v2789 = vld [vmem:[%s2444 + $0x8ec] sm:$0xff]
      %v2790 = vld [vmem:[%s2444 + $0x91c] sm:$0xff]
      %v2791 = vld [vmem:[%s2444 + $0x924] sm:$0xff]
      %v2792 = vld [vmem:[%s2444 + $0x954] sm:$0xff]
      %v2793 = vld [vmem:[%s2444 + $0x95c] sm:$0xff]
      %v2794 = vld [vmem:[%s2444 + $0x98c] sm:$0xff]
      %v2795 = vld [vmem:[%s2444 + $0x994] sm:$0xff]
      %v2796 = vld [vmem:[%s2493 + $0x2] sm:$0x1]
      %v2797 = vlaneseq
      %v2798 = vshrl.u32 %v2797, 7
      %v2799 = vsub.s32 0, %v2798
      %v2800 = vrot.slane %v2796, %v2799
      %v2801 = vmul.f32 %v2800, %v2748
      %v2802 = vmul.f32 %v2800, %v2749
      %v2803 = vmul.f32 %v2800, %v2750
      %v2804 = vmul.f32 %v2800, %v2751
      %v2805 = vmul.f32 %v2800, %v2752
      %v2806 = vmul.f32 %v2800, %v2753
      %v2807 = vmul.f32 %v2800, %v2754
      %v2808 = vmul.f32 %v2800, %v2755
      %v2809 = vmul.f32 %v2800, %v2756
      %v2810 = vmul.f32 %v2800, %v2757
      %v2811 = vmul.f32 %v2800, %v2758
      %v2812 = vmul.f32 %v2800, %v2759
      %v2813 = vmul.f32 %v2800, %v2760
      %v2814 = vmul.f32 %v2800, %v2761
      %v2815 = vmul.f32 %v2800, %v2762
      %v2816 = vmul.f32 %v2800, %v2763
      %v2817 = vadd.f32 %v2732, %v2801
      %v2818 = vadd.f32 %v2733, %v2802
      %v2819 = vadd.f32 %v2734, %v2803
      %v2820 = vadd.f32 %v2735, %v2804
      %v2821 = vadd.f32 %v2736, %v2805
      %v2822 = vadd.f32 %v2737, %v2806
      %v2823 = vadd.f32 %v2738, %v2807
      %v2824 = vadd.f32 %v2739, %v2808
      %v2825 = vadd.f32 %v2740, %v2809
      %v2826 = vadd.f32 %v2741, %v2810
      %v2827 = vadd.f32 %v2742, %v2811
      %v2828 = vadd.f32 %v2743, %v2812
      %v2829 = vadd.f32 %v2744, %v2813
      %v2830 = vadd.f32 %v2745, %v2814
      %v2831 = vadd.f32 %v2746, %v2815
      %v2832 = vadd.f32 %v2747, %v2816
      %v2833 = vld [vmem:[%s2493 + $0x5] sm:$0x1]
      %v2834 = vlaneseq
      %v2835 = vshrl.u32 %v2834, 7
      %v2836 = vsub.s32 0, %v2835
      %v2837 = vrot.slane %v2833, %v2836
      %v2838 = vmul.f32 %v2837, %v2764
      %v2839 = vmul.f32 %v2837, %v2765
      %v2840 = vmul.f32 %v2837, %v2766
      %v2841 = vmul.f32 %v2837, %v2767
      %v2842 = vmul.f32 %v2837, %v2768
      %v2843 = vmul.f32 %v2837, %v2769
      %v2844 = vmul.f32 %v2837, %v2770
      %v2845 = vmul.f32 %v2837, %v2771
      %v2846 = vmul.f32 %v2837, %v2772
      %v2847 = vmul.f32 %v2837, %v2773
      %v2848 = vmul.f32 %v2837, %v2774
      %v2849 = vmul.f32 %v2837, %v2775
      %v2850 = vmul.f32 %v2837, %v2776
      %v2851 = vmul.f32 %v2837, %v2777
      %v2852 = vmul.f32 %v2837, %v2778
      %v2853 = vmul.f32 %v2837, %v2779
      %v2854 = vadd.f32 %v2817, %v2838
      %v2855 = vadd.f32 %v2818, %v2839
      %v2856 = vadd.f32 %v2819, %v2840
      %v2857 = vadd.f32 %v2820, %v2841
      %v2858 = vadd.f32 %v2821, %v2842
      %v2859 = vadd.f32 %v2822, %v2843
      %v2860 = vadd.f32 %v2823, %v2844
      %v2861 = vadd.f32 %v2824, %v2845
      %v2862 = vadd.f32 %v2825, %v2846
      %v2863 = vadd.f32 %v2826, %v2847
      %v2864 = vadd.f32 %v2827, %v2848
      %v2865 = vadd.f32 %v2828, %v2849
      %v2866 = vadd.f32 %v2829, %v2850
      %v2867 = vadd.f32 %v2830, %v2851
      %v2868 = vadd.f32 %v2831, %v2852
      %v2869 = vadd.f32 %v2832, %v2853
      %v2870 = vld [vmem:[%s2493 + $0x8] sm:$0x1]
      %v2871 = vlaneseq
      %v2872 = vshrl.u32 %v2871, 7
      %v2873 = vsub.s32 0, %v2872
      %v2874 = vrot.slane %v2870, %v2873
      %v2875 = vmul.f32 %v2874, %v2780
      %v2876 = vmul.f32 %v2874, %v2781
      %v2877 = vmul.f32 %v2874, %v2782
      %v2878 = vmul.f32 %v2874, %v2783
      %v2879 = vmul.f32 %v2874, %v2784
      %v2880 = vmul.f32 %v2874, %v2785
      %v2881 = vmul.f32 %v2874, %v2786
      %v2882 = vmul.f32 %v2874, %v2787
      %v2883 = vmul.f32 %v2874, %v2788
      %v2884 = vmul.f32 %v2874, %v2789
      %v2885 = vmul.f32 %v2874, %v2790
      %v2886 = vmul.f32 %v2874, %v2791
      %v2887 = vmul.f32 %v2874, %v2792
      %v2888 = vmul.f32 %v2874, %v2793
      %v2889 = vmul.f32 %v2874, %v2794
      %v2890 = vmul.f32 %v2874, %v2795
      %v2891 = vadd.f32 %v2854, %v2875
      %v2892 = vadd.f32 %v2855, %v2876
      %v2893 = vadd.f32 %v2856, %v2877
      %v2894 = vadd.f32 %v2857, %v2878
      %v2895 = vadd.f32 %v2858, %v2879
      %v2896 = vadd.f32 %v2859, %v2880
      %v2897 = vadd.f32 %v2860, %v2881
      %v2898 = vadd.f32 %v2861, %v2882
      %v2899 = vadd.f32 %v2862, %v2883
      %v2900 = vadd.f32 %v2863, %v2884
      %v2901 = vadd.f32 %v2864, %v2885
      %v2902 = vadd.f32 %v2865, %v2886
      %v2903 = vadd.f32 %v2866, %v2887
      %v2904 = vadd.f32 %v2867, %v2888
      %v2905 = vadd.f32 %v2868, %v2889
      %v2906 = vadd.f32 %v2869, %v2890
      %s2907 = scalar_lea.vmem %s4, 16
      %v2908 = vld [vmem:[%s2907] sm:$0xff]
      %v2909 = vld [vmem:[%s7 + $0x3] sm:$0x1]
      %v2910 = vlaneseq
      %v2911 = vshrl.u32 %v2910, 7
      %v2912 = vsub.s32 0, %v2911
      %v2913 = vrot.slane %v2909, %v2912
      %v2915 = vsel %vm396, %v2891, 0
      %v2918 = vsel %vm396, %v2892, 0
      %v2921 = vsel %vm396, %v2893, 0
      %v2924 = vsel %vm396, %v2894, 0
      %v2927 = vsel %vm396, %v2895, 0
      %v2930 = vsel %vm396, %v2896, 0
      %v2933 = vsel %vm396, %v2897, 0
      %v2936 = vsel %vm396, %v2898, 0
      %v2939 = vsel %vm396, %v2899, 0
      %v2942 = vsel %vm396, %v2900, 0
      %v2945 = vsel %vm396, %v2901, 0
      %v2948 = vsel %vm396, %v2902, 0
      %v2951 = vsel %vm396, %v2903, 0
      %v2954 = vsel %vm396, %v2904, 0
      %v2957 = vsel %vm396, %v2905, 0
      %v2960 = vsel %vm396, %v2906, 0
      %2962 = vmatprep.subr.mxu0 0.0
      %2963 = vmatpush1.msra.mxu0 %v2908
      %2964 = vmatprep.subr.mxu0 0.0
      %2965 = vmatpush1.msra.mxu0 0.0
      %2966 = vmatprep.subr.mxu0 0.0
      %2967 = vmatpush1.msra.mxu0 0.0
      %2968 = vmatprep.subr.mxu0 0.0
      %2969 = vmatpush1.msra.mxu0 0.0
      %2970 = vmatprep.subr.mxu0 0.0
      %2971 = vmatpush1.msra.mxu0 0.0
      %2972 = vmatprep.subr.mxu0 0.0
      %2973 = vmatpush1.msra.mxu0 0.0
      %2974 = vmatprep.subr.mxu0 0.0
      %2975 = vmatpush1.msra.mxu0 0.0
      %2976 = vmatprep.subr.mxu0 0.0
      %2977 = vmatpush1.msra.mxu0 0.0
      %2978 = vmatprep.subr.mxu0 0.0
      %2979 = vmatpush1.msra.mxu0 0.0
      %2980 = vmatprep.subr.mxu0 0.0
      %2981 = vmatpush1.msra.mxu0 0.0
      %2982 = vmatprep.subr.mxu0 0.0
      %2983 = vmatpush1.msra.mxu0 0.0
      %2984 = vmatprep.subr.mxu0 0.0
      %2985 = vmatpush1.msra.mxu0 0.0
      %2986 = vmatprep.subr.mxu0 0.0
      %2987 = vmatpush1.msra.mxu0 0.0
      %2988 = vmatprep.subr.mxu0 0.0
      %2989 = vmatpush1.msra.mxu0 0.0
      %2990 = vmatprep.subr.mxu0 0.0
      %2991 = vmatpush1.msra.mxu0 0.0
      %2992 = vmatprep.subr.mxu0 0.0
      %2993 = vmatpush1.msra.mxu0 0.0
      %2994 = vmatprep.subr.mxu0 0.0
      %2995 = vmatpush1.msra.mxu0 0.0
      %2996 = vmatprep.subr.mxu0 0.0
      %2997 = vmatpush1.msra.mxu0 0.0
      %2998 = vmatprep.subr.mxu0 0.0
      %2999 = vmatpush1.msra.mxu0 0.0
      %3000 = vmatprep.subr.mxu0 0.0
      %3001 = vmatpush1.msra.mxu0 0.0
      %3002 = vmatprep.subr.mxu0 0.0
      %3003 = vmatpush1.msra.mxu0 0.0
      %3004 = vmatprep.subr.mxu0 0.0
      %3005 = vmatpush1.msra.mxu0 0.0
      %3006 = vmatprep.subr.mxu0 0.0
      %3007 = vmatpush1.msra.mxu0 0.0
      %3008 = vmatprep.subr.mxu0 0.0
      %3009 = vmatpush1.msra.mxu0 0.0
      %3010 = vmatprep.subr.mxu0 0.0
      %3011 = vmatpush1.msra.mxu0 0.0
      %3012 = vmatprep.subr.mxu0 0.0
      %3013 = vmatpush1.msra.mxu0 0.0
      %3014 = vmatprep.subr.mxu0 0.0
      %3015 = vmatpush1.msra.mxu0 0.0
      %3016 = vmatprep.subr.mxu0 0.0
      %3017 = vmatpush1.msra.mxu0 0.0
      %3018 = vmatprep.subr.mxu0 0.0
      %3019 = vmatpush1.msra.mxu0 0.0
      %3020 = vmatprep.subr.mxu0 0.0
      %3021 = vmatpush1.msra.mxu0 0.0
      %3022 = vmatprep.subr.mxu0 0.0
      %3023 = vmatpush1.msra.mxu0 0.0
      %3024 = vmatprep.subr.mxu0 0.0
      %3025 = vmatpush1.msra.mxu0 0.0
      %3026 = vmatprep.mubr.f32.mxu0 0.0
      %3027 = vmatmul.mubr.f32.gmra.mrb[0].mxu0 %v2915
      %v3028 = vpop.f32.mrb[0].mxu0
      %v3029 = vadd.f32 %v2913, %v3028
      %v3030 = vpop.f32.mrb[0].mxu0
      %3031 = vmatprep.mubr.f32.mxu0 0.0
      %3032 = vmatmul.mubr.f32.gmra.mrb[0].mxu0 %v2918
      %v3033 = vpop.f32.mrb[0].mxu0
      %v3034 = vadd.f32 %v2913, %v3033
      %v3035 = vpop.f32.mrb[0].mxu0
      %3036 = vmatprep.mubr.f32.mxu0 0.0
      %3037 = vmatmul.mubr.f32.gmra.mrb[0].mxu0 %v2921
      %v3038 = vpop.f32.mrb[0].mxu0
      %v3039 = vadd.f32 %v2913, %v3038
      %v3040 = vpop.f32.mrb[0].mxu0
      %3041 = vmatprep.mubr.f32.mxu0 0.0
      %3042 = vmatmul.mubr.f32.gmra.mrb[0].mxu0 %v2924
      %v3043 = vpop.f32.mrb[0].mxu0
      %v3044 = vadd.f32 %v2913, %v3043
      %v3045 = vpop.f32.mrb[0].mxu0
      %3046 = vmatprep.mubr.f32.mxu0 0.0
      %3047 = vmatmul.mubr.f32.gmra.mrb[0].mxu0 %v2927
      %v3048 = vpop.f32.mrb[0].mxu0
      %v3049 = vadd.f32 %v2913, %v3048
      %v3050 = vpop.f32.mrb[0].mxu0
      %3051 = vmatprep.mubr.f32.mxu0 0.0
      %3052 = vmatmul.mubr.f32.gmra.mrb[0].mxu0 %v2930
      %v3053 = vpop.f32.mrb[0].mxu0
      %v3054 = vadd.f32 %v2913, %v3053
      %v3055 = vpop.f32.mrb[0].mxu0
      %3056 = vmatprep.mubr.f32.mxu0 0.0
      %3057 = vmatmul.mubr.f32.gmra.mrb[0].mxu0 %v2933
      %v3058 = vpop.f32.mrb[0].mxu0
      %v3059 = vadd.f32 %v2913, %v3058
      %v3060 = vpop.f32.mrb[0].mxu0
      %3061 = vmatprep.mubr.f32.mxu0 0.0
      %3062 = vmatmul.mubr.f32.gmra.mrb[0].mxu0 %v2936
      %v3063 = vpop.f32.mrb[0].mxu0
      %v3064 = vadd.f32 %v2913, %v3063
      %v3065 = vpop.f32.mrb[0].mxu0
      %3066 = vmatprep.mubr.f32.mxu0 0.0
      %3067 = vmatmul.mubr.f32.gmra.mrb[0].mxu0 %v2939
      %v3068 = vpop.f32.mrb[0].mxu0
      %v3069 = vadd.f32 %v2913, %v3068
      %v3070 = vpop.f32.mrb[0].mxu0
      %3071 = vmatprep.mubr.f32.mxu0 0.0
      %3072 = vmatmul.mubr.f32.gmra.mrb[0].mxu0 %v2942
      %v3073 = vpop.f32.mrb[0].mxu0
      %v3074 = vadd.f32 %v2913, %v3073
      %v3075 = vpop.f32.mrb[0].mxu0
      %3076 = vmatprep.mubr.f32.mxu0 0.0
      %3077 = vmatmul.mubr.f32.gmra.mrb[0].mxu0 %v2945
      %v3078 = vpop.f32.mrb[0].mxu0
      %v3079 = vadd.f32 %v2913, %v3078
      %v3080 = vpop.f32.mrb[0].mxu0
      %3081 = vmatprep.mubr.f32.mxu0 0.0
      %3082 = vmatmul.mubr.f32.gmra.mrb[0].mxu0 %v2948
      %v3083 = vpop.f32.mrb[0].mxu0
      %v3084 = vadd.f32 %v2913, %v3083
      %v3085 = vpop.f32.mrb[0].mxu0
      %3086 = vmatprep.mubr.f32.mxu0 0.0
      %3087 = vmatmul.mubr.f32.gmra.mrb[0].mxu0 %v2951
      %v3088 = vpop.f32.mrb[0].mxu0
      %v3089 = vadd.f32 %v2913, %v3088
      %v3090 = vpop.f32.mrb[0].mxu0
      %3091 = vmatprep.mubr.f32.mxu0 0.0
      %3092 = vmatmul.mubr.f32.gmra.mrb[0].mxu0 %v2954
      %v3093 = vpop.f32.mrb[0].mxu0
      %v3094 = vadd.f32 %v2913, %v3093
      %v3095 = vpop.f32.mrb[0].mxu0
      %3096 = vmatprep.mubr.f32.mxu0 0.0
      %3097 = vmatmul.mubr.f32.gmra.mrb[0].mxu0 %v2957
      %v3098 = vpop.f32.mrb[0].mxu0
      %v3099 = vadd.f32 %v2913, %v3098
      %v3100 = vpop.f32.mrb[0].mxu0
      %3101 = vmatprep.mubr.f32.mxu0 0.0
      %3102 = vmatmul.mubr.f32.gmra.mrb[0].mxu0 %v2960
      %v3103 = vpop.f32.mrb[0].mxu0
      %v3104 = vadd.f32 %v2913, %v3103
      %v3105 = vpop.f32.mrb[0].mxu0
      %3106 = vdwg.mxu0
      %v3107 = vmax.f32 %v3029, 0.0
      %v3108 = vmax.f32 %v3034, 0.0
      %v3109 = vmax.f32 %v3039, 0.0
      %v3110 = vmax.f32 %v3044, 0.0
      %v3111 = vmax.f32 %v3049, 0.0
      %v3112 = vmax.f32 %v3054, 0.0
      %v3113 = vmax.f32 %v3059, 0.0
      %v3114 = vmax.f32 %v3064, 0.0
      %v3115 = vmax.f32 %v3069, 0.0
      %v3116 = vmax.f32 %v3074, 0.0
      %v3117 = vmax.f32 %v3079, 0.0
      %v3118 = vmax.f32 %v3084, 0.0
      %v3119 = vmax.f32 %v3089, 0.0
      %v3120 = vmax.f32 %v3094, 0.0
      %v3121 = vmax.f32 %v3099, 0.0
      %v3122 = vmax.f32 %v3104, 0.0
      %s3123 = scalar_lea.vmem %s6, 384
      %v3124 = vld [vmem:[%s3123] sm:$0xff]
      %v3125 = vld [vmem:[%s3123 + $0x8] sm:$0xff]
      %v3126 = vld [vmem:[%s3123 + $0x10] sm:$0xff]
      %v3127 = vld [vmem:[%s3123 + $0x18] sm:$0xff]
      %v3128 = vld [vmem:[%s3123 + $0x20] sm:$0xff]
      %v3129 = vld [vmem:[%s3123 + $0x28] sm:$0xff]
      %v3130 = vld [vmem:[%s3123 + $0x30] sm:$0xff]
      %v3131 = vld [vmem:[%s3123 + $0x38] sm:$0xff]
      %v3132 = vld [vmem:[%s3123 + $0x40] sm:$0xff]
      %v3133 = vld [vmem:[%s3123 + $0x48] sm:$0xff]
      %v3134 = vld [vmem:[%s3123 + $0x50] sm:$0xff]
      %v3135 = vld [vmem:[%s3123 + $0x58] sm:$0xff]
      %v3136 = vld [vmem:[%s3123 + $0x60] sm:$0xff]
      %v3137 = vld [vmem:[%s3123 + $0x68] sm:$0xff]
      %v3138 = vld [vmem:[%s3123 + $0x70] sm:$0xff]
      %v3139 = vld [vmem:[%s3123 + $0x78] sm:$0xff]
      %3140 = vmatprep.subr.mxu0 0.0
      %3141 = vmatpush1.msra.mxu0 %v3124
      %3142 = vmatprep.subr.mxu0 0.0
      %3143 = vmatpush1.msra.mxu0 %v3125
      %3144 = vmatprep.subr.mxu0 0.0
      %3145 = vmatpush1.msra.mxu0 %v3126
      %3146 = vmatprep.subr.mxu0 0.0
      %3147 = vmatpush1.msra.mxu0 %v3127
      %3148 = vmatprep.subr.mxu0 0.0
      %3149 = vmatpush1.msra.mxu0 %v3128
      %3150 = vmatprep.subr.mxu0 0.0
      %3151 = vmatpush1.msra.mxu0 %v3129
      %3152 = vmatprep.subr.mxu0 0.0
      %3153 = vmatpush1.msra.mxu0 %v3130
      %3154 = vmatprep.subr.mxu0 0.0
      %3155 = vmatpush1.msra.mxu0 %v3131
      %3156 = vmatprep.subr.mxu0 0.0
      %3157 = vmatpush1.msra.mxu0 %v3132
      %3158 = vmatprep.subr.mxu0 0.0
      %3159 = vmatpush1.msra.mxu0 %v3133
      %3160 = vmatprep.subr.mxu0 0.0
      %3161 = vmatpush1.msra.mxu0 %v3134
      %3162 = vmatprep.subr.mxu0 0.0
      %3163 = vmatpush1.msra.mxu0 %v3135
      %3164 = vmatprep.subr.mxu0 0.0
      %3165 = vmatpush1.msra.mxu0 %v3136
      %3166 = vmatprep.subr.mxu0 0.0
      %3167 = vmatpush1.msra.mxu0 %v3137
      %3168 = vmatprep.subr.mxu0 0.0
      %3169 = vmatpush1.msra.mxu0 %v3138
      %3170 = vmatprep.subr.mxu0 0.0
      %3171 = vmatpush1.msra.mxu0 %v3139
      %3172 = vmatprep.subr.mxu0 0.0
      %3173 = vmatpush1.msra.mxu0 0.0
      %3174 = vmatprep.subr.mxu0 0.0
      %3175 = vmatpush1.msra.mxu0 0.0
      %3176 = vmatprep.subr.mxu0 0.0
      %3177 = vmatpush1.msra.mxu0 0.0
      %3178 = vmatprep.subr.mxu0 0.0
      %3179 = vmatpush1.msra.mxu0 0.0
      %3180 = vmatprep.subr.mxu0 0.0
      %3181 = vmatpush1.msra.mxu0 0.0
      %3182 = vmatprep.subr.mxu0 0.0
      %3183 = vmatpush1.msra.mxu0 0.0
      %3184 = vmatprep.subr.mxu0 0.0
      %3185 = vmatpush1.msra.mxu0 0.0
      %3186 = vmatprep.subr.mxu0 0.0
      %3187 = vmatpush1.msra.mxu0 0.0
      %3188 = vmatprep.subr.mxu0 0.0
      %3189 = vmatpush1.msra.mxu0 0.0
      %3190 = vmatprep.subr.mxu0 0.0
      %3191 = vmatpush1.msra.mxu0 0.0
      %3192 = vmatprep.subr.mxu0 0.0
      %3193 = vmatpush1.msra.mxu0 0.0
      %3194 = vmatprep.subr.mxu0 0.0
      %3195 = vmatpush1.msra.mxu0 0.0
      %3196 = vmatprep.subr.mxu0 0.0
      %3197 = vmatpush1.msra.mxu0 0.0
      %3198 = vmatprep.subr.mxu0 0.0
      %3199 = vmatpush1.msra.mxu0 0.0
      %3200 = vmatprep.subr.mxu0 0.0
      %3201 = vmatpush1.msra.mxu0 0.0
      %3202 = vmatprep.subr.mxu0 0.0
      %3203 = vmatpush1.msra.mxu0 0.0
      %3204 = vmatprep.mubr.f32.mxu0 0.0
      %3205 = vmatmul.mubr.f32.gmra.mrb[0].mxu0 %v3107
      %v3206 = vpop.f32.mrb[0].mxu0
      %v3207 = vadd.f32 0.0, %v3206
      %v3208 = vpop.f32.mrb[0].mxu0
      %3209 = vmatprep.mubr.f32.mxu0 0.0
      %3210 = vmatmul.mubr.f32.gmra.mrb[0].mxu0 %v3108
      %v3211 = vpop.f32.mrb[0].mxu0
      %v3212 = vadd.f32 0.0, %v3211
      %v3213 = vpop.f32.mrb[0].mxu0
      %3214 = vmatprep.mubr.f32.mxu0 0.0
      %3215 = vmatmul.mubr.f32.gmra.mrb[0].mxu0 %v3109
      %v3216 = vpop.f32.mrb[0].mxu0
      %v3217 = vadd.f32 0.0, %v3216
      %v3218 = vpop.f32.mrb[0].mxu0
      %3219 = vmatprep.mubr.f32.mxu0 0.0
      %3220 = vmatmul.mubr.f32.gmra.mrb[0].mxu0 %v3110
      %v3221 = vpop.f32.mrb[0].mxu0
      %v3222 = vadd.f32 0.0, %v3221
      %v3223 = vpop.f32.mrb[0].mxu0
      %3224 = vmatprep.mubr.f32.mxu0 0.0
      %3225 = vmatmul.mubr.f32.gmra.mrb[0].mxu0 %v3111
      %v3226 = vpop.f32.mrb[0].mxu0
      %v3227 = vadd.f32 0.0, %v3226
      %v3228 = vpop.f32.mrb[0].mxu0
      %3229 = vmatprep.mubr.f32.mxu0 0.0
      %3230 = vmatmul.mubr.f32.gmra.mrb[0].mxu0 %v3112
      %v3231 = vpop.f32.mrb[0].mxu0
      %v3232 = vadd.f32 0.0, %v3231
      %v3233 = vpop.f32.mrb[0].mxu0
      %3234 = vmatprep.mubr.f32.mxu0 0.0
      %3235 = vmatmul.mubr.f32.gmra.mrb[0].mxu0 %v3113
      %v3236 = vpop.f32.mrb[0].mxu0
      %v3237 = vadd.f32 0.0, %v3236
      %v3238 = vpop.f32.mrb[0].mxu0
      %3239 = vmatprep.mubr.f32.mxu0 0.0
      %3240 = vmatmul.mubr.f32.gmra.mrb[0].mxu0 %v3114
      %v3241 = vpop.f32.mrb[0].mxu0
      %v3242 = vadd.f32 0.0, %v3241
      %v3243 = vpop.f32.mrb[0].mxu0
      %3244 = vmatprep.mubr.f32.mxu0 0.0
      %3245 = vmatmul.mubr.f32.gmra.mrb[0].mxu0 %v3115
      %v3246 = vpop.f32.mrb[0].mxu0
      %v3247 = vadd.f32 0.0, %v3246
      %v3248 = vpop.f32.mrb[0].mxu0
      %3249 = vmatprep.mubr.f32.mxu0 0.0
      %3250 = vmatmul.mubr.f32.gmra.mrb[0].mxu0 %v3116
      %v3251 = vpop.f32.mrb[0].mxu0
      %v3252 = vadd.f32 0.0, %v3251
      %v3253 = vpop.f32.mrb[0].mxu0
      %3254 = vmatprep.mubr.f32.mxu0 0.0
      %3255 = vmatmul.mubr.f32.gmra.mrb[0].mxu0 %v3117
      %v3256 = vpop.f32.mrb[0].mxu0
      %v3257 = vadd.f32 0.0, %v3256
      %v3258 = vpop.f32.mrb[0].mxu0
      %3259 = vmatprep.mubr.f32.mxu0 0.0
      %3260 = vmatmul.mubr.f32.gmra.mrb[0].mxu0 %v3118
      %v3261 = vpop.f32.mrb[0].mxu0
      %v3262 = vadd.f32 0.0, %v3261
      %v3263 = vpop.f32.mrb[0].mxu0
      %3264 = vmatprep.mubr.f32.mxu0 0.0
      %3265 = vmatmul.mubr.f32.gmra.mrb[0].mxu0 %v3119
      %v3266 = vpop.f32.mrb[0].mxu0
      %v3267 = vadd.f32 0.0, %v3266
      %v3268 = vpop.f32.mrb[0].mxu0
      %3269 = vmatprep.mubr.f32.mxu0 0.0
      %3270 = vmatmul.mubr.f32.gmra.mrb[0].mxu0 %v3120
      %v3271 = vpop.f32.mrb[0].mxu0
      %v3272 = vadd.f32 0.0, %v3271
      %v3273 = vpop.f32.mrb[0].mxu0
      %3274 = vmatprep.mubr.f32.mxu0 0.0
      %3275 = vmatmul.mubr.f32.gmra.mrb[0].mxu0 %v3121
      %v3276 = vpop.f32.mrb[0].mxu0
      %v3277 = vadd.f32 0.0, %v3276
      %v3278 = vpop.f32.mrb[0].mxu0
      %3279 = vmatprep.mubr.f32.mxu0 0.0
      %3280 = vmatmul.mubr.f32.gmra.mrb[0].mxu0 %v3122
      %v3281 = vpop.f32.mrb[0].mxu0
      %v3282 = vadd.f32 0.0, %v3281
      %v3283 = vpop.f32.mrb[0].mxu0
      %3284 = vdwg.mxu0
      %v3285 = vadd.f32 %v2427, %v3207
      %v3286 = vadd.f32 %v2428, %v3212
      %v3287 = vadd.f32 %v2429, %v3217
      %v3288 = vadd.f32 %v2430, %v3222
      %v3289 = vadd.f32 %v2431, %v3227
      %v3290 = vadd.f32 %v2432, %v3232
      %v3291 = vadd.f32 %v2433, %v3237
      %v3292 = vadd.f32 %v2434, %v3242
      %v3293 = vadd.f32 %v2435, %v3247
      %v3294 = vadd.f32 %v2436, %v3252
      %v3295 = vadd.f32 %v2437, %v3257
      %v3296 = vadd.f32 %v2438, %v3262
      %v3297 = vadd.f32 %v2439, %v3267
      %v3298 = vadd.f32 %v2440, %v3272
      %v3299 = vadd.f32 %v2441, %v3277
      %v3300 = vadd.f32 %v2442, %v3282
      %v3301 = vld [vmem:[%s359] sm:$0x1]
      %v3303 = vlaneseq
      %v3304 = vshrl.u32 %v3303, 7
      %v3305 = vsub.s32 0, %v3304
      %v3306 = vrot.slane %v3301, %v3305
      %v3307 = vld [vmem:[%s5] sm:$0xff]
      %v3308 = vld [vmem:[%s7 + $0x4] sm:$0x1]
      %v3309 = vlaneseq
      %v3310 = vshrl.u32 %v3309, 7
      %v3311 = vsub.s32 0, %v3310
      %v3312 = vrot.slane %v3308, %v3311
      %v3313 = vsel %vm396, %v3306, 0
      %3315 = vmatprep.subr.mxu0 0.0
      %3316 = vmatpush1.msra.mxu0 %v3307
      %3317 = vmatprep.subr.mxu0 0.0
      %3318 = vmatpush1.msra.mxu0 0.0
      %3319 = vmatprep.subr.mxu0 0.0
      %3320 = vmatpush1.msra.mxu0 0.0
      %3321 = vmatprep.subr.mxu0 0.0
      %3322 = vmatpush1.msra.mxu0 0.0
      %3323 = vmatprep.subr.mxu0 0.0
      %3324 = vmatpush1.msra.mxu0 0.0
      %3325 = vmatprep.subr.mxu0 0.0
      %3326 = vmatpush1.msra.mxu0 0.0
      %3327 = vmatprep.subr.mxu0 0.0
      %3328 = vmatpush1.msra.mxu0 0.0
      %3329 = vmatprep.subr.mxu0 0.0
      %3330 = vmatpush1.msra.mxu0 0.0
      %3331 = vmatprep.subr.mxu0 0.0
      %3332 = vmatpush1.msra.mxu0 0.0
      %3333 = vmatprep.subr.mxu0 0.0
      %3334 = vmatpush1.msra.mxu0 0.0
      %3335 = vmatprep.subr.mxu0 0.0
      %3336 = vmatpush1.msra.mxu0 0.0
      %3337 = vmatprep.subr.mxu0 0.0
      %3338 = vmatpush1.msra.mxu0 0.0
      %3339 = vmatprep.subr.mxu0 0.0
      %3340 = vmatpush1.msra.mxu0 0.0
      %3341 = vmatprep.subr.mxu0 0.0
      %3342 = vmatpush1.msra.mxu0 0.0
      %3343 = vmatprep.subr.mxu0 0.0
      %3344 = vmatpush1.msra.mxu0 0.0
      %3345 = vmatprep.subr.mxu0 0.0
      %3346 = vmatpush1.msra.mxu0 0.0
      %3347 = vmatprep.subr.mxu0 0.0
      %3348 = vmatpush1.msra.mxu0 0.0
      %3349 = vmatprep.subr.mxu0 0.0
      %3350 = vmatpush1.msra.mxu0 0.0
      %3351 = vmatprep.subr.mxu0 0.0
      %3352 = vmatpush1.msra.mxu0 0.0
      %3353 = vmatprep.subr.mxu0 0.0
      %3354 = vmatpush1.msra.mxu0 0.0
      %3355 = vmatprep.subr.mxu0 0.0
      %3356 = vmatpush1.msra.mxu0 0.0
      %3357 = vmatprep.subr.mxu0 0.0
      %3358 = vmatpush1.msra.mxu0 0.0
      %3359 = vmatprep.subr.mxu0 0.0
      %3360 = vmatpush1.msra.mxu0 0.0
      %3361 = vmatprep.subr.mxu0 0.0
      %3362 = vmatpush1.msra.mxu0 0.0
      %3363 = vmatprep.subr.mxu0 0.0
      %3364 = vmatpush1.msra.mxu0 0.0
      %3365 = vmatprep.subr.mxu0 0.0
      %3366 = vmatpush1.msra.mxu0 0.0
      %3367 = vmatprep.subr.mxu0 0.0
      %3368 = vmatpush1.msra.mxu0 0.0
      %3369 = vmatprep.subr.mxu0 0.0
      %3370 = vmatpush1.msra.mxu0 0.0
      %3371 = vmatprep.subr.mxu0 0.0
      %3372 = vmatpush1.msra.mxu0 0.0
      %3373 = vmatprep.subr.mxu0 0.0
      %3374 = vmatpush1.msra.mxu0 0.0
      %3375 = vmatprep.subr.mxu0 0.0
      %3376 = vmatpush1.msra.mxu0 0.0
      %3377 = vmatprep.subr.mxu0 0.0
      %3378 = vmatpush1.msra.mxu0 0.0
      %3379 = vmatprep.mubr.f32.mxu0 0.0
      %3380 = vmatmul.mubr.f32.gmra.mrb[0].mxu0 %v3313
      %v3381 = vpop.f32.mrb[0].mxu0
      %v3382 = vadd.f32 %v3312, %v3381
      %v3383 = vpop.f32.mrb[0].mxu0
      %3384 = vdwg.mxu0
      %v3385 = vmax.f32 %v3382, 0.0
      %v3386 = vld [vmem:[%s8] sm:$0x1]
      %s3387 = scalar_lea.vmem %s6, 512
      %v3388 = vld [vmem:[%s3387] sm:$0xff]
      %v3389 = vld [vmem:[%s3387 + $0x8] sm:$0xff]
      %v3390 = vld [vmem:[%s3387 + $0x10] sm:$0xff]
      %v3391 = vld [vmem:[%s3387 + $0x18] sm:$0xff]
      %v3392 = vld [vmem:[%s3387 + $0x20] sm:$0xff]
      %v3393 = vld [vmem:[%s3387 + $0x28] sm:$0xff]
      %v3394 = vld [vmem:[%s3387 + $0x30] sm:$0xff]
      %v3395 = vld [vmem:[%s3387 + $0x38] sm:$0xff]
      %v3396 = vld [vmem:[%s3387 + $0x40] sm:$0xff]
      %v3397 = vld [vmem:[%s3387 + $0x48] sm:$0xff]
      %v3398 = vld [vmem:[%s3387 + $0x50] sm:$0xff]
      %v3399 = vld [vmem:[%s3387 + $0x58] sm:$0xff]
      %v3400 = vld [vmem:[%s3387 + $0x60] sm:$0xff]
      %v3401 = vld [vmem:[%s3387 + $0x68] sm:$0xff]
      %v3402 = vld [vmem:[%s3387 + $0x70] sm:$0xff]
      %v3403 = vld [vmem:[%s3387 + $0x78] sm:$0xff]
      %3404 = vmatprep.subr.mxu0 0.0
      %3405 = vmatpush1.msra.mxu0 %v3388
      %3406 = vmatprep.subr.mxu0 0.0
      %3407 = vmatpush1.msra.mxu0 %v3389
      %3408 = vmatprep.subr.mxu0 0.0
      %3409 = vmatpush1.msra.mxu0 %v3390
      %3410 = vmatprep.subr.mxu0 0.0
      %3411 = vmatpush1.msra.mxu0 %v3391
      %3412 = vmatprep.subr.mxu0 0.0
      %3413 = vmatpush1.msra.mxu0 %v3392
      %3414 = vmatprep.subr.mxu0 0.0
      %3415 = vmatpush1.msra.mxu0 %v3393
      %3416 = vmatprep.subr.mxu0 0.0
      %3417 = vmatpush1.msra.mxu0 %v3394
      %3418 = vmatprep.subr.mxu0 0.0
      %3419 = vmatpush1.msra.mxu0 %v3395
      %3420 = vmatprep.subr.mxu0 0.0
      %3421 = vmatpush1.msra.mxu0 %v3396
      %3422 = vmatprep.subr.mxu0 0.0
      %3423 = vmatpush1.msra.mxu0 %v3397
      %3424 = vmatprep.subr.mxu0 0.0
      %3425 = vmatpush1.msra.mxu0 %v3398
      %3426 = vmatprep.subr.mxu0 0.0
      %3427 = vmatpush1.msra.mxu0 %v3399
      %3428 = vmatprep.subr.mxu0 0.0
      %3429 = vmatpush1.msra.mxu0 %v3400
      %3430 = vmatprep.subr.mxu0 0.0
      %3431 = vmatpush1.msra.mxu0 %v3401
      %3432 = vmatprep.subr.mxu0 0.0
      %3433 = vmatpush1.msra.mxu0 %v3402
      %3434 = vmatprep.subr.mxu0 0.0
      %3435 = vmatpush1.msra.mxu0 %v3403
      %3436 = vmatprep.subr.mxu0 0.0
      %3437 = vmatpush1.msra.mxu0 0.0
      %3438 = vmatprep.subr.mxu0 0.0
      %3439 = vmatpush1.msra.mxu0 0.0
      %3440 = vmatprep.subr.mxu0 0.0
      %3441 = vmatpush1.msra.mxu0 0.0
      %3442 = vmatprep.subr.mxu0 0.0
      %3443 = vmatpush1.msra.mxu0 0.0
      %3444 = vmatprep.subr.mxu0 0.0
      %3445 = vmatpush1.msra.mxu0 0.0
      %3446 = vmatprep.subr.mxu0 0.0
      %3447 = vmatpush1.msra.mxu0 0.0
      %3448 = vmatprep.subr.mxu0 0.0
      %3449 = vmatpush1.msra.mxu0 0.0
      %3450 = vmatprep.subr.mxu0 0.0
      %3451 = vmatpush1.msra.mxu0 0.0
      %3452 = vmatprep.subr.mxu0 0.0
      %3453 = vmatpush1.msra.mxu0 0.0
      %3454 = vmatprep.subr.mxu0 0.0
      %3455 = vmatpush1.msra.mxu0 0.0
      %3456 = vmatprep.subr.mxu0 0.0
      %3457 = vmatpush1.msra.mxu0 0.0
      %3458 = vmatprep.subr.mxu0 0.0
      %3459 = vmatpush1.msra.mxu0 0.0
      %3460 = vmatprep.subr.mxu0 0.0
      %3461 = vmatpush1.msra.mxu0 0.0
      %3462 = vmatprep.subr.mxu0 0.0
      %3463 = vmatpush1.msra.mxu0 0.0
      %3464 = vmatprep.subr.mxu0 0.0
      %3465 = vmatpush1.msra.mxu0 0.0
      %3466 = vmatprep.subr.mxu0 0.0
      %3467 = vmatpush1.msra.mxu0 0.0
      %3468 = vmatprep.mubr.f32.mxu0 0.0
      %3469 = vmatmul.mubr.f32.gmra.mrb[0].mxu0 %v3385
      %v3470 = vpop.f32.mrb[0].mxu0
      %v3471 = vadd.f32 0.0, %v3470
      %v3472 = vpop.f32.mrb[0].mxu0
      %3473 = vdwg.mxu0
      %v3474 = vadd.f32 %v3386, %v3471
      %v3476 = vlaneseq
      %v3477 = vshrl.u32 %v3476, 7
      %v3478 = vsub.s32 0, %v3477
      %v3479 = vrot.slane %v3474, %v3478
      %v3481 = vadd.f32 %v3285, %v3479
      %v3482 = vadd.f32 %v3286, %v3479
      %v3483 = vadd.f32 %v3287, %v3479
      %v3484 = vadd.f32 %v3288, %v3479
      %v3485 = vadd.f32 %v3289, %v3479
      %v3486 = vadd.f32 %v3290, %v3479
      %v3487 = vadd.f32 %v3291, %v3479
      %v3488 = vadd.f32 %v3292, %v3479
      %v3489 = vadd.f32 %v3293, %v3479
      %v3490 = vadd.f32 %v3294, %v3479
      %v3491 = vadd.f32 %v3295, %v3479
      %v3492 = vadd.f32 %v3296, %v3479
      %v3493 = vadd.f32 %v3297, %v3479
      %v3494 = vadd.f32 %v3298, %v3479
      %v3495 = vadd.f32 %v3299, %v3479
      %v3496 = vadd.f32 %v3300, %v3479
      %v3497 = vmax.f32 %v3481, 0.0
      %v3498 = vmax.f32 %v3482, 0.0
      %v3499 = vmax.f32 %v3483, 0.0
      %v3500 = vmax.f32 %v3484, 0.0
      %v3501 = vmax.f32 %v3485, 0.0
      %v3502 = vmax.f32 %v3486, 0.0
      %v3503 = vmax.f32 %v3487, 0.0
      %v3504 = vmax.f32 %v3488, 0.0
      %v3505 = vmax.f32 %v3489, 0.0
      %v3506 = vmax.f32 %v3490, 0.0
      %v3507 = vmax.f32 %v3491, 0.0
      %v3508 = vmax.f32 %v3492, 0.0
      %v3509 = vmax.f32 %v3493, 0.0
      %v3510 = vmax.f32 %v3494, 0.0
      %v3511 = vmax.f32 %v3495, 0.0
      %v3512 = vmax.f32 %v3496, 0.0
      %3513 = vst [vmem:[%s368] sm:$0xff] %v3497
      %3514 = vst [vmem:[%s368 + $0x8] sm:$0xff] %v3498
      %3515 = vst [vmem:[%s368 + $0x10] sm:$0xff] %v3499
      %3516 = vst [vmem:[%s368 + $0x18] sm:$0xff] %v3500
      %3517 = vst [vmem:[%s368 + $0x20] sm:$0xff] %v3501
      %3518 = vst [vmem:[%s368 + $0x28] sm:$0xff] %v3502
      %3519 = vst [vmem:[%s368 + $0x30] sm:$0xff] %v3503
      %3520 = vst [vmem:[%s368 + $0x38] sm:$0xff] %v3504
      %3521 = vst [vmem:[%s368 + $0x40] sm:$0xff] %v3505
      %3522 = vst [vmem:[%s368 + $0x48] sm:$0xff] %v3506
      %3523 = vst [vmem:[%s368 + $0x50] sm:$0xff] %v3507
      %3524 = vst [vmem:[%s368 + $0x58] sm:$0xff] %v3508
      %3525 = vst [vmem:[%s368 + $0x60] sm:$0xff] %v3509
      %3526 = vst [vmem:[%s368 + $0x68] sm:$0xff] %v3510
      %3527 = vst [vmem:[%s368 + $0x70] sm:$0xff] %v3511
      %3528 = vst [vmem:[%s368 + $0x78] sm:$0xff] %v3512
      %s3529 = smul.u32 16, %s25
      %p3530 = scmp.lt.s32.totalorder %s24, 1
      %s3531 = scalar_select %p3530, %s24, 1
      %p3532 = scmp.lt.s32.totalorder %s3529, 31
      %s3533 = scalar_select %p3532, %s3529, 31
      %s3534 = smul.addr %s3531, 32
      %s3535 = sadd.s32 %s3533, %s3534
      %s3536 = smul.addr %s3535, 8
      %s3537 = scalar_lea.vmem %s9, %s3536
      // Predicated region
      $region57: #{aspp_forward.1} parent=55 // pred_check
        %p3538 = pneg %p251
      $region58: #{aspp_forward.1} parent=55 // pred_check_branch
        %3540 = sbr.rel (%p3538) target = $region60
      $region59: #{aspp_forward.1} parent=55 // pred_region
        %s3541 = smul.u32 16, %s25
      $region60: #{aspp_forward.1} parent=55 // pred_fallthru
        _
    $region56: #{aspp_forward.1} parent=5 // pred_fallthru
      _
    %p3542 = scmp.le.s32.totalorder 2, %s15
    // Predicated region
    $region61: #{aspp_forward.1} parent=5 // pred_check
      %p3543 = pneg %p3542
    $region62: #{aspp_forward.1} parent=5 // pred_check_branch
      %3545 = sbr.rel (%p3543) target = $region64
    $region63: #{aspp_forward.1} parent=5 // pred_region
      %s3546 = ssub.s32 %s15, 2
      // Predicated region
      $region65: #{aspp_forward.1} parent=63 // pred_check
        %p3547 = pneg %p257
      $region66: #{aspp_forward.1} parent=63 // pred_check_branch
        %3549 = sbr.rel (%p3547) target = $region68
      $region67: #{aspp_forward.1} parent=63 // pred_region
        %s3550 = smul.u32 16, %s27
        %p3551 = scmp.lt.s32.totalorder %s26, 1
        %s3552 = scalar_select %p3551, %s26, 1
        %p3553 = scmp.lt.s32.totalorder %s3550, 31
        %s3554 = scalar_select %p3553, %s3550, 31
        %s3555 = smul.addr %s3552, 32
        %s3556 = sadd.s32 %s3554, %s3555
        %s3557 = smul.addr %s3556, 8
        %s3558 = scalar_lea.vmem %s9, %s3557
      $region68: #{aspp_forward.1} parent=63 // pred_fallthru
        _
    $region64: #{aspp_forward.1} parent=5 // pred_fallthru
      _
  $region6: #{aspp_forward.1} parent=0 // loop_footer
    %s19 = sadd.s32 1, %s15
  $region7: #{aspp_forward.1} parent=0 // loop_footer_branch
    %14 = sbr.rel target = $region3
  $region8: #{aspp_forward.1} parent=0 // loop_exit
    _

</llo_original>
